<compile_context>
chip_gen: v6e
topology: v6e:2x2x1
jax: 0.10.0
libtpu: 0.0.40
codegen_flags: <defaults>
</compile_context>

<pallas_src>
import functools

import jax
import jax.numpy as jnp
from jax import lax
from jax.experimental import pallas as pl
from jax.experimental.pallas import tpu as pltpu

_CHUNK = 256       # in-kernel batch sub-tile (lane axis), multiple of 128
_MAX_BLOCK = 4096  # max batch rows per grid step


def _mlp_kernel(x_ref, w1_ref, b1_ref, w2_ref, b2_ref, w3_ref, b3_ref,
                w4_ref, b4_ref, o_ref, *, chunk, n_chunks):
    """x_ref: (blk, 12) native batch-major.  o_ref: (2, blk) feature-major, lane-dense.

    All four layers run per chunk so the MXU result of one layer feeds the next
    straight from vregs (no inter-layer VMEM spill traffic)."""
    prec = lax.Precision.HIGHEST
    for c in range(n_chunks):                       # static unroll; slices are free
        cols = slice(c * chunk, (c + 1) * chunk)
        xc = x_ref[cols, :]                         # (chunk, 12)
        # Layer 1: contract the feature axis of both operands -> (64, chunk).
        # Any transpose of xc stays on-chip; from here batch rides the 128-lane axis.
        z = lax.dot_general(w1_ref[...], xc, (((1,), (1,)), ((), ())),
                            preferred_element_type=jnp.float32, precision=prec)
        h = jnp.maximum(z + b1_ref[...], 0.0)
        h = jnp.maximum(
            jnp.dot(w2_ref[...], h, preferred_element_type=jnp.float32,
                    precision=prec) + b2_ref[...], 0.0)
        h = jnp.maximum(
            jnp.dot(w3_ref[...], h, preferred_element_type=jnp.float32,
                    precision=prec) + b3_ref[...], 0.0)
        out = jnp.dot(w4_ref[...], h, preferred_element_type=jnp.float32,
                      precision=prec) + b4_ref[...]
        o_ref[:, cols] = out.astype(o_ref.dtype)


def _choose_tiling(B):
    """Pick (blk, chunk): blk = batch rows per grid step, chunk = in-kernel sub-tile."""
    if B < 256:
        return B, B                       # single full block (block == array dims: always legal)
    steps = 4 if B >= 4 * _CHUNK else 2   # >=2 steps for v7x's two cores, >=4 when batch allows
    blk = -(-B // steps)                  # cdiv
    blk = -(-blk // 128) * 128            # lane-aligned
    blk = max(128, min(blk, _MAX_BLOCK))
    chunk = _CHUNK if blk % _CHUNK == 0 else 128
    return blk, chunk


def neural_network_2d_output(x, params):
    """Forward pass of NeuralNetwork2DOutput.  x: (B, 12) -> (B, 2) f32."""
    B, in_dim = x.shape
    assert in_dim == 12
    x = x.astype(jnp.float32)
    blk, chunk = _choose_tiling(B)
    n_chunks = blk // chunk
    grid = (pl.cdiv(B, blk),)

    # Weights stay in PyTorch-native (out, in) form -- exactly what the feature-major
    # kernel needs.  Biases reshaped to (out, 1) so they broadcast along lanes.
    w1, w2, w3, w4 = (params[k].astype(jnp.float32) for k in ("w1", "w2", "w3", "w4"))
    b1, b2, b3, b4 = (params[k].astype(jnp.float32).reshape(-1, 1)
                      for k in ("b1", "b2", "b3", "b4"))

    def const_spec(arr):
        return pl.BlockSpec(arr.shape, lambda i: (0, 0))   # VMEM-resident, no re-DMA

    kernel = functools.partial(_mlp_kernel, chunk=chunk, n_chunks=n_chunks)
    out_t = pl.pallas_call(
        kernel,
        out_shape=jax.ShapeDtypeStruct((2, B), jnp.float32),
        grid_spec=pltpu.PrefetchScalarGridSpec(
            num_scalar_prefetch=0,
            grid=grid,
            in_specs=[
                pl.BlockSpec((blk, 12), lambda i: (i, 0)),   # native batch-major input
                const_spec(w1), const_spec(b1),
                const_spec(w2), const_spec(b2),
                const_spec(w3), const_spec(b3),
                const_spec(w4), const_spec(b4),
            ],
            out_specs=pl.BlockSpec((2, blk), lambda i: (0, i)),  # lane-dense output tile
        ),
        compiler_params=pltpu.CompilerParams(
            dimension_semantics=("parallel",),
            vmem_limit_bytes=32 * 1024 * 1024),
    )(x, w1, b1, w2, b2, w3, b3, w4, b4)

    # Tiny (2, B) -> (B, 2) relayout; the 12-wide input was consumed in place.
    return out_t.T


def init_params(key):
    """Deterministic init matching PyTorch nn.Linear default (uniform +-1/sqrt(fan_in)).

    Weights kept in PyTorch-native (out, in) form, biases (out,)."""
    dims = [(12, 64), (64, 64), (64, 32), (32, 2)]
    params = {}
    for idx, (fan_in, fan_out) in enumerate(dims, start=1):
        key, kw, kb = jax.random.split(key, 3)
        bound = 1.0 / (fan_in ** 0.5)
        params[f"w{idx}"] = jax.random.uniform(
            kw, (fan_out, fan_in), jnp.float32, minval=-bound, maxval=bound)
        params[f"b{idx}"] = jax.random.uniform(
            kb, (fan_out,), jnp.float32, minval=-bound, maxval=bound)
    return params


def _reference(x, params):
    p = lax.Precision.HIGHEST
    h = jnp.maximum(jnp.dot(x, params["w1"].T, precision=p) + params["b1"], 0.0)
    h = jnp.maximum(jnp.dot(h, params["w2"].T, precision=p) + params["b2"], 0.0)
    h = jnp.maximum(jnp.dot(h, params["w3"].T, precision=p) + params["b3"], 0.0)
    return jnp.dot(h, params["w4"].T, precision=p) + params["b4"]


if __name__ == "__main__":
    key = jax.random.PRNGKey(0)
    key, kx = jax.random.split(key)
    batch = 256                      # small MPPI-style rollout batch -> 2 parallel grid steps
    x = jax.random.normal(kx, (batch, 12), jnp.float32)
    params = init_params(key)

    fwd = jax.jit(neural_network_2d_output)
    out = jax.block_until_ready(fwd(x, params))

    ref = _reference(x, params)
    assert out.shape == (batch, 2)
    assert jnp.allclose(out, ref, atol=1e-5, rtol=1e-5), "mismatch vs reference"
    print("KERNEL_OK")
</pallas_src>

<mosaic_0001>
module attributes {stable_mosaic.version = 11 : i64} {
  func.func @_mlp_kernel(%arg0: i32, %arg1: memref<128x12xf32, #tpu.memory_space<vmem>>, %arg2: memref<64x12xf32, #tpu.memory_space<vmem>>, %arg3: memref<64x1xf32, #tpu.memory_space<vmem>>, %arg4: memref<64x64xf32, #tpu.memory_space<vmem>>, %arg5: memref<64x1xf32, #tpu.memory_space<vmem>>, %arg6: memref<32x64xf32, #tpu.memory_space<vmem>>, %arg7: memref<32x1xf32, #tpu.memory_space<vmem>>, %arg8: memref<2x32xf32, #tpu.memory_space<vmem>>, %arg9: memref<2x1xf32, #tpu.memory_space<vmem>>, %arg10: memref<2x128xf32, #tpu.memory_space<vmem>>) attributes {dimension_semantics = [#tpu.dimension_semantics<parallel>], iteration_bounds = array<i64: 2>, scalar_prefetch = 0 : i64, scratch_operands = 0 : i64, tpu.core_type = #tpu.core_type<tc>, window_params = [{transform_indices = @transform_0, window_bounds = array<i64: 128, 12>}, {pipeline_mode = #tpu.pipeline_mode<synchronous>, transform_indices = @transform_1, window_bounds = array<i64: 64, 12>}, {pipeline_mode = #tpu.pipeline_mode<synchronous>, transform_indices = @transform_2, window_bounds = array<i64: 64, 1>}, {pipeline_mode = #tpu.pipeline_mode<synchronous>, transform_indices = @transform_3, window_bounds = array<i64: 64, 64>}, {pipeline_mode = #tpu.pipeline_mode<synchronous>, transform_indices = @transform_4, window_bounds = array<i64: 64, 1>}, {pipeline_mode = #tpu.pipeline_mode<synchronous>, transform_indices = @transform_5, window_bounds = array<i64: 32, 64>}, {pipeline_mode = #tpu.pipeline_mode<synchronous>, transform_indices = @transform_6, window_bounds = array<i64: 32, 1>}, {pipeline_mode = #tpu.pipeline_mode<synchronous>, transform_indices = @transform_7, window_bounds = array<i64: 2, 32>}, {pipeline_mode = #tpu.pipeline_mode<synchronous>, transform_indices = @transform_8, window_bounds = array<i64: 2, 1>}, {transform_indices = @transform_9, window_bounds = array<i64: 2, 128>}]} {
    %c0 = arith.constant 0 : index
    %c0_0 = arith.constant 0 : index
    %0 = vector.load %arg1[%c0, %c0_0] : memref<128x12xf32, #tpu.memory_space<vmem>>, vector<128x12xf32>
    %c0_1 = arith.constant 0 : index
    %c0_2 = arith.constant 0 : index
    %1 = vector.load %arg2[%c0_1, %c0_2] : memref<64x12xf32, #tpu.memory_space<vmem>>, vector<64x12xf32>
    %cst = arith.constant dense<0.000000e+00> : vector<64x128xf32>
    %2 = tpu.matmul %1, %0, %cst {dimension_numbers = #tpu.dot_dimension_numbers<[1], [1], [0], [0], [0, 0, 1, 0], [], []>, precision = #tpu.contract_precision<fp32>} : vector<64x12xf32>, vector<128x12xf32>, vector<64x128xf32> -> vector<64x128xf32>
    %c0_3 = arith.constant 0 : index
    %c0_4 = arith.constant 0 : index
    %3 = vector.load %arg3[%c0_3, %c0_4] : memref<64x1xf32, #tpu.memory_space<vmem>>, vector<64x1xf32>
    %4 = vector.broadcast %3 : vector<64x1xf32> to vector<64x128xf32>
    %5 = arith.addf %2, %4 : vector<64x128xf32>
    %cst_5 = arith.constant 0.000000e+00 : f32
    %6 = vector.broadcast %cst_5 : f32 to vector<64x128xf32>
    %7 = arith.maximumf %5, %6 : vector<64x128xf32>
    %c0_6 = arith.constant 0 : index
    %c0_7 = arith.constant 0 : index
    %8 = vector.load %arg4[%c0_6, %c0_7] : memref<64x64xf32, #tpu.memory_space<vmem>>, vector<64x64xf32>
    %cst_8 = arith.constant dense<0.000000e+00> : vector<64x128xf32>
    %9 = tpu.matmul %8, %7, %cst_8 {dimension_numbers = #tpu.dot_dimension_numbers<[1], [0], [0], [1], [0, 0, 1, 1], [], []>, precision = #tpu.contract_precision<fp32>} : vector<64x64xf32>, vector<64x128xf32>, vector<64x128xf32> -> vector<64x128xf32>
    %c0_9 = arith.constant 0 : index
    %c0_10 = arith.constant 0 : index
    %10 = vector.load %arg5[%c0_9, %c0_10] : memref<64x1xf32, #tpu.memory_space<vmem>>, vector<64x1xf32>
    %11 = vector.broadcast %10 : vector<64x1xf32> to vector<64x128xf32>
    %12 = arith.addf %9, %11 : vector<64x128xf32>
    %cst_11 = arith.constant 0.000000e+00 : f32
    %13 = vector.broadcast %cst_11 : f32 to vector<64x128xf32>
    %14 = arith.maximumf %12, %13 : vector<64x128xf32>
    %c0_12 = arith.constant 0 : index
    %c0_13 = arith.constant 0 : index
    %15 = vector.load %arg6[%c0_12, %c0_13] : memref<32x64xf32, #tpu.memory_space<vmem>>, vector<32x64xf32>
    %cst_14 = arith.constant dense<0.000000e+00> : vector<32x128xf32>
    %16 = tpu.matmul %15, %14, %cst_14 {dimension_numbers = #tpu.dot_dimension_numbers<[1], [0], [0], [1], [0, 0, 1, 1], [], []>, precision = #tpu.contract_precision<fp32>} : vector<32x64xf32>, vector<64x128xf32>, vector<32x128xf32> -> vector<32x128xf32>
    %c0_15 = arith.constant 0 : index
    %c0_16 = arith.constant 0 : index
    %17 = vector.load %arg7[%c0_15, %c0_16] : memref<32x1xf32, #tpu.memory_space<vmem>>, vector<32x1xf32>
    %18 = vector.broadcast %17 : vector<32x1xf32> to vector<32x128xf32>
    %19 = arith.addf %16, %18 : vector<32x128xf32>
    %cst_17 = arith.constant 0.000000e+00 : f32
    %20 = vector.broadcast %cst_17 : f32 to vector<32x128xf32>
    %21 = arith.maximumf %19, %20 : vector<32x128xf32>
    %c0_18 = arith.constant 0 : index
    %c0_19 = arith.constant 0 : index
    %22 = vector.load %arg8[%c0_18, %c0_19] : memref<2x32xf32, #tpu.memory_space<vmem>>, vector<2x32xf32>
    %cst_20 = arith.constant dense<0.000000e+00> : vector<2x128xf32>
    %23 = tpu.matmul %22, %21, %cst_20 {dimension_numbers = #tpu.dot_dimension_numbers<[1], [0], [0], [1], [0, 0, 1, 1], [], []>, precision = #tpu.contract_precision<fp32>} : vector<2x32xf32>, vector<32x128xf32>, vector<2x128xf32> -> vector<2x128xf32>
    %c0_21 = arith.constant 0 : index
    %c0_22 = arith.constant 0 : index
    %24 = vector.load %arg9[%c0_21, %c0_22] : memref<2x1xf32, #tpu.memory_space<vmem>>, vector<2x1xf32>
    %25 = vector.broadcast %24 : vector<2x1xf32> to vector<2x128xf32>
    %26 = arith.addf %23, %25 : vector<2x128xf32>
    %c0_23 = arith.constant 0 : index
    %c0_24 = arith.constant 0 : index
    %27 = vector.load %arg10[%c0_23, %c0_24] : memref<2x128xf32, #tpu.memory_space<vmem>>, vector<2x128xf32>
    tpu.vector_store %arg10[%c0_23, %c0_24], %26 {strides = array<i32>} : memref<2x128xf32, #tpu.memory_space<vmem>>, vector<2x128xf32>,
    return
  }
  func.func @transform_0(%arg0: i32) -> (i32, i32) {
    %c0_i32 = arith.constant 0 : i32
    %c0_i32_0 = arith.constant 0 : i32
    return %arg0, %c0_i32 : i32, i32
  }
  func.func @transform_1(%arg0: i32) -> (i32, i32) {
    %c0_i32 = arith.constant 0 : i32
    %c0_i32_0 = arith.constant 0 : i32
    %c0_i32_1 = arith.constant 0 : i32
    return %c0_i32, %c0_i32_0 : i32, i32
  }
  func.func @transform_2(%arg0: i32) -> (i32, i32) {
    %c0_i32 = arith.constant 0 : i32
    %c0_i32_0 = arith.constant 0 : i32
    %c0_i32_1 = arith.constant 0 : i32
    return %c0_i32, %c0_i32_0 : i32, i32
  }
  func.func @transform_3(%arg0: i32) -> (i32, i32) {
    %c0_i32 = arith.constant 0 : i32
    %c0_i32_0 = arith.constant 0 : i32
    %c0_i32_1 = arith.constant 0 : i32
    return %c0_i32, %c0_i32_0 : i32, i32
  }
  func.func @transform_4(%arg0: i32) -> (i32, i32) {
    %c0_i32 = arith.constant 0 : i32
    %c0_i32_0 = arith.constant 0 : i32
    %c0_i32_1 = arith.constant 0 : i32
    return %c0_i32, %c0_i32_0 : i32, i32
  }
  func.func @transform_5(%arg0: i32) -> (i32, i32) {
    %c0_i32 = arith.constant 0 : i32
    %c0_i32_0 = arith.constant 0 : i32
    %c0_i32_1 = arith.constant 0 : i32
    return %c0_i32, %c0_i32_0 : i32, i32
  }
  func.func @transform_6(%arg0: i32) -> (i32, i32) {
    %c0_i32 = arith.constant 0 : i32
    %c0_i32_0 = arith.constant 0 : i32
    %c0_i32_1 = arith.constant 0 : i32
    return %c0_i32, %c0_i32_0 : i32, i32
  }
  func.func @transform_7(%arg0: i32) -> (i32, i32) {
    %c0_i32 = arith.constant 0 : i32
    %c0_i32_0 = arith.constant 0 : i32
    %c0_i32_1 = arith.constant 0 : i32
    return %c0_i32, %c0_i32_0 : i32, i32
  }
  func.func @transform_8(%arg0: i32) -> (i32, i32) {
    %c0_i32 = arith.constant 0 : i32
    %c0_i32_0 = arith.constant 0 : i32
    %c0_i32_1 = arith.constant 0 : i32
    return %c0_i32, %c0_i32_0 : i32, i32
  }
  func.func @transform_9(%arg0: i32) -> (i32, i32) {
    %c0_i32 = arith.constant 0 : i32
    %c0_i32_0 = arith.constant 0 : i32
    return %c0_i32, %arg0 : i32, i32
  }
}

</mosaic_0001>

<llo_original>
// kernel: neural_network_2d_output.1
$region0: #{neural_network_2d_output.1}
  #allocation0 [shape = 'u32[]', space=smem, size = 0x4, offset = 0x4, fixed_abs, tag = 'smem constant byte address 0x4 - core index']
  #allocation1 [shape = 'u32[144,128]{1,0:T(1,128)}', space=vmem, size = 0x12000, scoped, tag = 'internal scratch']
  %s0 = inlined_call_operand.vmem [shape: f32[256,12], index: 0, kind: input, shape index: {}]
  %s1 = inlined_call_operand.vmem [shape: f32[64,12], index: 1, kind: input, shape index: {}]
  %s2 = inlined_call_operand.vmem [shape: f32[64,1], index: 2, kind: input, shape index: {}]
  %s3 = inlined_call_operand.vmem [shape: f32[64,64], index: 3, kind: input, shape index: {}]
  %s4 = inlined_call_operand.vmem [shape: f32[64,1], index: 4, kind: input, shape index: {}]
  %s5 = inlined_call_operand.vmem [shape: f32[32,64], index: 5, kind: input, shape index: {}]
  %s6 = inlined_call_operand.vmem [shape: f32[32,1], index: 6, kind: input, shape index: {}]
  %s7 = inlined_call_operand.vmem [shape: f32[2,32], index: 7, kind: input, shape index: {}]
  %s8 = inlined_call_operand.vmem [shape: f32[2,1], index: 8, kind: input, shape index: {}]
  %s9 = inlined_call_operand.hbm [shape: f32[2,256], index: 9, kind: output, shape index: {}]
  %s10 = sld [smem:[#allocation0]]
  $region69: #{neural_network_2d_output.1} parent=0
    _
  %s12 = ssub.s32 1, %s10
  %s13 = scalar_select 0, %s12, %s10
  $region1: #{neural_network_2d_output.1} parent=0
    #allocation2 [shape = 'u8[2048]{0}', space=vmem, size = 0x800, scoped, tag = 'output window, operand 0']
    #allocation3 [shape = 's32[2]{0}', space=sflag, size = 0x8, scoped, tag = 'scoped memory for neural_network_2d_output.1']
    %14 = vsyncpa [#allocation3], 0
    %s15 = scalar_lea.sflag [#allocation3], 1
    %16 = vsyncpa %s15, 0
    loop: start=0, step=1, limit=4
    $region2: #{neural_network_2d_output.1} parent=1 // loop_pre_header
      _
    $region3: #{neural_network_2d_output.1} parent=1 // loop_header
      %s18 = sphi 0, %s22
      %p19 = scmp.ge.s32.totalorder %s18, 4
      %s28 = sphi 0, %s30
      %s31 = sphi 0, %s28
      %s32 = sphi 0, %s31
      %s48 = sphi 0, %s32
      %s52 = sphi 0, %s52
      %s54 = sphi 0, %s52
      %s55 = sphi 0, %s54
      %s69 = sphi 0, %s55
      %s73 = sphi 0, %s73
      %s75 = sphi 0, %s73
      %s76 = sphi 0, %s75
      %s90 = sphi 0, %s76
      %s94 = sphi 0, %s94
      %s96 = sphi 0, %s94
      %s97 = sphi 0, %s96
      %s111 = sphi 0, %s97
      %s115 = sphi 0, %s115
      %s117 = sphi 0, %s115
      %s118 = sphi 0, %s117
      %s132 = sphi 0, %s118
      %s136 = sphi 0, %s136
      %s138 = sphi 0, %s136
      %s139 = sphi 0, %s138
      %s153 = sphi 0, %s139
      %s157 = sphi 0, %s157
      %s159 = sphi 0, %s157
      %s160 = sphi 0, %s159
      %s174 = sphi 0, %s160
      %s178 = sphi 0, %s178
      %s180 = sphi 0, %s178
      %s181 = sphi 0, %s180
      %s195 = sphi 0, %s181
      %s199 = sphi 0, %s199
      %s201 = sphi 0, %s199
      %s202 = sphi 0, %s201
      %s216 = sphi 0, %s202
      %s222 = sphi 0, %s224
      %s225 = sphi 0, %s222
      %s226 = sphi 0, %s225
      %s242 = sphi 0, %s226
    $region4: #{neural_network_2d_output.1} parent=1 // loop_header_branch
      %21 = sbr.rel (%p19) target = $region8
    $region5: #{neural_network_2d_output.1} parent=1 // loop_body
      %s23 = ssub.s32 %s18, 1
      %s24 = ssub.s32 %s18, 2
      %s25 = sadd.s32 %s18, 1
      %s26 = ssub.s32 %s18, %s25
      %p27 = scmp.eq.s32.totalorder %s26, 0
      %s29 = sadd.s32 %s28, 1
      %s30 = scalar_select %p27, %s28, %s29
      %p33 = pneg %p27
      %p34 = scmp.eq.s32.totalorder %s18, 1
      %p35 = por %p33, %p34
      %p36 = scmp.ne.s32.totalorder %s28, %s31
      %p37 = scmp.eq.s32.totalorder %s18, 0
      %p38 = por %p36, %p37
      %p39 = scmp.ne.s32.totalorder %s28, %s31
      %p40 = scmp.eq.s32.totalorder %s23, 1
      %p41 = por %p39, %p40
      %p42 = scmp.ne.s32.totalorder %s31, %s32
      %p43 = scmp.eq.s32.totalorder %s23, 0
      %p44 = por %p42, %p43
      %p45 = scmp.ne.s32.totalorder %s31, %s32
      %p46 = scmp.eq.s32.totalorder %s24, 1
      %p47 = por %p45, %p46
      %p49 = scmp.ne.s32.totalorder %s32, %s48
      %p50 = scmp.eq.s32.totalorder %s24, 0
      %p51 = por %p49, %p50
      %s53 = sadd.s32 %s52, 1
      %p56 = scmp.eq.s32.totalorder %s18, 1
      %p57 = scmp.ne.s32.totalorder %s52, %s54
      %p58 = scmp.eq.s32.totalorder %s18, 0
      %p59 = por %p57, %p58
      %p60 = scmp.ne.s32.totalorder %s52, %s54
      %p61 = scmp.eq.s32.totalorder %s23, 1
      %p62 = por %p60, %p61
      %p63 = scmp.ne.s32.totalorder %s54, %s55
      %p64 = scmp.eq.s32.totalorder %s23, 0
      %p65 = por %p63, %p64
      %p66 = scmp.ne.s32.totalorder %s54, %s55
      %p67 = scmp.eq.s32.totalorder %s24, 1
      %p68 = por %p66, %p67
      %p70 = scmp.ne.s32.totalorder %s55, %s69
      %p71 = scmp.eq.s32.totalorder %s24, 0
      %p72 = por %p70, %p71
      %s74 = sadd.s32 %s73, 1
      %p77 = scmp.eq.s32.totalorder %s18, 1
      %p78 = scmp.ne.s32.totalorder %s73, %s75
      %p79 = scmp.eq.s32.totalorder %s18, 0
      %p80 = por %p78, %p79
      %p81 = scmp.ne.s32.totalorder %s73, %s75
      %p82 = scmp.eq.s32.totalorder %s23, 1
      %p83 = por %p81, %p82
      %p84 = scmp.ne.s32.totalorder %s75, %s76
      %p85 = scmp.eq.s32.totalorder %s23, 0
      %p86 = por %p84, %p85
      %p87 = scmp.ne.s32.totalorder %s75, %s76
      %p88 = scmp.eq.s32.totalorder %s24, 1
      %p89 = por %p87, %p88
      %p91 = scmp.ne.s32.totalorder %s76, %s90
      %p92 = scmp.eq.s32.totalorder %s24, 0
      %p93 = por %p91, %p92
      %s95 = sadd.s32 %s94, 1
      %p98 = scmp.eq.s32.totalorder %s18, 1
      %p99 = scmp.ne.s32.totalorder %s94, %s96
      %p100 = scmp.eq.s32.totalorder %s18, 0
      %p101 = por %p99, %p100
      %p102 = scmp.ne.s32.totalorder %s94, %s96
      %p103 = scmp.eq.s32.totalorder %s23, 1
      %p104 = por %p102, %p103
      %p105 = scmp.ne.s32.totalorder %s96, %s97
      %p106 = scmp.eq.s32.totalorder %s23, 0
      %p107 = por %p105, %p106
      %p108 = scmp.ne.s32.totalorder %s96, %s97
      %p109 = scmp.eq.s32.totalorder %s24, 1
      %p110 = por %p108, %p109
      %p112 = scmp.ne.s32.totalorder %s97, %s111
      %p113 = scmp.eq.s32.totalorder %s24, 0
      %p114 = por %p112, %p113
      %s116 = sadd.s32 %s115, 1
      %p119 = scmp.eq.s32.totalorder %s18, 1
      %p120 = scmp.ne.s32.totalorder %s115, %s117
      %p121 = scmp.eq.s32.totalorder %s18, 0
      %p122 = por %p120, %p121
      %p123 = scmp.ne.s32.totalorder %s115, %s117
      %p124 = scmp.eq.s32.totalorder %s23, 1
      %p125 = por %p123, %p124
      %p126 = scmp.ne.s32.totalorder %s117, %s118
      %p127 = scmp.eq.s32.totalorder %s23, 0
      %p128 = por %p126, %p127
      %p129 = scmp.ne.s32.totalorder %s117, %s118
      %p130 = scmp.eq.s32.totalorder %s24, 1
      %p131 = por %p129, %p130
      %p133 = scmp.ne.s32.totalorder %s118, %s132
      %p134 = scmp.eq.s32.totalorder %s24, 0
      %p135 = por %p133, %p134
      %s137 = sadd.s32 %s136, 1
      %p140 = scmp.eq.s32.totalorder %s18, 1
      %p141 = scmp.ne.s32.totalorder %s136, %s138
      %p142 = scmp.eq.s32.totalorder %s18, 0
      %p143 = por %p141, %p142
      %p144 = scmp.ne.s32.totalorder %s136, %s138
      %p145 = scmp.eq.s32.totalorder %s23, 1
      %p146 = por %p144, %p145
      %p147 = scmp.ne.s32.totalorder %s138, %s139
      %p148 = scmp.eq.s32.totalorder %s23, 0
      %p149 = por %p147, %p148
      %p150 = scmp.ne.s32.totalorder %s138, %s139
      %p151 = scmp.eq.s32.totalorder %s24, 1
      %p152 = por %p150, %p151
      %p154 = scmp.ne.s32.totalorder %s139, %s153
      %p155 = scmp.eq.s32.totalorder %s24, 0
      %p156 = por %p154, %p155
      %s158 = sadd.s32 %s157, 1
      %p161 = scmp.eq.s32.totalorder %s18, 1
      %p162 = scmp.ne.s32.totalorder %s157, %s159
      %p163 = scmp.eq.s32.totalorder %s18, 0
      %p164 = por %p162, %p163
      %p165 = scmp.ne.s32.totalorder %s157, %s159
      %p166 = scmp.eq.s32.totalorder %s23, 1
      %p167 = por %p165, %p166
      %p168 = scmp.ne.s32.totalorder %s159, %s160
      %p169 = scmp.eq.s32.totalorder %s23, 0
      %p170 = por %p168, %p169
      %p171 = scmp.ne.s32.totalorder %s159, %s160
      %p172 = scmp.eq.s32.totalorder %s24, 1
      %p173 = por %p171, %p172
      %p175 = scmp.ne.s32.totalorder %s160, %s174
      %p176 = scmp.eq.s32.totalorder %s24, 0
      %p177 = por %p175, %p176
      %s179 = sadd.s32 %s178, 1
      %p182 = scmp.eq.s32.totalorder %s18, 1
      %p183 = scmp.ne.s32.totalorder %s178, %s180
      %p184 = scmp.eq.s32.totalorder %s18, 0
      %p185 = por %p183, %p184
      %p186 = scmp.ne.s32.totalorder %s178, %s180
      %p187 = scmp.eq.s32.totalorder %s23, 1
      %p188 = por %p186, %p187
      %p189 = scmp.ne.s32.totalorder %s180, %s181
      %p190 = scmp.eq.s32.totalorder %s23, 0
      %p191 = por %p189, %p190
      %p192 = scmp.ne.s32.totalorder %s180, %s181
      %p193 = scmp.eq.s32.totalorder %s24, 1
      %p194 = por %p192, %p193
      %p196 = scmp.ne.s32.totalorder %s181, %s195
      %p197 = scmp.eq.s32.totalorder %s24, 0
      %p198 = por %p196, %p197
      %s200 = sadd.s32 %s199, 1
      %p203 = scmp.eq.s32.totalorder %s18, 1
      %p204 = scmp.ne.s32.totalorder %s199, %s201
      %p205 = scmp.eq.s32.totalorder %s18, 0
      %p206 = por %p204, %p205
      %p207 = scmp.ne.s32.totalorder %s199, %s201
      %p208 = scmp.eq.s32.totalorder %s23, 1
      %p209 = por %p207, %p208
      %p210 = scmp.ne.s32.totalorder %s201, %s202
      %p211 = scmp.eq.s32.totalorder %s23, 0
      %p212 = por %p210, %p211
      %p213 = scmp.ne.s32.totalorder %s201, %s202
      %p214 = scmp.eq.s32.totalorder %s24, 1
      %p215 = por %p213, %p214
      %p217 = scmp.ne.s32.totalorder %s202, %s216
      %p218 = scmp.eq.s32.totalorder %s24, 0
      %p219 = por %p217, %p218
      %s220 = ssub.s32 %s18, %s25
      %p221 = scmp.eq.s32.totalorder %s220, 0
      %s223 = sadd.s32 %s222, 1
      %s224 = scalar_select %p221, %s222, %s223
      %p227 = pneg %p221
      %p228 = scmp.eq.s32.totalorder %s18, 1
      %p229 = por %p227, %p228
      %p230 = scmp.ne.s32.totalorder %s222, %s225
      %p231 = scmp.eq.s32.totalorder %s18, 0
      %p232 = por %p230, %p231
      %p233 = scmp.ne.s32.totalorder %s222, %s225
      %p234 = scmp.eq.s32.totalorder %s23, 1
      %p235 = por %p233, %p234
      %p236 = scmp.ne.s32.totalorder %s225, %s226
      %p237 = scmp.eq.s32.totalorder %s23, 0
      %p238 = por %p236, %p237
      %p239 = scmp.ne.s32.totalorder %s225, %s226
      %p240 = scmp.eq.s32.totalorder %s24, 1
      %p241 = por %p239, %p240
      %p243 = scmp.ne.s32.totalorder %s226, %s242
      %p244 = scmp.eq.s32.totalorder %s24, 0
      %p245 = por %p243, %p244
      %p246 = scmp.le.s32.totalorder 1, %s18
      %p247 = scmp.lt.s32.totalorder %s18, 3
      %p248 = pnand %p246, %p247
      %p249 = pneg %p248
      // Predicated region
      $region9: #{neural_network_2d_output.1} parent=5 // pred_check
        _
      $region10: #{neural_network_2d_output.1} parent=5 // pred_check_branch
        %251 = sbr.rel (%p248) target = $region12
      $region11: #{neural_network_2d_output.1} parent=5 // pred_region
        %s252 = ssub.s32 %s18, 1
        // Predicated region
        $region13: #{neural_network_2d_output.1} parent=11 // pred_check
          %p253 = pneg %p65
        $region14: #{neural_network_2d_output.1} parent=11 // pred_check_branch
          %255 = sbr.rel (%p253) target = $region16
        $region15: #{neural_network_2d_output.1} parent=11 // pred_region
          _
        $region16: #{neural_network_2d_output.1} parent=11 // pred_fallthru
          _
        // Predicated region
        $region17: #{neural_network_2d_output.1} parent=11 // pred_check
          %p256 = pneg %p86
        $region18: #{neural_network_2d_output.1} parent=11 // pred_check_branch
          %258 = sbr.rel (%p256) target = $region20
        $region19: #{neural_network_2d_output.1} parent=11 // pred_region
          _
        $region20: #{neural_network_2d_output.1} parent=11 // pred_fallthru
          _
        // Predicated region
        $region21: #{neural_network_2d_output.1} parent=11 // pred_check
          %p259 = pneg %p107
        $region22: #{neural_network_2d_output.1} parent=11 // pred_check_branch
          %261 = sbr.rel (%p259) target = $region24
        $region23: #{neural_network_2d_output.1} parent=11 // pred_region
          _
        $region24: #{neural_network_2d_output.1} parent=11 // pred_fallthru
          _
        // Predicated region
        $region25: #{neural_network_2d_output.1} parent=11 // pred_check
          %p262 = pneg %p128
        $region26: #{neural_network_2d_output.1} parent=11 // pred_check_branch
          %264 = sbr.rel (%p262) target = $region28
        $region27: #{neural_network_2d_output.1} parent=11 // pred_region
          _
        $region28: #{neural_network_2d_output.1} parent=11 // pred_fallthru
          _
        // Predicated region
        $region29: #{neural_network_2d_output.1} parent=11 // pred_check
          %p265 = pneg %p149
        $region30: #{neural_network_2d_output.1} parent=11 // pred_check_branch
          %267 = sbr.rel (%p265) target = $region32
        $region31: #{neural_network_2d_output.1} parent=11 // pred_region
          _
        $region32: #{neural_network_2d_output.1} parent=11 // pred_fallthru
          _
        // Predicated region
        $region33: #{neural_network_2d_output.1} parent=11 // pred_check
          %p268 = pneg %p170
        $region34: #{neural_network_2d_output.1} parent=11 // pred_check_branch
          %270 = sbr.rel (%p268) target = $region36
        $region35: #{neural_network_2d_output.1} parent=11 // pred_region
          _
        $region36: #{neural_network_2d_output.1} parent=11 // pred_fallthru
          _
        // Predicated region
        $region37: #{neural_network_2d_output.1} parent=11 // pred_check
          %p271 = pneg %p191
        $region38: #{neural_network_2d_output.1} parent=11 // pred_check_branch
          %273 = sbr.rel (%p271) target = $region40
        $region39: #{neural_network_2d_output.1} parent=11 // pred_region
          _
        $region40: #{neural_network_2d_output.1} parent=11 // pred_fallthru
          _
        // Predicated region
        $region41: #{neural_network_2d_output.1} parent=11 // pred_check
          %p274 = pneg %p212
        $region42: #{neural_network_2d_output.1} parent=11 // pred_check_branch
          %276 = sbr.rel (%p274) target = $region44
        $region43: #{neural_network_2d_output.1} parent=11 // pred_region
          _
        $region44: #{neural_network_2d_output.1} parent=11 // pred_fallthru
          _
      $region12: #{neural_network_2d_output.1} parent=5 // pred_fallthru
        _
      %p277 = scmp.lt.s32.totalorder %s18, 2
      // Predicated region
      $region45: #{neural_network_2d_output.1} parent=5 // pred_check
        %p278 = pneg %p277
      $region46: #{neural_network_2d_output.1} parent=5 // pred_check_branch
        %280 = sbr.rel (%p278) target = $region48
      $region47: #{neural_network_2d_output.1} parent=5 // pred_region
        // Predicated region
        $region49: #{neural_network_2d_output.1} parent=47 // pred_check
          %p281 = pneg %p38
        $region50: #{neural_network_2d_output.1} parent=47 // pred_check_branch
          %283 = sbr.rel (%p281) target = $region52
        $region51: #{neural_network_2d_output.1} parent=47 // pred_region
          %s284 = smul.u32 16, %s18
          %p285 = scmp.lt.s32.totalorder %s284, 31
          %s286 = scalar_select %p285, %s284, 31
          %s287 = smul.addr %s286, 8
          %s288 = scalar_lea.vmem %s0, %s287
          %s289 = smul.u32 16, %s18
        $region52: #{neural_network_2d_output.1} parent=47 // pred_fallthru
          _
      $region48: #{neural_network_2d_output.1} parent=5 // pred_fallthru
        _
      %p290 = scmp.le.s32.totalorder 1, %s18
      %p291 = scmp.lt.s32.totalorder %s18, 3
      %p292 = pnand %p290, %p291
      %p293 = pneg %p292
      // Predicated region
      $region53: #{neural_network_2d_output.1} parent=5 // pred_check
        _
      $region54: #{neural_network_2d_output.1} parent=5 // pred_check_branch
        %295 = sbr.rel (%p292) target = $region56
      $region55: #{neural_network_2d_output.1} parent=5 // pred_region
        %s296 = ssub.s32 %s18, 1
        %s297 = smul.u32 16, %s23
        %p298 = scmp.lt.s32.totalorder %s297, 31
        %s299 = scalar_select %p298, %s297, 31
        %s300 = smul.addr %s299, 8
        %s301 = scalar_lea.vmem %s0, %s300
        %p302 = pneg %p44
        %p303 = pneg %p41
        %p304 = pneg %p65
        %p305 = pneg %p62
        %p306 = pneg %p86
        %p307 = pneg %p83
        %p308 = pneg %p107
        %p309 = pneg %p104
        %p310 = pneg %p128
        %p311 = pneg %p125
        %p312 = pneg %p149
        %p313 = pneg %p146
        %p314 = pneg %p170
        %p315 = pneg %p167
        %p316 = pneg %p191
        %p317 = pneg %p188
        %p318 = pneg %p212
        %p319 = pneg %p209
        %p320 = pneg %p238
        %p321 = pneg %p235
        %s322 = sand.u32 %s225, 1
        %s323 = scalar_lea.sflag [#allocation3], %s322
        %s324 = sand.u32 %s225, 1
        %s325 = smul.addr %s324, 2
        %s326 = scalar_lea.vmem [#allocation2], %s325
        %s327 = smul.u32 16, %s23
        %p328 = scmp.lt.s32.totalorder %s327, 31
        %s329 = scalar_select %p328, %s327, 31
        %s330 = smul.addr %s329, 8
        %s331 = scalar_lea.vmem %s0, %s330
        %s332 = smul.u32 16, %s23
        %v333 = vld [vmem:[%s331] sm:$0xff]
        %v334 = vld [vmem:[%s331 + $0x8] sm:$0xff]
        %v335 = vld [vmem:[%s331 + $0x10] sm:$0xff]
        %v336 = vld [vmem:[%s331 + $0x18] sm:$0xff]
        %v337 = vld [vmem:[%s331 + $0x20] sm:$0xff]
        %v338 = vld [vmem:[%s331 + $0x28] sm:$0xff]
        %v339 = vld [vmem:[%s331 + $0x30] sm:$0xff]
        %v340 = vld [vmem:[%s331 + $0x38] sm:$0xff]
        %v341 = vld [vmem:[%s331 + $0x40] sm:$0xff]
        %v342 = vld [vmem:[%s331 + $0x48] sm:$0xff]
        %v343 = vld [vmem:[%s331 + $0x50] sm:$0xff]
        %v344 = vld [vmem:[%s331 + $0x58] sm:$0xff]
        %v345 = vld [vmem:[%s331 + $0x60] sm:$0xff]
        %v346 = vld [vmem:[%s331 + $0x68] sm:$0xff]
        %v347 = vld [vmem:[%s331 + $0x70] sm:$0xff]
        %v348 = vld [vmem:[%s331 + $0x78] sm:$0xff]
        %v349 = vld [vmem:[%s1] sm:$0xff]
        %v350 = vld [vmem:[%s1 + $0x8] sm:$0xff]
        %v351 = vld [vmem:[%s1 + $0x10] sm:$0xff]
        %v352 = vld [vmem:[%s1 + $0x18] sm:$0xff]
        %v353 = vld [vmem:[%s1 + $0x20] sm:$0xff]
        %v354 = vld [vmem:[%s1 + $0x28] sm:$0xff]
        %v355 = vld [vmem:[%s1 + $0x30] sm:$0xff]
        %v356 = vld [vmem:[%s1 + $0x38] sm:$0xff]
        %v357 = vld [vmem:[%s2] sm:$0xff]
        %v358 = vld [vmem:[%s2 + $0x8] sm:$0xff]
        %v359 = vld [vmem:[%s2 + $0x10] sm:$0xff]
        %v360 = vld [vmem:[%s2 + $0x18] sm:$0xff]
        %v361 = vld [vmem:[%s2 + $0x20] sm:$0xff]
        %v362 = vld [vmem:[%s2 + $0x28] sm:$0xff]
        %v363 = vld [vmem:[%s2 + $0x30] sm:$0xff]
        %v364 = vld [vmem:[%s2 + $0x38] sm:$0xff]
        %366 = vset.pattern.permute.xlu0 0
        %367 = vperm.xlu0 %366, %v357
        %v368 = vpop.permute.xlu0 %367
        %371 = vset.pattern.permute.xlu0 0
        %372 = vperm.xlu0 %371, %v358
        %v373 = vpop.permute.xlu0 %372
        %376 = vset.pattern.permute.xlu0 0
        %377 = vperm.xlu0 %376, %v359
        %v378 = vpop.permute.xlu0 %377
        %381 = vset.pattern.permute.xlu0 0
        %382 = vperm.xlu0 %381, %v360
        %v383 = vpop.permute.xlu0 %382
        %386 = vset.pattern.permute.xlu0 0
        %387 = vperm.xlu0 %386, %v361
        %v388 = vpop.permute.xlu0 %387
        %391 = vset.pattern.permute.xlu0 0
        %392 = vperm.xlu0 %391, %v362
        %v393 = vpop.permute.xlu0 %392
        %396 = vset.pattern.permute.xlu0 0
        %397 = vperm.xlu0 %396, %v363
        %v398 = vpop.permute.xlu0 %397
        %401 = vset.pattern.permute.xlu0 0
        %402 = vperm.xlu0 %401, %v364
        %v403 = vpop.permute.xlu0 %402
        %vm405 = vcmask 97280
        %v407 = vsel %vm405, %v349, 0
        %v410 = vsel %vm405, %v350, 0
        %v413 = vsel %vm405, %v351, 0
        %v416 = vsel %vm405, %v352, 0
        %v419 = vsel %vm405, %v353, 0
        %v422 = vsel %vm405, %v354, 0
        %v425 = vsel %vm405, %v355, 0
        %v428 = vsel %vm405, %v356, 0
        %v431 = vsel %vm405, %v333, 0
        %v434 = vsel %vm405, %v334, 0
        %v437 = vsel %vm405, %v335, 0
        %v440 = vsel %vm405, %v336, 0
        %v443 = vsel %vm405, %v337, 0
        %v446 = vsel %vm405, %v338, 0
        %v449 = vsel %vm405, %v339, 0
        %v452 = vsel %vm405, %v340, 0
        %v455 = vsel %vm405, %v341, 0
        %v458 = vsel %vm405, %v342, 0
        %v461 = vsel %vm405, %v343, 0
        %v464 = vsel %vm405, %v344, 0
        %v467 = vsel %vm405, %v345, 0
        %v470 = vsel %vm405, %v346, 0
        %v473 = vsel %vm405, %v347, 0
        %v476 = vsel %vm405, %v348, 0
        %478 = vmatprep.subr.mxu0 0.0
        %v479 = vand.u32 %v476, 4294901760
        %480 = vmatpush1.xpose.msra.mxu0 %v479
        %481 = vmatprep.subr.mxu0 0.0
        %v482 = vand.u32 %v473, 4294901760
        %483 = vmatpush1.xpose.msra.mxu0 %v482
        %484 = vmatprep.subr.mxu0 0.0
        %v485 = vand.u32 %v470, 4294901760
        %486 = vmatpush1.xpose.msra.mxu0 %v485
        %487 = vmatprep.subr.mxu0 0.0
        %v488 = vand.u32 %v467, 4294901760
        %489 = vmatpush1.xpose.msra.mxu0 %v488
        %490 = vmatprep.subr.mxu0 0.0
        %v491 = vand.u32 %v464, 4294901760
        %492 = vmatpush1.xpose.msra.mxu0 %v491
        %493 = vmatprep.subr.mxu0 0.0
        %v494 = vand.u32 %v461, 4294901760
        %495 = vmatpush1.xpose.msra.mxu0 %v494
        %496 = vmatprep.subr.mxu0 0.0
        %v497 = vand.u32 %v458, 4294901760
        %498 = vmatpush1.xpose.msra.mxu0 %v497
        %499 = vmatprep.subr.mxu0 0.0
        %v500 = vand.u32 %v455, 4294901760
        %501 = vmatpush1.xpose.msra.mxu0 %v500
        %502 = vmatprep.subr.mxu0 0.0
        %v503 = vand.u32 %v452, 4294901760
        %504 = vmatpush1.xpose.msra.mxu0 %v503
        %505 = vmatprep.subr.mxu0 0.0
        %v506 = vand.u32 %v449, 4294901760
        %507 = vmatpush1.xpose.msra.mxu0 %v506
        %508 = vmatprep.subr.mxu0 0.0
        %v509 = vand.u32 %v446, 4294901760
        %510 = vmatpush1.xpose.msra.mxu0 %v509
        %511 = vmatprep.subr.mxu0 0.0
        %v512 = vand.u32 %v443, 4294901760
        %513 = vmatpush1.xpose.msra.mxu0 %v512
        %514 = vmatprep.subr.mxu0 0.0
        %v515 = vand.u32 %v440, 4294901760
        %516 = vmatpush1.xpose.msra.mxu0 %v515
        %517 = vmatprep.subr.mxu0 0.0
        %v518 = vand.u32 %v437, 4294901760
        %519 = vmatpush1.xpose.msra.mxu0 %v518
        %520 = vmatprep.subr.mxu0 0.0
        %v521 = vand.u32 %v434, 4294901760
        %522 = vmatpush1.xpose.msra.mxu0 %v521
        %523 = vmatprep.subr.mxu0 0.0
        %v524 = vand.u32 %v431, 4294901760
        %525 = vmatpush1.xpose.msra.mxu0 %v524
        %526 = vmatprep.subr.mxu0 0.0
        %527 = vmatpush2.xpose.msra.mxu0 0.0
        %528 = vmatprep.subr.mxu0 0.0
        %529 = vmatpush2.xpose.msra.mxu0 0.0
        %530 = vmatprep.subr.mxu0 0.0
        %531 = vmatpush2.xpose.msra.mxu0 0.0
        %532 = vmatprep.subr.mxu0 0.0
        %533 = vmatpush2.xpose.msra.mxu0 0.0
        %534 = vmatprep.subr.mxu0 0.0
        %535 = vmatpush2.xpose.msra.mxu0 0.0
        %536 = vmatprep.subr.mxu0 0.0
        %537 = vmatpush2.xpose.msra.mxu0 0.0
        %538 = vmatprep.subr.mxu0 0.0
        %539 = vmatpush2.xpose.msra.mxu0 0.0
        %540 = vmatprep.subr.mxu0 0.0
        %541 = vmatpush2.xpose.msra.mxu0 0.0
        %542 = vmatprep.subr.mxu0 0.0
        %543 = vmatpush2.xpose.msra.mxu0 0.0
        %544 = vmatprep.subr.mxu0 0.0
        %545 = vmatpush2.xpose.msra.mxu0 0.0
        %546 = vmatprep.subr.mxu0 0.0
        %547 = vmatpush2.xpose.msra.mxu0 0.0
        %548 = vmatprep.subr.mxu0 0.0
        %549 = vmatpush2.xpose.msra.mxu0 0.0
        %550 = vmatprep.subr.mxu0 0.0
        %551 = vmatpush2.xpose.msra.mxu0 0.0
        %552 = vmatprep.subr.mxu0 0.0
        %553 = vmatpush2.xpose.msra.mxu0 0.0
        %554 = vmatprep.subr.mxu0 0.0
        %555 = vmatpush2.xpose.msra.mxu0 0.0
        %556 = vmatprep.subr.mxu0 0.0
        %557 = vmatpush2.xpose.msra.mxu0 0.0
        %558 = vmatprep.mubr.f32.mxu0 0.0
        %v559 = vand.u32 %v407, 4294901760
        %v560 = vsub.f32 %v407, %v559
        %v561 = vand.u32 %v560, 4294901760
        %v562 = vsub.f32 %v560, %v561
        %v563 = vand.u32 %v562, 4294901760
        %564 = vmatmul.mubr.f32.gmra.mxu0 %v563
        %v565 = vpop.f32.mrf.mxu0
        %v566 = vadd.f32 %v368, %v565
        %v567 = vpop.f32.mrf.mxu0
        %568 = vmatprep.mubr.f32.mxu0 0.0
        %v569 = vand.u32 %v410, 4294901760
        %v570 = vsub.f32 %v410, %v569
        %v571 = vand.u32 %v570, 4294901760
        %v572 = vsub.f32 %v570, %v571
        %v573 = vand.u32 %v572, 4294901760
        %574 = vmatmul.mubr.f32.gmra.mxu0 %v573
        %v575 = vpop.f32.mrf.mxu0
        %v576 = vadd.f32 %v373, %v575
        %v577 = vpop.f32.mrf.mxu0
        %578 = vmatprep.mubr.f32.mxu0 0.0
        %v579 = vand.u32 %v413, 4294901760
        %v580 = vsub.f32 %v413, %v579
        %v581 = vand.u32 %v580, 4294901760
        %v582 = vsub.f32 %v580, %v581
        %v583 = vand.u32 %v582, 4294901760
        %584 = vmatmul.mubr.f32.gmra.mxu0 %v583
        %v585 = vpop.f32.mrf.mxu0
        %v586 = vadd.f32 %v378, %v585
        %v587 = vpop.f32.mrf.mxu0
        %588 = vmatprep.mubr.f32.mxu0 0.0
        %v589 = vand.u32 %v416, 4294901760
        %v590 = vsub.f32 %v416, %v589
        %v591 = vand.u32 %v590, 4294901760
        %v592 = vsub.f32 %v590, %v591
        %v593 = vand.u32 %v592, 4294901760
        %594 = vmatmul.mubr.f32.gmra.mxu0 %v593
        %v595 = vpop.f32.mrf.mxu0
        %v596 = vadd.f32 %v383, %v595
        %v597 = vpop.f32.mrf.mxu0
        %598 = vmatprep.mubr.f32.mxu0 0.0
        %v599 = vand.u32 %v419, 4294901760
        %v600 = vsub.f32 %v419, %v599
        %v601 = vand.u32 %v600, 4294901760
        %v602 = vsub.f32 %v600, %v601
        %v603 = vand.u32 %v602, 4294901760
        %604 = vmatmul.mubr.f32.gmra.mxu0 %v603
        %v605 = vpop.f32.mrf.mxu0
        %v606 = vadd.f32 %v388, %v605
        %v607 = vpop.f32.mrf.mxu0
        %608 = vmatprep.mubr.f32.mxu0 0.0
        %v609 = vand.u32 %v422, 4294901760
        %v610 = vsub.f32 %v422, %v609
        %v611 = vand.u32 %v610, 4294901760
        %v612 = vsub.f32 %v610, %v611
        %v613 = vand.u32 %v612, 4294901760
        %614 = vmatmul.mubr.f32.gmra.mxu0 %v613
        %v615 = vpop.f32.mrf.mxu0
        %v616 = vadd.f32 %v393, %v615
        %v617 = vpop.f32.mrf.mxu0
        %618 = vmatprep.mubr.f32.mxu0 0.0
        %v619 = vand.u32 %v425, 4294901760
        %v620 = vsub.f32 %v425, %v619
        %v621 = vand.u32 %v620, 4294901760
        %v622 = vsub.f32 %v620, %v621
        %v623 = vand.u32 %v622, 4294901760
        %624 = vmatmul.mubr.f32.gmra.mxu0 %v623
        %v625 = vpop.f32.mrf.mxu0
        %v626 = vadd.f32 %v398, %v625
        %v627 = vpop.f32.mrf.mxu0
        %628 = vmatprep.mubr.f32.mxu0 0.0
        %v629 = vand.u32 %v428, 4294901760
        %v630 = vsub.f32 %v428, %v629
        %v631 = vand.u32 %v630, 4294901760
        %v632 = vsub.f32 %v630, %v631
        %v633 = vand.u32 %v632, 4294901760
        %634 = vmatmul.mubr.f32.gmra.mxu0 %v633
        %v635 = vpop.f32.mrf.mxu0
        %v636 = vadd.f32 %v403, %v635
        %v637 = vpop.f32.mrf.mxu0
        %638 = vdwg.mxu0
        %639 = vmatprep.subr.mxu0 0.0
        %v640 = vand.u32 %v476, 4294901760
        %v641 = vsub.f32 %v476, %v640
        %v642 = vand.u32 %v641, 4294901760
        %v643 = vsub.f32 %v641, %v642
        %v644 = vand.u32 %v643, 4294901760
        %645 = vmatpush1.xpose.msra.mxu0 %v644
        %646 = vmatprep.subr.mxu0 0.0
        %v647 = vand.u32 %v473, 4294901760
        %v648 = vsub.f32 %v473, %v647
        %v649 = vand.u32 %v648, 4294901760
        %v650 = vsub.f32 %v648, %v649
        %v651 = vand.u32 %v650, 4294901760
        %652 = vmatpush1.xpose.msra.mxu0 %v651
        %653 = vmatprep.subr.mxu0 0.0
        %v654 = vand.u32 %v470, 4294901760
        %v655 = vsub.f32 %v470, %v654
        %v656 = vand.u32 %v655, 4294901760
        %v657 = vsub.f32 %v655, %v656
        %v658 = vand.u32 %v657, 4294901760
        %659 = vmatpush1.xpose.msra.mxu0 %v658
        %660 = vmatprep.subr.mxu0 0.0
        %v661 = vand.u32 %v467, 4294901760
        %v662 = vsub.f32 %v467, %v661
        %v663 = vand.u32 %v662, 4294901760
        %v664 = vsub.f32 %v662, %v663
        %v665 = vand.u32 %v664, 4294901760
        %666 = vmatpush1.xpose.msra.mxu0 %v665
        %667 = vmatprep.subr.mxu0 0.0
        %v668 = vand.u32 %v464, 4294901760
        %v669 = vsub.f32 %v464, %v668
        %v670 = vand.u32 %v669, 4294901760
        %v671 = vsub.f32 %v669, %v670
        %v672 = vand.u32 %v671, 4294901760
        %673 = vmatpush1.xpose.msra.mxu0 %v672
        %674 = vmatprep.subr.mxu0 0.0
        %v675 = vand.u32 %v461, 4294901760
        %v676 = vsub.f32 %v461, %v675
        %v677 = vand.u32 %v676, 4294901760
        %v678 = vsub.f32 %v676, %v677
        %v679 = vand.u32 %v678, 4294901760
        %680 = vmatpush1.xpose.msra.mxu0 %v679
        %681 = vmatprep.subr.mxu0 0.0
        %v682 = vand.u32 %v458, 4294901760
        %v683 = vsub.f32 %v458, %v682
        %v684 = vand.u32 %v683, 4294901760
        %v685 = vsub.f32 %v683, %v684
        %v686 = vand.u32 %v685, 4294901760
        %687 = vmatpush1.xpose.msra.mxu0 %v686
        %688 = vmatprep.subr.mxu0 0.0
        %v689 = vand.u32 %v455, 4294901760
        %v690 = vsub.f32 %v455, %v689
        %v691 = vand.u32 %v690, 4294901760
        %v692 = vsub.f32 %v690, %v691
        %v693 = vand.u32 %v692, 4294901760
        %694 = vmatpush1.xpose.msra.mxu0 %v693
        %695 = vmatprep.subr.mxu0 0.0
        %v696 = vand.u32 %v452, 4294901760
        %v697 = vsub.f32 %v452, %v696
        %v698 = vand.u32 %v697, 4294901760
        %v699 = vsub.f32 %v697, %v698
        %v700 = vand.u32 %v699, 4294901760
        %701 = vmatpush1.xpose.msra.mxu0 %v700
        %702 = vmatprep.subr.mxu0 0.0
        %v703 = vand.u32 %v449, 4294901760
        %v704 = vsub.f32 %v449, %v703
        %v705 = vand.u32 %v704, 4294901760
        %v706 = vsub.f32 %v704, %v705
        %v707 = vand.u32 %v706, 4294901760
        %708 = vmatpush1.xpose.msra.mxu0 %v707
        %709 = vmatprep.subr.mxu0 0.0
        %v710 = vand.u32 %v446, 4294901760
        %v711 = vsub.f32 %v446, %v710
        %v712 = vand.u32 %v711, 4294901760
        %v713 = vsub.f32 %v711, %v712
        %v714 = vand.u32 %v713, 4294901760
        %715 = vmatpush1.xpose.msra.mxu0 %v714
        %716 = vmatprep.subr.mxu0 0.0
        %v717 = vand.u32 %v443, 4294901760
        %v718 = vsub.f32 %v443, %v717
        %v719 = vand.u32 %v718, 4294901760
        %v720 = vsub.f32 %v718, %v719
        %v721 = vand.u32 %v720, 4294901760
        %722 = vmatpush1.xpose.msra.mxu0 %v721
        %723 = vmatprep.subr.mxu0 0.0
        %v724 = vand.u32 %v440, 4294901760
        %v725 = vsub.f32 %v440, %v724
        %v726 = vand.u32 %v725, 4294901760
        %v727 = vsub.f32 %v725, %v726
        %v728 = vand.u32 %v727, 4294901760
        %729 = vmatpush1.xpose.msra.mxu0 %v728
        %730 = vmatprep.subr.mxu0 0.0
        %v731 = vand.u32 %v437, 4294901760
        %v732 = vsub.f32 %v437, %v731
        %v733 = vand.u32 %v732, 4294901760
        %v734 = vsub.f32 %v732, %v733
        %v735 = vand.u32 %v734, 4294901760
        %736 = vmatpush1.xpose.msra.mxu0 %v735
        %737 = vmatprep.subr.mxu0 0.0
        %v738 = vand.u32 %v434, 4294901760
        %v739 = vsub.f32 %v434, %v738
        %v740 = vand.u32 %v739, 4294901760
        %v741 = vsub.f32 %v739, %v740
        %v742 = vand.u32 %v741, 4294901760
        %743 = vmatpush1.xpose.msra.mxu0 %v742
        %744 = vmatprep.subr.mxu0 0.0
        %v745 = vand.u32 %v431, 4294901760
        %v746 = vsub.f32 %v431, %v745
        %v747 = vand.u32 %v746, 4294901760
        %v748 = vsub.f32 %v746, %v747
        %v749 = vand.u32 %v748, 4294901760
        %750 = vmatpush1.xpose.msra.mxu0 %v749
        %751 = vmatprep.subr.mxu0 0.0
        %752 = vmatpush2.xpose.msra.mxu0 0.0
        %753 = vmatprep.subr.mxu0 0.0
        %754 = vmatpush2.xpose.msra.mxu0 0.0
        %755 = vmatprep.subr.mxu0 0.0
        %756 = vmatpush2.xpose.msra.mxu0 0.0
        %757 = vmatprep.subr.mxu0 0.0
        %758 = vmatpush2.xpose.msra.mxu0 0.0
        %759 = vmatprep.subr.mxu0 0.0
        %760 = vmatpush2.xpose.msra.mxu0 0.0
        %761 = vmatprep.subr.mxu0 0.0
        %762 = vmatpush2.xpose.msra.mxu0 0.0
        %763 = vmatprep.subr.mxu0 0.0
        %764 = vmatpush2.xpose.msra.mxu0 0.0
        %765 = vmatprep.subr.mxu0 0.0
        %766 = vmatpush2.xpose.msra.mxu0 0.0
        %767 = vmatprep.subr.mxu0 0.0
        %768 = vmatpush2.xpose.msra.mxu0 0.0
        %769 = vmatprep.subr.mxu0 0.0
        %770 = vmatpush2.xpose.msra.mxu0 0.0
        %771 = vmatprep.subr.mxu0 0.0
        %772 = vmatpush2.xpose.msra.mxu0 0.0
        %773 = vmatprep.subr.mxu0 0.0
        %774 = vmatpush2.xpose.msra.mxu0 0.0
        %775 = vmatprep.subr.mxu0 0.0
        %776 = vmatpush2.xpose.msra.mxu0 0.0
        %777 = vmatprep.subr.mxu0 0.0
        %778 = vmatpush2.xpose.msra.mxu0 0.0
        %779 = vmatprep.subr.mxu0 0.0
        %780 = vmatpush2.xpose.msra.mxu0 0.0
        %781 = vmatprep.subr.mxu0 0.0
        %782 = vmatpush2.xpose.msra.mxu0 0.0
        %783 = vmatprep.mubr.f32.mxu0 0.0
        %v784 = vand.u32 %v407, 4294901760
        %785 = vmatmul.mubr.f32.gmra.mxu0 %v784
        %v786 = vpop.f32.mrf.mxu0
        %v787 = vadd.f32 %v566, %v786
        %v788 = vpop.f32.mrf.mxu0
        %789 = vmatprep.mubr.f32.mxu0 0.0
        %v790 = vand.u32 %v410, 4294901760
        %791 = vmatmul.mubr.f32.gmra.mxu0 %v790
        %v792 = vpop.f32.mrf.mxu0
        %v793 = vadd.f32 %v576, %v792
        %v794 = vpop.f32.mrf.mxu0
        %795 = vmatprep.mubr.f32.mxu0 0.0
        %v796 = vand.u32 %v413, 4294901760
        %797 = vmatmul.mubr.f32.gmra.mxu0 %v796
        %v798 = vpop.f32.mrf.mxu0
        %v799 = vadd.f32 %v586, %v798
        %v800 = vpop.f32.mrf.mxu0
        %801 = vmatprep.mubr.f32.mxu0 0.0
        %v802 = vand.u32 %v416, 4294901760
        %803 = vmatmul.mubr.f32.gmra.mxu0 %v802
        %v804 = vpop.f32.mrf.mxu0
        %v805 = vadd.f32 %v596, %v804
        %v806 = vpop.f32.mrf.mxu0
        %807 = vmatprep.mubr.f32.mxu0 0.0
        %v808 = vand.u32 %v419, 4294901760
        %809 = vmatmul.mubr.f32.gmra.mxu0 %v808
        %v810 = vpop.f32.mrf.mxu0
        %v811 = vadd.f32 %v606, %v810
        %v812 = vpop.f32.mrf.mxu0
        %813 = vmatprep.mubr.f32.mxu0 0.0
        %v814 = vand.u32 %v422, 4294901760
        %815 = vmatmul.mubr.f32.gmra.mxu0 %v814
        %v816 = vpop.f32.mrf.mxu0
        %v817 = vadd.f32 %v616, %v816
        %v818 = vpop.f32.mrf.mxu0
        %819 = vmatprep.mubr.f32.mxu0 0.0
        %v820 = vand.u32 %v425, 4294901760
        %821 = vmatmul.mubr.f32.gmra.mxu0 %v820
        %v822 = vpop.f32.mrf.mxu0
        %v823 = vadd.f32 %v626, %v822
        %v824 = vpop.f32.mrf.mxu0
        %825 = vmatprep.mubr.f32.mxu0 0.0
        %v826 = vand.u32 %v428, 4294901760
        %827 = vmatmul.mubr.f32.gmra.mxu0 %v826
        %v828 = vpop.f32.mrf.mxu0
        %v829 = vadd.f32 %v636, %v828
        %v830 = vpop.f32.mrf.mxu0
        %831 = vdwg.mxu0
        %832 = vmatprep.subr.mxu0 0.0
        %v833 = vand.u32 %v476, 4294901760
        %v834 = vsub.f32 %v476, %v833
        %835 = vmatpush1.xpose.msra.mxu0 %v834
        %836 = vmatprep.subr.mxu0 0.0
        %v837 = vand.u32 %v473, 4294901760
        %v838 = vsub.f32 %v473, %v837
        %839 = vmatpush1.xpose.msra.mxu0 %v838
        %840 = vmatprep.subr.mxu0 0.0
        %v841 = vand.u32 %v470, 4294901760
        %v842 = vsub.f32 %v470, %v841
        %843 = vmatpush1.xpose.msra.mxu0 %v842
        %844 = vmatprep.subr.mxu0 0.0
        %v845 = vand.u32 %v467, 4294901760
        %v846 = vsub.f32 %v467, %v845
        %847 = vmatpush1.xpose.msra.mxu0 %v846
        %848 = vmatprep.subr.mxu0 0.0
        %v849 = vand.u32 %v464, 4294901760
        %v850 = vsub.f32 %v464, %v849
        %851 = vmatpush1.xpose.msra.mxu0 %v850
        %852 = vmatprep.subr.mxu0 0.0
        %v853 = vand.u32 %v461, 4294901760
        %v854 = vsub.f32 %v461, %v853
        %855 = vmatpush1.xpose.msra.mxu0 %v854
        %856 = vmatprep.subr.mxu0 0.0
        %v857 = vand.u32 %v458, 4294901760
        %v858 = vsub.f32 %v458, %v857
        %859 = vmatpush1.xpose.msra.mxu0 %v858
        %860 = vmatprep.subr.mxu0 0.0
        %v861 = vand.u32 %v455, 4294901760
        %v862 = vsub.f32 %v455, %v861
        %863 = vmatpush1.xpose.msra.mxu0 %v862
        %864 = vmatprep.subr.mxu0 0.0
        %v865 = vand.u32 %v452, 4294901760
        %v866 = vsub.f32 %v452, %v865
        %867 = vmatpush1.xpose.msra.mxu0 %v866
        %868 = vmatprep.subr.mxu0 0.0
        %v869 = vand.u32 %v449, 4294901760
        %v870 = vsub.f32 %v449, %v869
        %871 = vmatpush1.xpose.msra.mxu0 %v870
        %872 = vmatprep.subr.mxu0 0.0
        %v873 = vand.u32 %v446, 4294901760
        %v874 = vsub.f32 %v446, %v873
        %875 = vmatpush1.xpose.msra.mxu0 %v874
        %876 = vmatprep.subr.mxu0 0.0
        %v877 = vand.u32 %v443, 4294901760
        %v878 = vsub.f32 %v443, %v877
        %879 = vmatpush1.xpose.msra.mxu0 %v878
        %880 = vmatprep.subr.mxu0 0.0
        %v881 = vand.u32 %v440, 4294901760
        %v882 = vsub.f32 %v440, %v881
        %883 = vmatpush1.xpose.msra.mxu0 %v882
        %884 = vmatprep.subr.mxu0 0.0
        %v885 = vand.u32 %v437, 4294901760
        %v886 = vsub.f32 %v437, %v885
        %887 = vmatpush1.xpose.msra.mxu0 %v886
        %888 = vmatprep.subr.mxu0 0.0
        %v889 = vand.u32 %v434, 4294901760
        %v890 = vsub.f32 %v434, %v889
        %891 = vmatpush1.xpose.msra.mxu0 %v890
        %892 = vmatprep.subr.mxu0 0.0
        %v893 = vand.u32 %v431, 4294901760
        %v894 = vsub.f32 %v431, %v893
        %895 = vmatpush1.xpose.msra.mxu0 %v894
        %896 = vmatprep.subr.mxu0 0.0
        %897 = vmatpush2.xpose.msra.mxu0 0.0
        %898 = vmatprep.subr.mxu0 0.0
        %899 = vmatpush2.xpose.msra.mxu0 0.0
        %900 = vmatprep.subr.mxu0 0.0
        %901 = vmatpush2.xpose.msra.mxu0 0.0
        %902 = vmatprep.subr.mxu0 0.0
        %903 = vmatpush2.xpose.msra.mxu0 0.0
        %904 = vmatprep.subr.mxu0 0.0
        %905 = vmatpush2.xpose.msra.mxu0 0.0
        %906 = vmatprep.subr.mxu0 0.0
        %907 = vmatpush2.xpose.msra.mxu0 0.0
        %908 = vmatprep.subr.mxu0 0.0
        %909 = vmatpush2.xpose.msra.mxu0 0.0
        %910 = vmatprep.subr.mxu0 0.0
        %911 = vmatpush2.xpose.msra.mxu0 0.0
        %912 = vmatprep.subr.mxu0 0.0
        %913 = vmatpush2.xpose.msra.mxu0 0.0
        %914 = vmatprep.subr.mxu0 0.0
        %915 = vmatpush2.xpose.msra.mxu0 0.0
        %916 = vmatprep.subr.mxu0 0.0
        %917 = vmatpush2.xpose.msra.mxu0 0.0
        %918 = vmatprep.subr.mxu0 0.0
        %919 = vmatpush2.xpose.msra.mxu0 0.0
        %920 = vmatprep.subr.mxu0 0.0
        %921 = vmatpush2.xpose.msra.mxu0 0.0
        %922 = vmatprep.subr.mxu0 0.0
        %923 = vmatpush2.xpose.msra.mxu0 0.0
        %924 = vmatprep.subr.mxu0 0.0
        %925 = vmatpush2.xpose.msra.mxu0 0.0
        %926 = vmatprep.subr.mxu0 0.0
        %927 = vmatpush2.xpose.msra.mxu0 0.0
        %928 = vmatprep.mubr.f32.mxu0 0.0
        %v929 = vand.u32 %v407, 4294901760
        %v930 = vsub.f32 %v407, %v929
        %931 = vmatmul.mubr.f32.gmra.mxu0 %v930
        %v932 = vpop.f32.mrf.mxu0
        %v933 = vadd.f32 %v787, %v932
        %v934 = vpop.f32.mrf.mxu0
        %935 = vmatprep.mubr.f32.mxu0 0.0
        %v936 = vand.u32 %v410, 4294901760
        %v937 = vsub.f32 %v410, %v936
        %938 = vmatmul.mubr.f32.gmra.mxu0 %v937
        %v939 = vpop.f32.mrf.mxu0
        %v940 = vadd.f32 %v793, %v939
        %v941 = vpop.f32.mrf.mxu0
        %942 = vmatprep.mubr.f32.mxu0 0.0
        %v943 = vand.u32 %v413, 4294901760
        %v944 = vsub.f32 %v413, %v943
        %945 = vmatmul.mubr.f32.gmra.mxu0 %v944
        %v946 = vpop.f32.mrf.mxu0
        %v947 = vadd.f32 %v799, %v946
        %v948 = vpop.f32.mrf.mxu0
        %949 = vmatprep.mubr.f32.mxu0 0.0
        %v950 = vand.u32 %v416, 4294901760
        %v951 = vsub.f32 %v416, %v950
        %952 = vmatmul.mubr.f32.gmra.mxu0 %v951
        %v953 = vpop.f32.mrf.mxu0
        %v954 = vadd.f32 %v805, %v953
        %v955 = vpop.f32.mrf.mxu0
        %956 = vmatprep.mubr.f32.mxu0 0.0
        %v957 = vand.u32 %v419, 4294901760
        %v958 = vsub.f32 %v419, %v957
        %959 = vmatmul.mubr.f32.gmra.mxu0 %v958
        %v960 = vpop.f32.mrf.mxu0
        %v961 = vadd.f32 %v811, %v960
        %v962 = vpop.f32.mrf.mxu0
        %963 = vmatprep.mubr.f32.mxu0 0.0
        %v964 = vand.u32 %v422, 4294901760
        %v965 = vsub.f32 %v422, %v964
        %966 = vmatmul.mubr.f32.gmra.mxu0 %v965
        %v967 = vpop.f32.mrf.mxu0
        %v968 = vadd.f32 %v817, %v967
        %v969 = vpop.f32.mrf.mxu0
        %970 = vmatprep.mubr.f32.mxu0 0.0
        %v971 = vand.u32 %v425, 4294901760
        %v972 = vsub.f32 %v425, %v971
        %973 = vmatmul.mubr.f32.gmra.mxu0 %v972
        %v974 = vpop.f32.mrf.mxu0
        %v975 = vadd.f32 %v823, %v974
        %v976 = vpop.f32.mrf.mxu0
        %977 = vmatprep.mubr.f32.mxu0 0.0
        %v978 = vand.u32 %v428, 4294901760
        %v979 = vsub.f32 %v428, %v978
        %980 = vmatmul.mubr.f32.gmra.mxu0 %v979
        %v981 = vpop.f32.mrf.mxu0
        %v982 = vadd.f32 %v829, %v981
        %v983 = vpop.f32.mrf.mxu0
        %984 = vdwg.mxu0
        %985 = vmatprep.subr.mxu0 0.0
        %v986 = vand.u32 %v476, 4294901760
        %987 = vmatpush1.xpose.msra.mxu0 %v986
        %988 = vmatprep.subr.mxu0 0.0
        %v989 = vand.u32 %v473, 4294901760
        %990 = vmatpush1.xpose.msra.mxu0 %v989
        %991 = vmatprep.subr.mxu0 0.0
        %v992 = vand.u32 %v470, 4294901760
        %993 = vmatpush1.xpose.msra.mxu0 %v992
        %994 = vmatprep.subr.mxu0 0.0
        %v995 = vand.u32 %v467, 4294901760
        %996 = vmatpush1.xpose.msra.mxu0 %v995
        %997 = vmatprep.subr.mxu0 0.0
        %v998 = vand.u32 %v464, 4294901760
        %999 = vmatpush1.xpose.msra.mxu0 %v998
        %1000 = vmatprep.subr.mxu0 0.0
        %v1001 = vand.u32 %v461, 4294901760
        %1002 = vmatpush1.xpose.msra.mxu0 %v1001
        %1003 = vmatprep.subr.mxu0 0.0
        %v1004 = vand.u32 %v458, 4294901760
        %1005 = vmatpush1.xpose.msra.mxu0 %v1004
        %1006 = vmatprep.subr.mxu0 0.0
        %v1007 = vand.u32 %v455, 4294901760
        %1008 = vmatpush1.xpose.msra.mxu0 %v1007
        %1009 = vmatprep.subr.mxu0 0.0
        %v1010 = vand.u32 %v452, 4294901760
        %1011 = vmatpush1.xpose.msra.mxu0 %v1010
        %1012 = vmatprep.subr.mxu0 0.0
        %v1013 = vand.u32 %v449, 4294901760
        %1014 = vmatpush1.xpose.msra.mxu0 %v1013
        %1015 = vmatprep.subr.mxu0 0.0
        %v1016 = vand.u32 %v446, 4294901760
        %1017 = vmatpush1.xpose.msra.mxu0 %v1016
        %1018 = vmatprep.subr.mxu0 0.0
        %v1019 = vand.u32 %v443, 4294901760
        %1020 = vmatpush1.xpose.msra.mxu0 %v1019
        %1021 = vmatprep.subr.mxu0 0.0
        %v1022 = vand.u32 %v440, 4294901760
        %1023 = vmatpush1.xpose.msra.mxu0 %v1022
        %1024 = vmatprep.subr.mxu0 0.0
        %v1025 = vand.u32 %v437, 4294901760
        %1026 = vmatpush1.xpose.msra.mxu0 %v1025
        %1027 = vmatprep.subr.mxu0 0.0
        %v1028 = vand.u32 %v434, 4294901760
        %1029 = vmatpush1.xpose.msra.mxu0 %v1028
        %1030 = vmatprep.subr.mxu0 0.0
        %v1031 = vand.u32 %v431, 4294901760
        %1032 = vmatpush1.xpose.msra.mxu0 %v1031
        %1033 = vmatprep.subr.mxu0 0.0
        %1034 = vmatpush2.xpose.msra.mxu0 0.0
        %1035 = vmatprep.subr.mxu0 0.0
        %1036 = vmatpush2.xpose.msra.mxu0 0.0
        %1037 = vmatprep.subr.mxu0 0.0
        %1038 = vmatpush2.xpose.msra.mxu0 0.0
        %1039 = vmatprep.subr.mxu0 0.0
        %1040 = vmatpush2.xpose.msra.mxu0 0.0
        %1041 = vmatprep.subr.mxu0 0.0
        %1042 = vmatpush2.xpose.msra.mxu0 0.0
        %1043 = vmatprep.subr.mxu0 0.0
        %1044 = vmatpush2.xpose.msra.mxu0 0.0
        %1045 = vmatprep.subr.mxu0 0.0
        %1046 = vmatpush2.xpose.msra.mxu0 0.0
        %1047 = vmatprep.subr.mxu0 0.0
        %1048 = vmatpush2.xpose.msra.mxu0 0.0
        %1049 = vmatprep.subr.mxu0 0.0
        %1050 = vmatpush2.xpose.msra.mxu0 0.0
        %1051 = vmatprep.subr.mxu0 0.0
        %1052 = vmatpush2.xpose.msra.mxu0 0.0
        %1053 = vmatprep.subr.mxu0 0.0
        %1054 = vmatpush2.xpose.msra.mxu0 0.0
        %1055 = vmatprep.subr.mxu0 0.0
        %1056 = vmatpush2.xpose.msra.mxu0 0.0
        %1057 = vmatprep.subr.mxu0 0.0
        %1058 = vmatpush2.xpose.msra.mxu0 0.0
        %1059 = vmatprep.subr.mxu0 0.0
        %1060 = vmatpush2.xpose.msra.mxu0 0.0
        %1061 = vmatprep.subr.mxu0 0.0
        %1062 = vmatpush2.xpose.msra.mxu0 0.0
        %1063 = vmatprep.subr.mxu0 0.0
        %1064 = vmatpush2.xpose.msra.mxu0 0.0
        %1065 = vmatprep.mubr.f32.mxu0 0.0
        %v1066 = vand.u32 %v407, 4294901760
        %v1067 = vsub.f32 %v407, %v1066
        %v1068 = vand.u32 %v1067, 4294901760
        %1069 = vmatmul.mubr.f32.gmra.mxu0 %v1068
        %v1070 = vpop.f32.mrf.mxu0
        %v1071 = vadd.f32 %v933, %v1070
        %v1072 = vpop.f32.mrf.mxu0
        %1073 = vmatprep.mubr.f32.mxu0 0.0
        %v1074 = vand.u32 %v410, 4294901760
        %v1075 = vsub.f32 %v410, %v1074
        %v1076 = vand.u32 %v1075, 4294901760
        %1077 = vmatmul.mubr.f32.gmra.mxu0 %v1076
        %v1078 = vpop.f32.mrf.mxu0
        %v1079 = vadd.f32 %v940, %v1078
        %v1080 = vpop.f32.mrf.mxu0
        %1081 = vmatprep.mubr.f32.mxu0 0.0
        %v1082 = vand.u32 %v413, 4294901760
        %v1083 = vsub.f32 %v413, %v1082
        %v1084 = vand.u32 %v1083, 4294901760
        %1085 = vmatmul.mubr.f32.gmra.mxu0 %v1084
        %v1086 = vpop.f32.mrf.mxu0
        %v1087 = vadd.f32 %v947, %v1086
        %v1088 = vpop.f32.mrf.mxu0
        %1089 = vmatprep.mubr.f32.mxu0 0.0
        %v1090 = vand.u32 %v416, 4294901760
        %v1091 = vsub.f32 %v416, %v1090
        %v1092 = vand.u32 %v1091, 4294901760
        %1093 = vmatmul.mubr.f32.gmra.mxu0 %v1092
        %v1094 = vpop.f32.mrf.mxu0
        %v1095 = vadd.f32 %v954, %v1094
        %v1096 = vpop.f32.mrf.mxu0
        %1097 = vmatprep.mubr.f32.mxu0 0.0
        %v1098 = vand.u32 %v419, 4294901760
        %v1099 = vsub.f32 %v419, %v1098
        %v1100 = vand.u32 %v1099, 4294901760
        %1101 = vmatmul.mubr.f32.gmra.mxu0 %v1100
        %v1102 = vpop.f32.mrf.mxu0
        %v1103 = vadd.f32 %v961, %v1102
        %v1104 = vpop.f32.mrf.mxu0
        %1105 = vmatprep.mubr.f32.mxu0 0.0
        %v1106 = vand.u32 %v422, 4294901760
        %v1107 = vsub.f32 %v422, %v1106
        %v1108 = vand.u32 %v1107, 4294901760
        %1109 = vmatmul.mubr.f32.gmra.mxu0 %v1108
        %v1110 = vpop.f32.mrf.mxu0
        %v1111 = vadd.f32 %v968, %v1110
        %v1112 = vpop.f32.mrf.mxu0
        %1113 = vmatprep.mubr.f32.mxu0 0.0
        %v1114 = vand.u32 %v425, 4294901760
        %v1115 = vsub.f32 %v425, %v1114
        %v1116 = vand.u32 %v1115, 4294901760
        %1117 = vmatmul.mubr.f32.gmra.mxu0 %v1116
        %v1118 = vpop.f32.mrf.mxu0
        %v1119 = vadd.f32 %v975, %v1118
        %v1120 = vpop.f32.mrf.mxu0
        %1121 = vmatprep.mubr.f32.mxu0 0.0
        %v1122 = vand.u32 %v428, 4294901760
        %v1123 = vsub.f32 %v428, %v1122
        %v1124 = vand.u32 %v1123, 4294901760
        %1125 = vmatmul.mubr.f32.gmra.mxu0 %v1124
        %v1126 = vpop.f32.mrf.mxu0
        %v1127 = vadd.f32 %v982, %v1126
        %v1128 = vpop.f32.mrf.mxu0
        %1129 = vdwg.mxu0
        %1130 = vmatprep.subr.mxu0 0.0
        %v1131 = vand.u32 %v476, 4294901760
        %v1132 = vsub.f32 %v476, %v1131
        %v1133 = vand.u32 %v1132, 4294901760
        %1134 = vmatpush1.xpose.msra.mxu0 %v1133
        %1135 = vmatprep.subr.mxu0 0.0
        %v1136 = vand.u32 %v473, 4294901760
        %v1137 = vsub.f32 %v473, %v1136
        %v1138 = vand.u32 %v1137, 4294901760
        %1139 = vmatpush1.xpose.msra.mxu0 %v1138
        %1140 = vmatprep.subr.mxu0 0.0
        %v1141 = vand.u32 %v470, 4294901760
        %v1142 = vsub.f32 %v470, %v1141
        %v1143 = vand.u32 %v1142, 4294901760
        %1144 = vmatpush1.xpose.msra.mxu0 %v1143
        %1145 = vmatprep.subr.mxu0 0.0
        %v1146 = vand.u32 %v467, 4294901760
        %v1147 = vsub.f32 %v467, %v1146
        %v1148 = vand.u32 %v1147, 4294901760
        %1149 = vmatpush1.xpose.msra.mxu0 %v1148
        %1150 = vmatprep.subr.mxu0 0.0
        %v1151 = vand.u32 %v464, 4294901760
        %v1152 = vsub.f32 %v464, %v1151
        %v1153 = vand.u32 %v1152, 4294901760
        %1154 = vmatpush1.xpose.msra.mxu0 %v1153
        %1155 = vmatprep.subr.mxu0 0.0
        %v1156 = vand.u32 %v461, 4294901760
        %v1157 = vsub.f32 %v461, %v1156
        %v1158 = vand.u32 %v1157, 4294901760
        %1159 = vmatpush1.xpose.msra.mxu0 %v1158
        %1160 = vmatprep.subr.mxu0 0.0
        %v1161 = vand.u32 %v458, 4294901760
        %v1162 = vsub.f32 %v458, %v1161
        %v1163 = vand.u32 %v1162, 4294901760
        %1164 = vmatpush1.xpose.msra.mxu0 %v1163
        %1165 = vmatprep.subr.mxu0 0.0
        %v1166 = vand.u32 %v455, 4294901760
        %v1167 = vsub.f32 %v455, %v1166
        %v1168 = vand.u32 %v1167, 4294901760
        %1169 = vmatpush1.xpose.msra.mxu0 %v1168
        %1170 = vmatprep.subr.mxu0 0.0
        %v1171 = vand.u32 %v452, 4294901760
        %v1172 = vsub.f32 %v452, %v1171
        %v1173 = vand.u32 %v1172, 4294901760
        %1174 = vmatpush1.xpose.msra.mxu0 %v1173
        %1175 = vmatprep.subr.mxu0 0.0
        %v1176 = vand.u32 %v449, 4294901760
        %v1177 = vsub.f32 %v449, %v1176
        %v1178 = vand.u32 %v1177, 4294901760
        %1179 = vmatpush1.xpose.msra.mxu0 %v1178
        %1180 = vmatprep.subr.mxu0 0.0
        %v1181 = vand.u32 %v446, 4294901760
        %v1182 = vsub.f32 %v446, %v1181
        %v1183 = vand.u32 %v1182, 4294901760
        %1184 = vmatpush1.xpose.msra.mxu0 %v1183
        %1185 = vmatprep.subr.mxu0 0.0
        %v1186 = vand.u32 %v443, 4294901760
        %v1187 = vsub.f32 %v443, %v1186
        %v1188 = vand.u32 %v1187, 4294901760
        %1189 = vmatpush1.xpose.msra.mxu0 %v1188
        %1190 = vmatprep.subr.mxu0 0.0
        %v1191 = vand.u32 %v440, 4294901760
        %v1192 = vsub.f32 %v440, %v1191
        %v1193 = vand.u32 %v1192, 4294901760
        %1194 = vmatpush1.xpose.msra.mxu0 %v1193
        %1195 = vmatprep.subr.mxu0 0.0
        %v1196 = vand.u32 %v437, 4294901760
        %v1197 = vsub.f32 %v437, %v1196
        %v1198 = vand.u32 %v1197, 4294901760
        %1199 = vmatpush1.xpose.msra.mxu0 %v1198
        %1200 = vmatprep.subr.mxu0 0.0
        %v1201 = vand.u32 %v434, 4294901760
        %v1202 = vsub.f32 %v434, %v1201
        %v1203 = vand.u32 %v1202, 4294901760
        %1204 = vmatpush1.xpose.msra.mxu0 %v1203
        %1205 = vmatprep.subr.mxu0 0.0
        %v1206 = vand.u32 %v431, 4294901760
        %v1207 = vsub.f32 %v431, %v1206
        %v1208 = vand.u32 %v1207, 4294901760
        %1209 = vmatpush1.xpose.msra.mxu0 %v1208
        %1210 = vmatprep.subr.mxu0 0.0
        %1211 = vmatpush2.xpose.msra.mxu0 0.0
        %1212 = vmatprep.subr.mxu0 0.0
        %1213 = vmatpush2.xpose.msra.mxu0 0.0
        %1214 = vmatprep.subr.mxu0 0.0
        %1215 = vmatpush2.xpose.msra.mxu0 0.0
        %1216 = vmatprep.subr.mxu0 0.0
        %1217 = vmatpush2.xpose.msra.mxu0 0.0
        %1218 = vmatprep.subr.mxu0 0.0
        %1219 = vmatpush2.xpose.msra.mxu0 0.0
        %1220 = vmatprep.subr.mxu0 0.0
        %1221 = vmatpush2.xpose.msra.mxu0 0.0
        %1222 = vmatprep.subr.mxu0 0.0
        %1223 = vmatpush2.xpose.msra.mxu0 0.0
        %1224 = vmatprep.subr.mxu0 0.0
        %1225 = vmatpush2.xpose.msra.mxu0 0.0
        %1226 = vmatprep.subr.mxu0 0.0
        %1227 = vmatpush2.xpose.msra.mxu0 0.0
        %1228 = vmatprep.subr.mxu0 0.0
        %1229 = vmatpush2.xpose.msra.mxu0 0.0
        %1230 = vmatprep.subr.mxu0 0.0
        %1231 = vmatpush2.xpose.msra.mxu0 0.0
        %1232 = vmatprep.subr.mxu0 0.0
        %1233 = vmatpush2.xpose.msra.mxu0 0.0
        %1234 = vmatprep.subr.mxu0 0.0
        %1235 = vmatpush2.xpose.msra.mxu0 0.0
        %1236 = vmatprep.subr.mxu0 0.0
        %1237 = vmatpush2.xpose.msra.mxu0 0.0
        %1238 = vmatprep.subr.mxu0 0.0
        %1239 = vmatpush2.xpose.msra.mxu0 0.0
        %1240 = vmatprep.subr.mxu0 0.0
        %1241 = vmatpush2.xpose.msra.mxu0 0.0
        %1242 = vmatprep.mubr.f32.mxu0 0.0
        %v1243 = vand.u32 %v407, 4294901760
        %1244 = vmatmul.mubr.f32.gmra.mxu0 %v1243
        %v1245 = vpop.f32.mrf.mxu0
        %v1246 = vadd.f32 %v1071, %v1245
        %v1247 = vpop.f32.mrf.mxu0
        %1248 = vmatprep.mubr.f32.mxu0 0.0
        %v1249 = vand.u32 %v410, 4294901760
        %1250 = vmatmul.mubr.f32.gmra.mxu0 %v1249
        %v1251 = vpop.f32.mrf.mxu0
        %v1252 = vadd.f32 %v1079, %v1251
        %v1253 = vpop.f32.mrf.mxu0
        %1254 = vmatprep.mubr.f32.mxu0 0.0
        %v1255 = vand.u32 %v413, 4294901760
        %1256 = vmatmul.mubr.f32.gmra.mxu0 %v1255
        %v1257 = vpop.f32.mrf.mxu0
        %v1258 = vadd.f32 %v1087, %v1257
        %v1259 = vpop.f32.mrf.mxu0
        %1260 = vmatprep.mubr.f32.mxu0 0.0
        %v1261 = vand.u32 %v416, 4294901760
        %1262 = vmatmul.mubr.f32.gmra.mxu0 %v1261
        %v1263 = vpop.f32.mrf.mxu0
        %v1264 = vadd.f32 %v1095, %v1263
        %v1265 = vpop.f32.mrf.mxu0
        %1266 = vmatprep.mubr.f32.mxu0 0.0
        %v1267 = vand.u32 %v419, 4294901760
        %1268 = vmatmul.mubr.f32.gmra.mxu0 %v1267
        %v1269 = vpop.f32.mrf.mxu0
        %v1270 = vadd.f32 %v1103, %v1269
        %v1271 = vpop.f32.mrf.mxu0
        %1272 = vmatprep.mubr.f32.mxu0 0.0
        %v1273 = vand.u32 %v422, 4294901760
        %1274 = vmatmul.mubr.f32.gmra.mxu0 %v1273
        %v1275 = vpop.f32.mrf.mxu0
        %v1276 = vadd.f32 %v1111, %v1275
        %v1277 = vpop.f32.mrf.mxu0
        %1278 = vmatprep.mubr.f32.mxu0 0.0
        %v1279 = vand.u32 %v425, 4294901760
        %1280 = vmatmul.mubr.f32.gmra.mxu0 %v1279
        %v1281 = vpop.f32.mrf.mxu0
        %v1282 = vadd.f32 %v1119, %v1281
        %v1283 = vpop.f32.mrf.mxu0
        %1284 = vmatprep.mubr.f32.mxu0 0.0
        %v1285 = vand.u32 %v428, 4294901760
        %1286 = vmatmul.mubr.f32.gmra.mxu0 %v1285
        %v1287 = vpop.f32.mrf.mxu0
        %v1288 = vadd.f32 %v1127, %v1287
        %v1289 = vpop.f32.mrf.mxu0
        %1290 = vdwg.mxu0
        %1291 = vmatprep.subr.mxu0 0.0
        %v1292 = vand.u32 %v476, 4294901760
        %1293 = vmatpush1.xpose.msra.mxu0 %v1292
        %1294 = vmatprep.subr.mxu0 0.0
        %v1295 = vand.u32 %v473, 4294901760
        %1296 = vmatpush1.xpose.msra.mxu0 %v1295
        %1297 = vmatprep.subr.mxu0 0.0
        %v1298 = vand.u32 %v470, 4294901760
        %1299 = vmatpush1.xpose.msra.mxu0 %v1298
        %1300 = vmatprep.subr.mxu0 0.0
        %v1301 = vand.u32 %v467, 4294901760
        %1302 = vmatpush1.xpose.msra.mxu0 %v1301
        %1303 = vmatprep.subr.mxu0 0.0
        %v1304 = vand.u32 %v464, 4294901760
        %1305 = vmatpush1.xpose.msra.mxu0 %v1304
        %1306 = vmatprep.subr.mxu0 0.0
        %v1307 = vand.u32 %v461, 4294901760
        %1308 = vmatpush1.xpose.msra.mxu0 %v1307
        %1309 = vmatprep.subr.mxu0 0.0
        %v1310 = vand.u32 %v458, 4294901760
        %1311 = vmatpush1.xpose.msra.mxu0 %v1310
        %1312 = vmatprep.subr.mxu0 0.0
        %v1313 = vand.u32 %v455, 4294901760
        %1314 = vmatpush1.xpose.msra.mxu0 %v1313
        %1315 = vmatprep.subr.mxu0 0.0
        %v1316 = vand.u32 %v452, 4294901760
        %1317 = vmatpush1.xpose.msra.mxu0 %v1316
        %1318 = vmatprep.subr.mxu0 0.0
        %v1319 = vand.u32 %v449, 4294901760
        %1320 = vmatpush1.xpose.msra.mxu0 %v1319
        %1321 = vmatprep.subr.mxu0 0.0
        %v1322 = vand.u32 %v446, 4294901760
        %1323 = vmatpush1.xpose.msra.mxu0 %v1322
        %1324 = vmatprep.subr.mxu0 0.0
        %v1325 = vand.u32 %v443, 4294901760
        %1326 = vmatpush1.xpose.msra.mxu0 %v1325
        %1327 = vmatprep.subr.mxu0 0.0
        %v1328 = vand.u32 %v440, 4294901760
        %1329 = vmatpush1.xpose.msra.mxu0 %v1328
        %1330 = vmatprep.subr.mxu0 0.0
        %v1331 = vand.u32 %v437, 4294901760
        %1332 = vmatpush1.xpose.msra.mxu0 %v1331
        %1333 = vmatprep.subr.mxu0 0.0
        %v1334 = vand.u32 %v434, 4294901760
        %1335 = vmatpush1.xpose.msra.mxu0 %v1334
        %1336 = vmatprep.subr.mxu0 0.0
        %v1337 = vand.u32 %v431, 4294901760
        %1338 = vmatpush1.xpose.msra.mxu0 %v1337
        %1339 = vmatprep.subr.mxu0 0.0
        %1340 = vmatpush2.xpose.msra.mxu0 0.0
        %1341 = vmatprep.subr.mxu0 0.0
        %1342 = vmatpush2.xpose.msra.mxu0 0.0
        %1343 = vmatprep.subr.mxu0 0.0
        %1344 = vmatpush2.xpose.msra.mxu0 0.0
        %1345 = vmatprep.subr.mxu0 0.0
        %1346 = vmatpush2.xpose.msra.mxu0 0.0
        %1347 = vmatprep.subr.mxu0 0.0
        %1348 = vmatpush2.xpose.msra.mxu0 0.0
        %1349 = vmatprep.subr.mxu0 0.0
        %1350 = vmatpush2.xpose.msra.mxu0 0.0
        %1351 = vmatprep.subr.mxu0 0.0
        %1352 = vmatpush2.xpose.msra.mxu0 0.0
        %1353 = vmatprep.subr.mxu0 0.0
        %1354 = vmatpush2.xpose.msra.mxu0 0.0
        %1355 = vmatprep.subr.mxu0 0.0
        %1356 = vmatpush2.xpose.msra.mxu0 0.0
        %1357 = vmatprep.subr.mxu0 0.0
        %1358 = vmatpush2.xpose.msra.mxu0 0.0
        %1359 = vmatprep.subr.mxu0 0.0
        %1360 = vmatpush2.xpose.msra.mxu0 0.0
        %1361 = vmatprep.subr.mxu0 0.0
        %1362 = vmatpush2.xpose.msra.mxu0 0.0
        %1363 = vmatprep.subr.mxu0 0.0
        %1364 = vmatpush2.xpose.msra.mxu0 0.0
        %1365 = vmatprep.subr.mxu0 0.0
        %1366 = vmatpush2.xpose.msra.mxu0 0.0
        %1367 = vmatprep.subr.mxu0 0.0
        %1368 = vmatpush2.xpose.msra.mxu0 0.0
        %1369 = vmatprep.subr.mxu0 0.0
        %1370 = vmatpush2.xpose.msra.mxu0 0.0
        %1371 = vmatprep.mubr.f32.mxu0 0.0
        %v1372 = vand.u32 %v407, 4294901760
        %1373 = vmatmul.mubr.f32.gmra.mxu0 %v1372
        %v1374 = vpop.f32.mrf.mxu0
        %v1375 = vadd.f32 %v1246, %v1374
        %v1376 = vpop.f32.mrf.mxu0
        %1377 = vmatprep.mubr.f32.mxu0 0.0
        %v1378 = vand.u32 %v410, 4294901760
        %1379 = vmatmul.mubr.f32.gmra.mxu0 %v1378
        %v1380 = vpop.f32.mrf.mxu0
        %v1381 = vadd.f32 %v1252, %v1380
        %v1382 = vpop.f32.mrf.mxu0
        %1383 = vmatprep.mubr.f32.mxu0 0.0
        %v1384 = vand.u32 %v413, 4294901760
        %1385 = vmatmul.mubr.f32.gmra.mxu0 %v1384
        %v1386 = vpop.f32.mrf.mxu0
        %v1387 = vadd.f32 %v1258, %v1386
        %v1388 = vpop.f32.mrf.mxu0
        %1389 = vmatprep.mubr.f32.mxu0 0.0
        %v1390 = vand.u32 %v416, 4294901760
        %1391 = vmatmul.mubr.f32.gmra.mxu0 %v1390
        %v1392 = vpop.f32.mrf.mxu0
        %v1393 = vadd.f32 %v1264, %v1392
        %v1394 = vpop.f32.mrf.mxu0
        %1395 = vmatprep.mubr.f32.mxu0 0.0
        %v1396 = vand.u32 %v419, 4294901760
        %1397 = vmatmul.mubr.f32.gmra.mxu0 %v1396
        %v1398 = vpop.f32.mrf.mxu0
        %v1399 = vadd.f32 %v1270, %v1398
        %v1400 = vpop.f32.mrf.mxu0
        %1401 = vmatprep.mubr.f32.mxu0 0.0
        %v1402 = vand.u32 %v422, 4294901760
        %1403 = vmatmul.mubr.f32.gmra.mxu0 %v1402
        %v1404 = vpop.f32.mrf.mxu0
        %v1405 = vadd.f32 %v1276, %v1404
        %v1406 = vpop.f32.mrf.mxu0
        %1407 = vmatprep.mubr.f32.mxu0 0.0
        %v1408 = vand.u32 %v425, 4294901760
        %1409 = vmatmul.mubr.f32.gmra.mxu0 %v1408
        %v1410 = vpop.f32.mrf.mxu0
        %v1411 = vadd.f32 %v1282, %v1410
        %v1412 = vpop.f32.mrf.mxu0
        %1413 = vmatprep.mubr.f32.mxu0 0.0
        %v1414 = vand.u32 %v428, 4294901760
        %1415 = vmatmul.mubr.f32.gmra.mxu0 %v1414
        %v1416 = vpop.f32.mrf.mxu0
        %v1417 = vadd.f32 %v1288, %v1416
        %v1418 = vpop.f32.mrf.mxu0
        %1419 = vdwg.mxu0
        %v1420 = vmax.f32 %v1375, 0.0
        %v1421 = vmax.f32 %v1381, 0.0
        %v1422 = vmax.f32 %v1387, 0.0
        %v1423 = vmax.f32 %v1393, 0.0
        %v1424 = vmax.f32 %v1399, 0.0
        %v1425 = vmax.f32 %v1405, 0.0
        %v1426 = vmax.f32 %v1411, 0.0
        %v1427 = vmax.f32 %v1417, 0.0
        %v1428 = vld [vmem:[%s3] sm:$0xff]
        %v1429 = vld [vmem:[%s3 + $0x8] sm:$0xff]
        %v1430 = vld [vmem:[%s3 + $0x10] sm:$0xff]
        %v1431 = vld [vmem:[%s3 + $0x18] sm:$0xff]
        %v1432 = vld [vmem:[%s3 + $0x20] sm:$0xff]
        %v1433 = vld [vmem:[%s3 + $0x28] sm:$0xff]
        %v1434 = vld [vmem:[%s3 + $0x30] sm:$0xff]
        %v1435 = vld [vmem:[%s3 + $0x38] sm:$0xff]
        %v1436 = vld [vmem:[%s4] sm:$0xff]
        %v1437 = vld [vmem:[%s4 + $0x8] sm:$0xff]
        %v1438 = vld [vmem:[%s4 + $0x10] sm:$0xff]
        %v1439 = vld [vmem:[%s4 + $0x18] sm:$0xff]
        %v1440 = vld [vmem:[%s4 + $0x20] sm:$0xff]
        %v1441 = vld [vmem:[%s4 + $0x28] sm:$0xff]
        %v1442 = vld [vmem:[%s4 + $0x30] sm:$0xff]
        %v1443 = vld [vmem:[%s4 + $0x38] sm:$0xff]
        %1445 = vset.pattern.permute.xlu0 0
        %1446 = vperm.xlu0 %1445, %v1436
        %v1447 = vpop.permute.xlu0 %1446
        %1450 = vset.pattern.permute.xlu0 0
        %1451 = vperm.xlu0 %1450, %v1437
        %v1452 = vpop.permute.xlu0 %1451
        %1455 = vset.pattern.permute.xlu0 0
        %1456 = vperm.xlu0 %1455, %v1438
        %v1457 = vpop.permute.xlu0 %1456
        %1460 = vset.pattern.permute.xlu0 0
        %1461 = vperm.xlu0 %1460, %v1439
        %v1462 = vpop.permute.xlu0 %1461
        %1465 = vset.pattern.permute.xlu0 0
        %1466 = vperm.xlu0 %1465, %v1440
        %v1467 = vpop.permute.xlu0 %1466
        %1470 = vset.pattern.permute.xlu0 0
        %1471 = vperm.xlu0 %1470, %v1441
        %v1472 = vpop.permute.xlu0 %1471
        %1475 = vset.pattern.permute.xlu0 0
        %1476 = vperm.xlu0 %1475, %v1442
        %v1477 = vpop.permute.xlu0 %1476
        %1480 = vset.pattern.permute.xlu0 0
        %1481 = vperm.xlu0 %1480, %v1443
        %v1482 = vpop.permute.xlu0 %1481
        %vm1484 = vcmask 523264
        %v1486 = vsel %vm1484, %v1428, 0
        %v1489 = vsel %vm1484, %v1429, 0
        %v1492 = vsel %vm1484, %v1430, 0
        %v1495 = vsel %vm1484, %v1431, 0
        %v1498 = vsel %vm1484, %v1432, 0
        %v1501 = vsel %vm1484, %v1433, 0
        %v1504 = vsel %vm1484, %v1434, 0
        %v1507 = vsel %vm1484, %v1435, 0
        %1509 = vmatprep.subr.mxu0 0.0
        %1510 = vmatpush1.msra.mxu0 0.0
        %1511 = vmatprep.subr.mxu0 0.0
        %1512 = vmatpush1.msra.mxu0 0.0
        %1513 = vmatprep.subr.mxu0 0.0
        %1514 = vmatpush1.msra.mxu0 0.0
        %1515 = vmatprep.subr.mxu0 0.0
        %1516 = vmatpush1.msra.mxu0 0.0
        %1517 = vmatprep.subr.mxu0 0.0
        %1518 = vmatpush1.msra.mxu0 0.0
        %1519 = vmatprep.subr.mxu0 0.0
        %1520 = vmatpush1.msra.mxu0 0.0
        %1521 = vmatprep.subr.mxu0 0.0
        %1522 = vmatpush1.msra.mxu0 0.0
        %1523 = vmatprep.subr.mxu0 0.0
        %1524 = vmatpush1.msra.mxu0 0.0
        %1525 = vmatprep.subr.mxu0 0.0
        %v1526 = vand.u32 %v1427, 4294901760
        %1527 = vmatpush1.msra.mxu0 %v1526
        %1528 = vmatprep.subr.mxu0 0.0
        %v1529 = vand.u32 %v1426, 4294901760
        %1530 = vmatpush1.msra.mxu0 %v1529
        %1531 = vmatprep.subr.mxu0 0.0
        %v1532 = vand.u32 %v1425, 4294901760
        %1533 = vmatpush1.msra.mxu0 %v1532
        %1534 = vmatprep.subr.mxu0 0.0
        %v1535 = vand.u32 %v1424, 4294901760
        %1536 = vmatpush1.msra.mxu0 %v1535
        %1537 = vmatprep.subr.mxu0 0.0
        %v1538 = vand.u32 %v1423, 4294901760
        %1539 = vmatpush1.msra.mxu0 %v1538
        %1540 = vmatprep.subr.mxu0 0.0
        %v1541 = vand.u32 %v1422, 4294901760
        %1542 = vmatpush1.msra.mxu0 %v1541
        %1543 = vmatprep.subr.mxu0 0.0
        %v1544 = vand.u32 %v1421, 4294901760
        %1545 = vmatpush1.msra.mxu0 %v1544
        %1546 = vmatprep.subr.mxu0 0.0
        %v1547 = vand.u32 %v1420, 4294901760
        %1548 = vmatpush1.msra.mxu0 %v1547
        %1549 = vmatprep.subr.mxu0 0.0
        %1550 = vmatpush2.msra.mxu0 0.0
        %1551 = vmatprep.subr.mxu0 0.0
        %1552 = vmatpush2.msra.mxu0 0.0
        %1553 = vmatprep.subr.mxu0 0.0
        %1554 = vmatpush2.msra.mxu0 0.0
        %1555 = vmatprep.subr.mxu0 0.0
        %1556 = vmatpush2.msra.mxu0 0.0
        %1557 = vmatprep.subr.mxu0 0.0
        %1558 = vmatpush2.msra.mxu0 0.0
        %1559 = vmatprep.subr.mxu0 0.0
        %1560 = vmatpush2.msra.mxu0 0.0
        %1561 = vmatprep.subr.mxu0 0.0
        %1562 = vmatpush2.msra.mxu0 0.0
        %1563 = vmatprep.subr.mxu0 0.0
        %1564 = vmatpush2.msra.mxu0 0.0
        %1565 = vmatprep.subr.mxu0 0.0
        %1566 = vmatpush2.msra.mxu0 0.0
        %1567 = vmatprep.subr.mxu0 0.0
        %1568 = vmatpush2.msra.mxu0 0.0
        %1569 = vmatprep.subr.mxu0 0.0
        %1570 = vmatpush2.msra.mxu0 0.0
        %1571 = vmatprep.subr.mxu0 0.0
        %1572 = vmatpush2.msra.mxu0 0.0
        %1573 = vmatprep.subr.mxu0 0.0
        %1574 = vmatpush2.msra.mxu0 0.0
        %1575 = vmatprep.subr.mxu0 0.0
        %1576 = vmatpush2.msra.mxu0 0.0
        %1577 = vmatprep.subr.mxu0 0.0
        %1578 = vmatpush2.msra.mxu0 0.0
        %1579 = vmatprep.subr.mxu0 0.0
        %1580 = vmatpush2.msra.mxu0 0.0
        %1581 = vmatprep.mubr.f32.mxu0 0.0
        %v1582 = vand.u32 %v1486, 4294901760
        %v1583 = vsub.f32 %v1486, %v1582
        %v1584 = vand.u32 %v1583, 4294901760
        %v1585 = vsub.f32 %v1583, %v1584
        %v1586 = vand.u32 %v1585, 4294901760
        %1587 = vmatmul.mubr.f32.gmra.mxu0 %v1586
        %v1588 = vpop.f32.mrf.mxu0
        %v1589 = vadd.f32 %v1447, %v1588
        %v1590 = vpop.f32.mrf.mxu0
        %1591 = vmatprep.mubr.f32.mxu0 0.0
        %v1592 = vand.u32 %v1489, 4294901760
        %v1593 = vsub.f32 %v1489, %v1592
        %v1594 = vand.u32 %v1593, 4294901760
        %v1595 = vsub.f32 %v1593, %v1594
        %v1596 = vand.u32 %v1595, 4294901760
        %1597 = vmatmul.mubr.f32.gmra.mxu0 %v1596
        %v1598 = vpop.f32.mrf.mxu0
        %v1599 = vadd.f32 %v1452, %v1598
        %v1600 = vpop.f32.mrf.mxu0
        %1601 = vmatprep.mubr.f32.mxu0 0.0
        %v1602 = vand.u32 %v1492, 4294901760
        %v1603 = vsub.f32 %v1492, %v1602
        %v1604 = vand.u32 %v1603, 4294901760
        %v1605 = vsub.f32 %v1603, %v1604
        %v1606 = vand.u32 %v1605, 4294901760
        %1607 = vmatmul.mubr.f32.gmra.mxu0 %v1606
        %v1608 = vpop.f32.mrf.mxu0
        %v1609 = vadd.f32 %v1457, %v1608
        %v1610 = vpop.f32.mrf.mxu0
        %1611 = vmatprep.mubr.f32.mxu0 0.0
        %v1612 = vand.u32 %v1495, 4294901760
        %v1613 = vsub.f32 %v1495, %v1612
        %v1614 = vand.u32 %v1613, 4294901760
        %v1615 = vsub.f32 %v1613, %v1614
        %v1616 = vand.u32 %v1615, 4294901760
        %1617 = vmatmul.mubr.f32.gmra.mxu0 %v1616
        %v1618 = vpop.f32.mrf.mxu0
        %v1619 = vadd.f32 %v1462, %v1618
        %v1620 = vpop.f32.mrf.mxu0
        %1621 = vmatprep.mubr.f32.mxu0 0.0
        %v1622 = vand.u32 %v1498, 4294901760
        %v1623 = vsub.f32 %v1498, %v1622
        %v1624 = vand.u32 %v1623, 4294901760
        %v1625 = vsub.f32 %v1623, %v1624
        %v1626 = vand.u32 %v1625, 4294901760
        %1627 = vmatmul.mubr.f32.gmra.mxu0 %v1626
        %v1628 = vpop.f32.mrf.mxu0
        %v1629 = vadd.f32 %v1467, %v1628
        %v1630 = vpop.f32.mrf.mxu0
        %1631 = vmatprep.mubr.f32.mxu0 0.0
        %v1632 = vand.u32 %v1501, 4294901760
        %v1633 = vsub.f32 %v1501, %v1632
        %v1634 = vand.u32 %v1633, 4294901760
        %v1635 = vsub.f32 %v1633, %v1634
        %v1636 = vand.u32 %v1635, 4294901760
        %1637 = vmatmul.mubr.f32.gmra.mxu0 %v1636
        %v1638 = vpop.f32.mrf.mxu0
        %v1639 = vadd.f32 %v1472, %v1638
        %v1640 = vpop.f32.mrf.mxu0
        %1641 = vmatprep.mubr.f32.mxu0 0.0
        %v1642 = vand.u32 %v1504, 4294901760
        %v1643 = vsub.f32 %v1504, %v1642
        %v1644 = vand.u32 %v1643, 4294901760
        %v1645 = vsub.f32 %v1643, %v1644
        %v1646 = vand.u32 %v1645, 4294901760
        %1647 = vmatmul.mubr.f32.gmra.mxu0 %v1646
        %v1648 = vpop.f32.mrf.mxu0
        %v1649 = vadd.f32 %v1477, %v1648
        %v1650 = vpop.f32.mrf.mxu0
        %1651 = vmatprep.mubr.f32.mxu0 0.0
        %v1652 = vand.u32 %v1507, 4294901760
        %v1653 = vsub.f32 %v1507, %v1652
        %v1654 = vand.u32 %v1653, 4294901760
        %v1655 = vsub.f32 %v1653, %v1654
        %v1656 = vand.u32 %v1655, 4294901760
        %1657 = vmatmul.mubr.f32.gmra.mxu0 %v1656
        %v1658 = vpop.f32.mrf.mxu0
        %v1659 = vadd.f32 %v1482, %v1658
        %v1660 = vpop.f32.mrf.mxu0
        %1661 = vdwg.mxu0
        %1662 = vmatprep.subr.mxu0 0.0
        %1663 = vmatpush1.msra.mxu0 0.0
        %1664 = vmatprep.subr.mxu0 0.0
        %1665 = vmatpush1.msra.mxu0 0.0
        %1666 = vmatprep.subr.mxu0 0.0
        %1667 = vmatpush1.msra.mxu0 0.0
        %1668 = vmatprep.subr.mxu0 0.0
        %1669 = vmatpush1.msra.mxu0 0.0
        %1670 = vmatprep.subr.mxu0 0.0
        %1671 = vmatpush1.msra.mxu0 0.0
        %1672 = vmatprep.subr.mxu0 0.0
        %1673 = vmatpush1.msra.mxu0 0.0
        %1674 = vmatprep.subr.mxu0 0.0
        %1675 = vmatpush1.msra.mxu0 0.0
        %1676 = vmatprep.subr.mxu0 0.0
        %1677 = vmatpush1.msra.mxu0 0.0
        %1678 = vmatprep.subr.mxu0 0.0
        %v1679 = vand.u32 %v1427, 4294901760
        %v1680 = vsub.f32 %v1427, %v1679
        %v1681 = vand.u32 %v1680, 4294901760
        %v1682 = vsub.f32 %v1680, %v1681
        %v1683 = vand.u32 %v1682, 4294901760
        %1684 = vmatpush1.msra.mxu0 %v1683
        %1685 = vmatprep.subr.mxu0 0.0
        %v1686 = vand.u32 %v1426, 4294901760
        %v1687 = vsub.f32 %v1426, %v1686
        %v1688 = vand.u32 %v1687, 4294901760
        %v1689 = vsub.f32 %v1687, %v1688
        %v1690 = vand.u32 %v1689, 4294901760
        %1691 = vmatpush1.msra.mxu0 %v1690
        %1692 = vmatprep.subr.mxu0 0.0
        %v1693 = vand.u32 %v1425, 4294901760
        %v1694 = vsub.f32 %v1425, %v1693
        %v1695 = vand.u32 %v1694, 4294901760
        %v1696 = vsub.f32 %v1694, %v1695
        %v1697 = vand.u32 %v1696, 4294901760
        %1698 = vmatpush1.msra.mxu0 %v1697
        %1699 = vmatprep.subr.mxu0 0.0
        %v1700 = vand.u32 %v1424, 4294901760
        %v1701 = vsub.f32 %v1424, %v1700
        %v1702 = vand.u32 %v1701, 4294901760
        %v1703 = vsub.f32 %v1701, %v1702
        %v1704 = vand.u32 %v1703, 4294901760
        %1705 = vmatpush1.msra.mxu0 %v1704
        %1706 = vmatprep.subr.mxu0 0.0
        %v1707 = vand.u32 %v1423, 4294901760
        %v1708 = vsub.f32 %v1423, %v1707
        %v1709 = vand.u32 %v1708, 4294901760
        %v1710 = vsub.f32 %v1708, %v1709
        %v1711 = vand.u32 %v1710, 4294901760
        %1712 = vmatpush1.msra.mxu0 %v1711
        %1713 = vmatprep.subr.mxu0 0.0
        %v1714 = vand.u32 %v1422, 4294901760
        %v1715 = vsub.f32 %v1422, %v1714
        %v1716 = vand.u32 %v1715, 4294901760
        %v1717 = vsub.f32 %v1715, %v1716
        %v1718 = vand.u32 %v1717, 4294901760
        %1719 = vmatpush1.msra.mxu0 %v1718
        %1720 = vmatprep.subr.mxu0 0.0
        %v1721 = vand.u32 %v1421, 4294901760
        %v1722 = vsub.f32 %v1421, %v1721
        %v1723 = vand.u32 %v1722, 4294901760
        %v1724 = vsub.f32 %v1722, %v1723
        %v1725 = vand.u32 %v1724, 4294901760
        %1726 = vmatpush1.msra.mxu0 %v1725
        %1727 = vmatprep.subr.mxu0 0.0
        %v1728 = vand.u32 %v1420, 4294901760
        %v1729 = vsub.f32 %v1420, %v1728
        %v1730 = vand.u32 %v1729, 4294901760
        %v1731 = vsub.f32 %v1729, %v1730
        %v1732 = vand.u32 %v1731, 4294901760
        %1733 = vmatpush1.msra.mxu0 %v1732
        %1734 = vmatprep.subr.mxu0 0.0
        %1735 = vmatpush2.msra.mxu0 0.0
        %1736 = vmatprep.subr.mxu0 0.0
        %1737 = vmatpush2.msra.mxu0 0.0
        %1738 = vmatprep.subr.mxu0 0.0
        %1739 = vmatpush2.msra.mxu0 0.0
        %1740 = vmatprep.subr.mxu0 0.0
        %1741 = vmatpush2.msra.mxu0 0.0
        %1742 = vmatprep.subr.mxu0 0.0
        %1743 = vmatpush2.msra.mxu0 0.0
        %1744 = vmatprep.subr.mxu0 0.0
        %1745 = vmatpush2.msra.mxu0 0.0
        %1746 = vmatprep.subr.mxu0 0.0
        %1747 = vmatpush2.msra.mxu0 0.0
        %1748 = vmatprep.subr.mxu0 0.0
        %1749 = vmatpush2.msra.mxu0 0.0
        %1750 = vmatprep.subr.mxu0 0.0
        %1751 = vmatpush2.msra.mxu0 0.0
        %1752 = vmatprep.subr.mxu0 0.0
        %1753 = vmatpush2.msra.mxu0 0.0
        %1754 = vmatprep.subr.mxu0 0.0
        %1755 = vmatpush2.msra.mxu0 0.0
        %1756 = vmatprep.subr.mxu0 0.0
        %1757 = vmatpush2.msra.mxu0 0.0
        %1758 = vmatprep.subr.mxu0 0.0
        %1759 = vmatpush2.msra.mxu0 0.0
        %1760 = vmatprep.subr.mxu0 0.0
        %1761 = vmatpush2.msra.mxu0 0.0
        %1762 = vmatprep.subr.mxu0 0.0
        %1763 = vmatpush2.msra.mxu0 0.0
        %1764 = vmatprep.subr.mxu0 0.0
        %1765 = vmatpush2.msra.mxu0 0.0
        %1766 = vmatprep.mubr.f32.mxu0 0.0
        %v1767 = vand.u32 %v1486, 4294901760
        %1768 = vmatmul.mubr.f32.gmra.mxu0 %v1767
        %v1769 = vpop.f32.mrf.mxu0
        %v1770 = vadd.f32 %v1589, %v1769
        %v1771 = vpop.f32.mrf.mxu0
        %1772 = vmatprep.mubr.f32.mxu0 0.0
        %v1773 = vand.u32 %v1489, 4294901760
        %1774 = vmatmul.mubr.f32.gmra.mxu0 %v1773
        %v1775 = vpop.f32.mrf.mxu0
        %v1776 = vadd.f32 %v1599, %v1775
        %v1777 = vpop.f32.mrf.mxu0
        %1778 = vmatprep.mubr.f32.mxu0 0.0
        %v1779 = vand.u32 %v1492, 4294901760
        %1780 = vmatmul.mubr.f32.gmra.mxu0 %v1779
        %v1781 = vpop.f32.mrf.mxu0
        %v1782 = vadd.f32 %v1609, %v1781
        %v1783 = vpop.f32.mrf.mxu0
        %1784 = vmatprep.mubr.f32.mxu0 0.0
        %v1785 = vand.u32 %v1495, 4294901760
        %1786 = vmatmul.mubr.f32.gmra.mxu0 %v1785
        %v1787 = vpop.f32.mrf.mxu0
        %v1788 = vadd.f32 %v1619, %v1787
        %v1789 = vpop.f32.mrf.mxu0
        %1790 = vmatprep.mubr.f32.mxu0 0.0
        %v1791 = vand.u32 %v1498, 4294901760
        %1792 = vmatmul.mubr.f32.gmra.mxu0 %v1791
        %v1793 = vpop.f32.mrf.mxu0
        %v1794 = vadd.f32 %v1629, %v1793
        %v1795 = vpop.f32.mrf.mxu0
        %1796 = vmatprep.mubr.f32.mxu0 0.0
        %v1797 = vand.u32 %v1501, 4294901760
        %1798 = vmatmul.mubr.f32.gmra.mxu0 %v1797
        %v1799 = vpop.f32.mrf.mxu0
        %v1800 = vadd.f32 %v1639, %v1799
        %v1801 = vpop.f32.mrf.mxu0
        %1802 = vmatprep.mubr.f32.mxu0 0.0
        %v1803 = vand.u32 %v1504, 4294901760
        %1804 = vmatmul.mubr.f32.gmra.mxu0 %v1803
        %v1805 = vpop.f32.mrf.mxu0
        %v1806 = vadd.f32 %v1649, %v1805
        %v1807 = vpop.f32.mrf.mxu0
        %1808 = vmatprep.mubr.f32.mxu0 0.0
        %v1809 = vand.u32 %v1507, 4294901760
        %1810 = vmatmul.mubr.f32.gmra.mxu0 %v1809
        %v1811 = vpop.f32.mrf.mxu0
        %v1812 = vadd.f32 %v1659, %v1811
        %v1813 = vpop.f32.mrf.mxu0
        %1814 = vdwg.mxu0
        %1815 = vmatprep.subr.mxu0 0.0
        %1816 = vmatpush1.msra.mxu0 0.0
        %1817 = vmatprep.subr.mxu0 0.0
        %1818 = vmatpush1.msra.mxu0 0.0
        %1819 = vmatprep.subr.mxu0 0.0
        %1820 = vmatpush1.msra.mxu0 0.0
        %1821 = vmatprep.subr.mxu0 0.0
        %1822 = vmatpush1.msra.mxu0 0.0
        %1823 = vmatprep.subr.mxu0 0.0
        %1824 = vmatpush1.msra.mxu0 0.0
        %1825 = vmatprep.subr.mxu0 0.0
        %1826 = vmatpush1.msra.mxu0 0.0
        %1827 = vmatprep.subr.mxu0 0.0
        %1828 = vmatpush1.msra.mxu0 0.0
        %1829 = vmatprep.subr.mxu0 0.0
        %1830 = vmatpush1.msra.mxu0 0.0
        %1831 = vmatprep.subr.mxu0 0.0
        %v1832 = vand.u32 %v1427, 4294901760
        %v1833 = vsub.f32 %v1427, %v1832
        %1834 = vmatpush1.msra.mxu0 %v1833
        %1835 = vmatprep.subr.mxu0 0.0
        %v1836 = vand.u32 %v1426, 4294901760
        %v1837 = vsub.f32 %v1426, %v1836
        %1838 = vmatpush1.msra.mxu0 %v1837
        %1839 = vmatprep.subr.mxu0 0.0
        %v1840 = vand.u32 %v1425, 4294901760
        %v1841 = vsub.f32 %v1425, %v1840
        %1842 = vmatpush1.msra.mxu0 %v1841
        %1843 = vmatprep.subr.mxu0 0.0
        %v1844 = vand.u32 %v1424, 4294901760
        %v1845 = vsub.f32 %v1424, %v1844
        %1846 = vmatpush1.msra.mxu0 %v1845
        %1847 = vmatprep.subr.mxu0 0.0
        %v1848 = vand.u32 %v1423, 4294901760
        %v1849 = vsub.f32 %v1423, %v1848
        %1850 = vmatpush1.msra.mxu0 %v1849
        %1851 = vmatprep.subr.mxu0 0.0
        %v1852 = vand.u32 %v1422, 4294901760
        %v1853 = vsub.f32 %v1422, %v1852
        %1854 = vmatpush1.msra.mxu0 %v1853
        %1855 = vmatprep.subr.mxu0 0.0
        %v1856 = vand.u32 %v1421, 4294901760
        %v1857 = vsub.f32 %v1421, %v1856
        %1858 = vmatpush1.msra.mxu0 %v1857
        %1859 = vmatprep.subr.mxu0 0.0
        %v1860 = vand.u32 %v1420, 4294901760
        %v1861 = vsub.f32 %v1420, %v1860
        %1862 = vmatpush1.msra.mxu0 %v1861
        %1863 = vmatprep.subr.mxu0 0.0
        %1864 = vmatpush2.msra.mxu0 0.0
        %1865 = vmatprep.subr.mxu0 0.0
        %1866 = vmatpush2.msra.mxu0 0.0
        %1867 = vmatprep.subr.mxu0 0.0
        %1868 = vmatpush2.msra.mxu0 0.0
        %1869 = vmatprep.subr.mxu0 0.0
        %1870 = vmatpush2.msra.mxu0 0.0
        %1871 = vmatprep.subr.mxu0 0.0
        %1872 = vmatpush2.msra.mxu0 0.0
        %1873 = vmatprep.subr.mxu0 0.0
        %1874 = vmatpush2.msra.mxu0 0.0
        %1875 = vmatprep.subr.mxu0 0.0
        %1876 = vmatpush2.msra.mxu0 0.0
        %1877 = vmatprep.subr.mxu0 0.0
        %1878 = vmatpush2.msra.mxu0 0.0
        %1879 = vmatprep.subr.mxu0 0.0
        %1880 = vmatpush2.msra.mxu0 0.0
        %1881 = vmatprep.subr.mxu0 0.0
        %1882 = vmatpush2.msra.mxu0 0.0
        %1883 = vmatprep.subr.mxu0 0.0
        %1884 = vmatpush2.msra.mxu0 0.0
        %1885 = vmatprep.subr.mxu0 0.0
        %1886 = vmatpush2.msra.mxu0 0.0
        %1887 = vmatprep.subr.mxu0 0.0
        %1888 = vmatpush2.msra.mxu0 0.0
        %1889 = vmatprep.subr.mxu0 0.0
        %1890 = vmatpush2.msra.mxu0 0.0
        %1891 = vmatprep.subr.mxu0 0.0
        %1892 = vmatpush2.msra.mxu0 0.0
        %1893 = vmatprep.subr.mxu0 0.0
        %1894 = vmatpush2.msra.mxu0 0.0
        %1895 = vmatprep.mubr.f32.mxu0 0.0
        %v1896 = vand.u32 %v1486, 4294901760
        %v1897 = vsub.f32 %v1486, %v1896
        %1898 = vmatmul.mubr.f32.gmra.mxu0 %v1897
        %v1899 = vpop.f32.mrf.mxu0
        %v1900 = vadd.f32 %v1770, %v1899
        %v1901 = vpop.f32.mrf.mxu0
        %1902 = vmatprep.mubr.f32.mxu0 0.0
        %v1903 = vand.u32 %v1489, 4294901760
        %v1904 = vsub.f32 %v1489, %v1903
        %1905 = vmatmul.mubr.f32.gmra.mxu0 %v1904
        %v1906 = vpop.f32.mrf.mxu0
        %v1907 = vadd.f32 %v1776, %v1906
        %v1908 = vpop.f32.mrf.mxu0
        %1909 = vmatprep.mubr.f32.mxu0 0.0
        %v1910 = vand.u32 %v1492, 4294901760
        %v1911 = vsub.f32 %v1492, %v1910
        %1912 = vmatmul.mubr.f32.gmra.mxu0 %v1911
        %v1913 = vpop.f32.mrf.mxu0
        %v1914 = vadd.f32 %v1782, %v1913
        %v1915 = vpop.f32.mrf.mxu0
        %1916 = vmatprep.mubr.f32.mxu0 0.0
        %v1917 = vand.u32 %v1495, 4294901760
        %v1918 = vsub.f32 %v1495, %v1917
        %1919 = vmatmul.mubr.f32.gmra.mxu0 %v1918
        %v1920 = vpop.f32.mrf.mxu0
        %v1921 = vadd.f32 %v1788, %v1920
        %v1922 = vpop.f32.mrf.mxu0
        %1923 = vmatprep.mubr.f32.mxu0 0.0
        %v1924 = vand.u32 %v1498, 4294901760
        %v1925 = vsub.f32 %v1498, %v1924
        %1926 = vmatmul.mubr.f32.gmra.mxu0 %v1925
        %v1927 = vpop.f32.mrf.mxu0
        %v1928 = vadd.f32 %v1794, %v1927
        %v1929 = vpop.f32.mrf.mxu0
        %1930 = vmatprep.mubr.f32.mxu0 0.0
        %v1931 = vand.u32 %v1501, 4294901760
        %v1932 = vsub.f32 %v1501, %v1931
        %1933 = vmatmul.mubr.f32.gmra.mxu0 %v1932
        %v1934 = vpop.f32.mrf.mxu0
        %v1935 = vadd.f32 %v1800, %v1934
        %v1936 = vpop.f32.mrf.mxu0
        %1937 = vmatprep.mubr.f32.mxu0 0.0
        %v1938 = vand.u32 %v1504, 4294901760
        %v1939 = vsub.f32 %v1504, %v1938
        %1940 = vmatmul.mubr.f32.gmra.mxu0 %v1939
        %v1941 = vpop.f32.mrf.mxu0
        %v1942 = vadd.f32 %v1806, %v1941
        %v1943 = vpop.f32.mrf.mxu0
        %1944 = vmatprep.mubr.f32.mxu0 0.0
        %v1945 = vand.u32 %v1507, 4294901760
        %v1946 = vsub.f32 %v1507, %v1945
        %1947 = vmatmul.mubr.f32.gmra.mxu0 %v1946
        %v1948 = vpop.f32.mrf.mxu0
        %v1949 = vadd.f32 %v1812, %v1948
        %v1950 = vpop.f32.mrf.mxu0
        %1951 = vdwg.mxu0
        %1952 = vmatprep.subr.mxu0 0.0
        %1953 = vmatpush1.msra.mxu0 0.0
        %1954 = vmatprep.subr.mxu0 0.0
        %1955 = vmatpush1.msra.mxu0 0.0
        %1956 = vmatprep.subr.mxu0 0.0
        %1957 = vmatpush1.msra.mxu0 0.0
        %1958 = vmatprep.subr.mxu0 0.0
        %1959 = vmatpush1.msra.mxu0 0.0
        %1960 = vmatprep.subr.mxu0 0.0
        %1961 = vmatpush1.msra.mxu0 0.0
        %1962 = vmatprep.subr.mxu0 0.0
        %1963 = vmatpush1.msra.mxu0 0.0
        %1964 = vmatprep.subr.mxu0 0.0
        %1965 = vmatpush1.msra.mxu0 0.0
        %1966 = vmatprep.subr.mxu0 0.0
        %1967 = vmatpush1.msra.mxu0 0.0
        %1968 = vmatprep.subr.mxu0 0.0
        %v1969 = vand.u32 %v1427, 4294901760
        %1970 = vmatpush1.msra.mxu0 %v1969
        %1971 = vmatprep.subr.mxu0 0.0
        %v1972 = vand.u32 %v1426, 4294901760
        %1973 = vmatpush1.msra.mxu0 %v1972
        %1974 = vmatprep.subr.mxu0 0.0
        %v1975 = vand.u32 %v1425, 4294901760
        %1976 = vmatpush1.msra.mxu0 %v1975
        %1977 = vmatprep.subr.mxu0 0.0
        %v1978 = vand.u32 %v1424, 4294901760
        %1979 = vmatpush1.msra.mxu0 %v1978
        %1980 = vmatprep.subr.mxu0 0.0
        %v1981 = vand.u32 %v1423, 4294901760
        %1982 = vmatpush1.msra.mxu0 %v1981
        %1983 = vmatprep.subr.mxu0 0.0
        %v1984 = vand.u32 %v1422, 4294901760
        %1985 = vmatpush1.msra.mxu0 %v1984
        %1986 = vmatprep.subr.mxu0 0.0
        %v1987 = vand.u32 %v1421, 4294901760
        %1988 = vmatpush1.msra.mxu0 %v1987
        %1989 = vmatprep.subr.mxu0 0.0
        %v1990 = vand.u32 %v1420, 4294901760
        %1991 = vmatpush1.msra.mxu0 %v1990
        %1992 = vmatprep.subr.mxu0 0.0
        %1993 = vmatpush2.msra.mxu0 0.0
        %1994 = vmatprep.subr.mxu0 0.0
        %1995 = vmatpush2.msra.mxu0 0.0
        %1996 = vmatprep.subr.mxu0 0.0
        %1997 = vmatpush2.msra.mxu0 0.0
        %1998 = vmatprep.subr.mxu0 0.0
        %1999 = vmatpush2.msra.mxu0 0.0
        %2000 = vmatprep.subr.mxu0 0.0
        %2001 = vmatpush2.msra.mxu0 0.0
        %2002 = vmatprep.subr.mxu0 0.0
        %2003 = vmatpush2.msra.mxu0 0.0
        %2004 = vmatprep.subr.mxu0 0.0
        %2005 = vmatpush2.msra.mxu0 0.0
        %2006 = vmatprep.subr.mxu0 0.0
        %2007 = vmatpush2.msra.mxu0 0.0
        %2008 = vmatprep.subr.mxu0 0.0
        %2009 = vmatpush2.msra.mxu0 0.0
        %2010 = vmatprep.subr.mxu0 0.0
        %2011 = vmatpush2.msra.mxu0 0.0
        %2012 = vmatprep.subr.mxu0 0.0
        %2013 = vmatpush2.msra.mxu0 0.0
        %2014 = vmatprep.subr.mxu0 0.0
        %2015 = vmatpush2.msra.mxu0 0.0
        %2016 = vmatprep.subr.mxu0 0.0
        %2017 = vmatpush2.msra.mxu0 0.0
        %2018 = vmatprep.subr.mxu0 0.0
        %2019 = vmatpush2.msra.mxu0 0.0
        %2020 = vmatprep.subr.mxu0 0.0
        %2021 = vmatpush2.msra.mxu0 0.0
        %2022 = vmatprep.subr.mxu0 0.0
        %2023 = vmatpush2.msra.mxu0 0.0
        %2024 = vmatprep.mubr.f32.mxu0 0.0
        %v2025 = vand.u32 %v1486, 4294901760
        %v2026 = vsub.f32 %v1486, %v2025
        %v2027 = vand.u32 %v2026, 4294901760
        %2028 = vmatmul.mubr.f32.gmra.mxu0 %v2027
        %v2029 = vpop.f32.mrf.mxu0
        %v2030 = vadd.f32 %v1900, %v2029
        %v2031 = vpop.f32.mrf.mxu0
        %2032 = vmatprep.mubr.f32.mxu0 0.0
        %v2033 = vand.u32 %v1489, 4294901760
        %v2034 = vsub.f32 %v1489, %v2033
        %v2035 = vand.u32 %v2034, 4294901760
        %2036 = vmatmul.mubr.f32.gmra.mxu0 %v2035
        %v2037 = vpop.f32.mrf.mxu0
        %v2038 = vadd.f32 %v1907, %v2037
        %v2039 = vpop.f32.mrf.mxu0
        %2040 = vmatprep.mubr.f32.mxu0 0.0
        %v2041 = vand.u32 %v1492, 4294901760
        %v2042 = vsub.f32 %v1492, %v2041
        %v2043 = vand.u32 %v2042, 4294901760
        %2044 = vmatmul.mubr.f32.gmra.mxu0 %v2043
        %v2045 = vpop.f32.mrf.mxu0
        %v2046 = vadd.f32 %v1914, %v2045
        %v2047 = vpop.f32.mrf.mxu0
        %2048 = vmatprep.mubr.f32.mxu0 0.0
        %v2049 = vand.u32 %v1495, 4294901760
        %v2050 = vsub.f32 %v1495, %v2049
        %v2051 = vand.u32 %v2050, 4294901760
        %2052 = vmatmul.mubr.f32.gmra.mxu0 %v2051
        %v2053 = vpop.f32.mrf.mxu0
        %v2054 = vadd.f32 %v1921, %v2053
        %v2055 = vpop.f32.mrf.mxu0
        %2056 = vmatprep.mubr.f32.mxu0 0.0
        %v2057 = vand.u32 %v1498, 4294901760
        %v2058 = vsub.f32 %v1498, %v2057
        %v2059 = vand.u32 %v2058, 4294901760
        %2060 = vmatmul.mubr.f32.gmra.mxu0 %v2059
        %v2061 = vpop.f32.mrf.mxu0
        %v2062 = vadd.f32 %v1928, %v2061
        %v2063 = vpop.f32.mrf.mxu0
        %2064 = vmatprep.mubr.f32.mxu0 0.0
        %v2065 = vand.u32 %v1501, 4294901760
        %v2066 = vsub.f32 %v1501, %v2065
        %v2067 = vand.u32 %v2066, 4294901760
        %2068 = vmatmul.mubr.f32.gmra.mxu0 %v2067
        %v2069 = vpop.f32.mrf.mxu0
        %v2070 = vadd.f32 %v1935, %v2069
        %v2071 = vpop.f32.mrf.mxu0
        %2072 = vmatprep.mubr.f32.mxu0 0.0
        %v2073 = vand.u32 %v1504, 4294901760
        %v2074 = vsub.f32 %v1504, %v2073
        %v2075 = vand.u32 %v2074, 4294901760
        %2076 = vmatmul.mubr.f32.gmra.mxu0 %v2075
        %v2077 = vpop.f32.mrf.mxu0
        %v2078 = vadd.f32 %v1942, %v2077
        %v2079 = vpop.f32.mrf.mxu0
        %2080 = vmatprep.mubr.f32.mxu0 0.0
        %v2081 = vand.u32 %v1507, 4294901760
        %v2082 = vsub.f32 %v1507, %v2081
        %v2083 = vand.u32 %v2082, 4294901760
        %2084 = vmatmul.mubr.f32.gmra.mxu0 %v2083
        %v2085 = vpop.f32.mrf.mxu0
        %v2086 = vadd.f32 %v1949, %v2085
        %v2087 = vpop.f32.mrf.mxu0
        %2088 = vdwg.mxu0
        %2089 = vmatprep.subr.mxu0 0.0
        %2090 = vmatpush1.msra.mxu0 0.0
        %2091 = vmatprep.subr.mxu0 0.0
        %2092 = vmatpush1.msra.mxu0 0.0
        %2093 = vmatprep.subr.mxu0 0.0
        %2094 = vmatpush1.msra.mxu0 0.0
        %2095 = vmatprep.subr.mxu0 0.0
        %2096 = vmatpush1.msra.mxu0 0.0
        %2097 = vmatprep.subr.mxu0 0.0
        %2098 = vmatpush1.msra.mxu0 0.0
        %2099 = vmatprep.subr.mxu0 0.0
        %2100 = vmatpush1.msra.mxu0 0.0
        %2101 = vmatprep.subr.mxu0 0.0
        %2102 = vmatpush1.msra.mxu0 0.0
        %2103 = vmatprep.subr.mxu0 0.0
        %2104 = vmatpush1.msra.mxu0 0.0
        %2105 = vmatprep.subr.mxu0 0.0
        %v2106 = vand.u32 %v1427, 4294901760
        %v2107 = vsub.f32 %v1427, %v2106
        %v2108 = vand.u32 %v2107, 4294901760
        %2109 = vmatpush1.msra.mxu0 %v2108
        %2110 = vmatprep.subr.mxu0 0.0
        %v2111 = vand.u32 %v1426, 4294901760
        %v2112 = vsub.f32 %v1426, %v2111
        %v2113 = vand.u32 %v2112, 4294901760
        %2114 = vmatpush1.msra.mxu0 %v2113
        %2115 = vmatprep.subr.mxu0 0.0
        %v2116 = vand.u32 %v1425, 4294901760
        %v2117 = vsub.f32 %v1425, %v2116
        %v2118 = vand.u32 %v2117, 4294901760
        %2119 = vmatpush1.msra.mxu0 %v2118
        %2120 = vmatprep.subr.mxu0 0.0
        %v2121 = vand.u32 %v1424, 4294901760
        %v2122 = vsub.f32 %v1424, %v2121
        %v2123 = vand.u32 %v2122, 4294901760
        %2124 = vmatpush1.msra.mxu0 %v2123
        %2125 = vmatprep.subr.mxu0 0.0
        %v2126 = vand.u32 %v1423, 4294901760
        %v2127 = vsub.f32 %v1423, %v2126
        %v2128 = vand.u32 %v2127, 4294901760
        %2129 = vmatpush1.msra.mxu0 %v2128
        %2130 = vmatprep.subr.mxu0 0.0
        %v2131 = vand.u32 %v1422, 4294901760
        %v2132 = vsub.f32 %v1422, %v2131
        %v2133 = vand.u32 %v2132, 4294901760
        %2134 = vmatpush1.msra.mxu0 %v2133
        %2135 = vmatprep.subr.mxu0 0.0
        %v2136 = vand.u32 %v1421, 4294901760
        %v2137 = vsub.f32 %v1421, %v2136
        %v2138 = vand.u32 %v2137, 4294901760
        %2139 = vmatpush1.msra.mxu0 %v2138
        %2140 = vmatprep.subr.mxu0 0.0
        %v2141 = vand.u32 %v1420, 4294901760
        %v2142 = vsub.f32 %v1420, %v2141
        %v2143 = vand.u32 %v2142, 4294901760
        %2144 = vmatpush1.msra.mxu0 %v2143
        %2145 = vmatprep.subr.mxu0 0.0
        %2146 = vmatpush2.msra.mxu0 0.0
        %2147 = vmatprep.subr.mxu0 0.0
        %2148 = vmatpush2.msra.mxu0 0.0
        %2149 = vmatprep.subr.mxu0 0.0
        %2150 = vmatpush2.msra.mxu0 0.0
        %2151 = vmatprep.subr.mxu0 0.0
        %2152 = vmatpush2.msra.mxu0 0.0
        %2153 = vmatprep.subr.mxu0 0.0
        %2154 = vmatpush2.msra.mxu0 0.0
        %2155 = vmatprep.subr.mxu0 0.0
        %2156 = vmatpush2.msra.mxu0 0.0
        %2157 = vmatprep.subr.mxu0 0.0
        %2158 = vmatpush2.msra.mxu0 0.0
        %2159 = vmatprep.subr.mxu0 0.0
        %2160 = vmatpush2.msra.mxu0 0.0
        %2161 = vmatprep.subr.mxu0 0.0
        %2162 = vmatpush2.msra.mxu0 0.0
        %2163 = vmatprep.subr.mxu0 0.0
        %2164 = vmatpush2.msra.mxu0 0.0
        %2165 = vmatprep.subr.mxu0 0.0
        %2166 = vmatpush2.msra.mxu0 0.0
        %2167 = vmatprep.subr.mxu0 0.0
        %2168 = vmatpush2.msra.mxu0 0.0
        %2169 = vmatprep.subr.mxu0 0.0
        %2170 = vmatpush2.msra.mxu0 0.0
        %2171 = vmatprep.subr.mxu0 0.0
        %2172 = vmatpush2.msra.mxu0 0.0
        %2173 = vmatprep.subr.mxu0 0.0
        %2174 = vmatpush2.msra.mxu0 0.0
        %2175 = vmatprep.subr.mxu0 0.0
        %2176 = vmatpush2.msra.mxu0 0.0
        %2177 = vmatprep.mubr.f32.mxu0 0.0
        %v2178 = vand.u32 %v1486, 4294901760
        %2179 = vmatmul.mubr.f32.gmra.mxu0 %v2178
        %v2180 = vpop.f32.mrf.mxu0
        %v2181 = vadd.f32 %v2030, %v2180
        %v2182 = vpop.f32.mrf.mxu0
        %2183 = vmatprep.mubr.f32.mxu0 0.0
        %v2184 = vand.u32 %v1489, 4294901760
        %2185 = vmatmul.mubr.f32.gmra.mxu0 %v2184
        %v2186 = vpop.f32.mrf.mxu0
        %v2187 = vadd.f32 %v2038, %v2186
        %v2188 = vpop.f32.mrf.mxu0
        %2189 = vmatprep.mubr.f32.mxu0 0.0
        %v2190 = vand.u32 %v1492, 4294901760
        %2191 = vmatmul.mubr.f32.gmra.mxu0 %v2190
        %v2192 = vpop.f32.mrf.mxu0
        %v2193 = vadd.f32 %v2046, %v2192
        %v2194 = vpop.f32.mrf.mxu0
        %2195 = vmatprep.mubr.f32.mxu0 0.0
        %v2196 = vand.u32 %v1495, 4294901760
        %2197 = vmatmul.mubr.f32.gmra.mxu0 %v2196
        %v2198 = vpop.f32.mrf.mxu0
        %v2199 = vadd.f32 %v2054, %v2198
        %v2200 = vpop.f32.mrf.mxu0
        %2201 = vmatprep.mubr.f32.mxu0 0.0
        %v2202 = vand.u32 %v1498, 4294901760
        %2203 = vmatmul.mubr.f32.gmra.mxu0 %v2202
        %v2204 = vpop.f32.mrf.mxu0
        %v2205 = vadd.f32 %v2062, %v2204
        %v2206 = vpop.f32.mrf.mxu0
        %2207 = vmatprep.mubr.f32.mxu0 0.0
        %v2208 = vand.u32 %v1501, 4294901760
        %2209 = vmatmul.mubr.f32.gmra.mxu0 %v2208
        %v2210 = vpop.f32.mrf.mxu0
        %v2211 = vadd.f32 %v2070, %v2210
        %v2212 = vpop.f32.mrf.mxu0
        %2213 = vmatprep.mubr.f32.mxu0 0.0
        %v2214 = vand.u32 %v1504, 4294901760
        %2215 = vmatmul.mubr.f32.gmra.mxu0 %v2214
        %v2216 = vpop.f32.mrf.mxu0
        %v2217 = vadd.f32 %v2078, %v2216
        %v2218 = vpop.f32.mrf.mxu0
        %2219 = vmatprep.mubr.f32.mxu0 0.0
        %v2220 = vand.u32 %v1507, 4294901760
        %2221 = vmatmul.mubr.f32.gmra.mxu0 %v2220
        %v2222 = vpop.f32.mrf.mxu0
        %v2223 = vadd.f32 %v2086, %v2222
        %v2224 = vpop.f32.mrf.mxu0
        %2225 = vdwg.mxu0
        %2226 = vmatprep.subr.mxu0 0.0
        %2227 = vmatpush1.msra.mxu0 0.0
        %2228 = vmatprep.subr.mxu0 0.0
        %2229 = vmatpush1.msra.mxu0 0.0
        %2230 = vmatprep.subr.mxu0 0.0
        %2231 = vmatpush1.msra.mxu0 0.0
        %2232 = vmatprep.subr.mxu0 0.0
        %2233 = vmatpush1.msra.mxu0 0.0
        %2234 = vmatprep.subr.mxu0 0.0
        %2235 = vmatpush1.msra.mxu0 0.0
        %2236 = vmatprep.subr.mxu0 0.0
        %2237 = vmatpush1.msra.mxu0 0.0
        %2238 = vmatprep.subr.mxu0 0.0
        %2239 = vmatpush1.msra.mxu0 0.0
        %2240 = vmatprep.subr.mxu0 0.0
        %2241 = vmatpush1.msra.mxu0 0.0
        %2242 = vmatprep.subr.mxu0 0.0
        %v2243 = vand.u32 %v1427, 4294901760
        %2244 = vmatpush1.msra.mxu0 %v2243
        %2245 = vmatprep.subr.mxu0 0.0
        %v2246 = vand.u32 %v1426, 4294901760
        %2247 = vmatpush1.msra.mxu0 %v2246
        %2248 = vmatprep.subr.mxu0 0.0
        %v2249 = vand.u32 %v1425, 4294901760
        %2250 = vmatpush1.msra.mxu0 %v2249
        %2251 = vmatprep.subr.mxu0 0.0
        %v2252 = vand.u32 %v1424, 4294901760
        %2253 = vmatpush1.msra.mxu0 %v2252
        %2254 = vmatprep.subr.mxu0 0.0
        %v2255 = vand.u32 %v1423, 4294901760
        %2256 = vmatpush1.msra.mxu0 %v2255
        %2257 = vmatprep.subr.mxu0 0.0
        %v2258 = vand.u32 %v1422, 4294901760
        %2259 = vmatpush1.msra.mxu0 %v2258
        %2260 = vmatprep.subr.mxu0 0.0
        %v2261 = vand.u32 %v1421, 4294901760
        %2262 = vmatpush1.msra.mxu0 %v2261
        %2263 = vmatprep.subr.mxu0 0.0
        %v2264 = vand.u32 %v1420, 4294901760
        %2265 = vmatpush1.msra.mxu0 %v2264
        %2266 = vmatprep.subr.mxu0 0.0
        %2267 = vmatpush2.msra.mxu0 0.0
        %2268 = vmatprep.subr.mxu0 0.0
        %2269 = vmatpush2.msra.mxu0 0.0
        %2270 = vmatprep.subr.mxu0 0.0
        %2271 = vmatpush2.msra.mxu0 0.0
        %2272 = vmatprep.subr.mxu0 0.0
        %2273 = vmatpush2.msra.mxu0 0.0
        %2274 = vmatprep.subr.mxu0 0.0
        %2275 = vmatpush2.msra.mxu0 0.0
        %2276 = vmatprep.subr.mxu0 0.0
        %2277 = vmatpush2.msra.mxu0 0.0
        %2278 = vmatprep.subr.mxu0 0.0
        %2279 = vmatpush2.msra.mxu0 0.0
        %2280 = vmatprep.subr.mxu0 0.0
        %2281 = vmatpush2.msra.mxu0 0.0
        %2282 = vmatprep.subr.mxu0 0.0
        %2283 = vmatpush2.msra.mxu0 0.0
        %2284 = vmatprep.subr.mxu0 0.0
        %2285 = vmatpush2.msra.mxu0 0.0
        %2286 = vmatprep.subr.mxu0 0.0
        %2287 = vmatpush2.msra.mxu0 0.0
        %2288 = vmatprep.subr.mxu0 0.0
        %2289 = vmatpush2.msra.mxu0 0.0
        %2290 = vmatprep.subr.mxu0 0.0
        %2291 = vmatpush2.msra.mxu0 0.0
        %2292 = vmatprep.subr.mxu0 0.0
        %2293 = vmatpush2.msra.mxu0 0.0
        %2294 = vmatprep.subr.mxu0 0.0
        %2295 = vmatpush2.msra.mxu0 0.0
        %2296 = vmatprep.subr.mxu0 0.0
        %2297 = vmatpush2.msra.mxu0 0.0
        %2298 = vmatprep.mubr.f32.mxu0 0.0
        %v2299 = vand.u32 %v1486, 4294901760
        %2300 = vmatmul.mubr.f32.gmra.mxu0 %v2299
        %v2301 = vpop.f32.mrf.mxu0
        %v2302 = vadd.f32 %v2181, %v2301
        %v2303 = vpop.f32.mrf.mxu0
        %2304 = vmatprep.mubr.f32.mxu0 0.0
        %v2305 = vand.u32 %v1489, 4294901760
        %2306 = vmatmul.mubr.f32.gmra.mxu0 %v2305
        %v2307 = vpop.f32.mrf.mxu0
        %v2308 = vadd.f32 %v2187, %v2307
        %v2309 = vpop.f32.mrf.mxu0
        %2310 = vmatprep.mubr.f32.mxu0 0.0
        %v2311 = vand.u32 %v1492, 4294901760
        %2312 = vmatmul.mubr.f32.gmra.mxu0 %v2311
        %v2313 = vpop.f32.mrf.mxu0
        %v2314 = vadd.f32 %v2193, %v2313
        %v2315 = vpop.f32.mrf.mxu0
        %2316 = vmatprep.mubr.f32.mxu0 0.0
        %v2317 = vand.u32 %v1495, 4294901760
        %2318 = vmatmul.mubr.f32.gmra.mxu0 %v2317
        %v2319 = vpop.f32.mrf.mxu0
        %v2320 = vadd.f32 %v2199, %v2319
        %v2321 = vpop.f32.mrf.mxu0
        %2322 = vmatprep.mubr.f32.mxu0 0.0
        %v2323 = vand.u32 %v1498, 4294901760
        %2324 = vmatmul.mubr.f32.gmra.mxu0 %v2323
        %v2325 = vpop.f32.mrf.mxu0
        %v2326 = vadd.f32 %v2205, %v2325
        %v2327 = vpop.f32.mrf.mxu0
        %2328 = vmatprep.mubr.f32.mxu0 0.0
        %v2329 = vand.u32 %v1501, 4294901760
        %2330 = vmatmul.mubr.f32.gmra.mxu0 %v2329
        %v2331 = vpop.f32.mrf.mxu0
        %v2332 = vadd.f32 %v2211, %v2331
        %v2333 = vpop.f32.mrf.mxu0
        %2334 = vmatprep.mubr.f32.mxu0 0.0
        %v2335 = vand.u32 %v1504, 4294901760
        %2336 = vmatmul.mubr.f32.gmra.mxu0 %v2335
        %v2337 = vpop.f32.mrf.mxu0
        %v2338 = vadd.f32 %v2217, %v2337
        %v2339 = vpop.f32.mrf.mxu0
        %2340 = vmatprep.mubr.f32.mxu0 0.0
        %v2341 = vand.u32 %v1507, 4294901760
        %2342 = vmatmul.mubr.f32.gmra.mxu0 %v2341
        %v2343 = vpop.f32.mrf.mxu0
        %v2344 = vadd.f32 %v2223, %v2343
        %v2345 = vpop.f32.mrf.mxu0
        %2346 = vdwg.mxu0
        %v2347 = vmax.f32 %v2302, 0.0
        %v2348 = vmax.f32 %v2308, 0.0
        %v2349 = vmax.f32 %v2314, 0.0
        %v2350 = vmax.f32 %v2320, 0.0
        %v2351 = vmax.f32 %v2326, 0.0
        %v2352 = vmax.f32 %v2332, 0.0
        %v2353 = vmax.f32 %v2338, 0.0
        %v2354 = vmax.f32 %v2344, 0.0
        %v2355 = vld [vmem:[%s5] sm:$0xff]
        %v2356 = vld [vmem:[%s5 + $0x8] sm:$0xff]
        %v2357 = vld [vmem:[%s5 + $0x10] sm:$0xff]
        %v2358 = vld [vmem:[%s5 + $0x18] sm:$0xff]
        %v2359 = vld [vmem:[%s6] sm:$0xff]
        %v2360 = vld [vmem:[%s6 + $0x8] sm:$0xff]
        %v2361 = vld [vmem:[%s6 + $0x10] sm:$0xff]
        %v2362 = vld [vmem:[%s6 + $0x18] sm:$0xff]
        %2364 = vset.pattern.permute.xlu0 0
        %2365 = vperm.xlu0 %2364, %v2359
        %v2366 = vpop.permute.xlu0 %2365
        %2369 = vset.pattern.permute.xlu0 0
        %2370 = vperm.xlu0 %2369, %v2360
        %v2371 = vpop.permute.xlu0 %2370
        %2374 = vset.pattern.permute.xlu0 0
        %2375 = vperm.xlu0 %2374, %v2361
        %v2376 = vpop.permute.xlu0 %2375
        %2379 = vset.pattern.permute.xlu0 0
        %2380 = vperm.xlu0 %2379, %v2362
        %v2381 = vpop.permute.xlu0 %2380
        %v2384 = vsel %vm1484, %v2355, 0
        %v2387 = vsel %vm1484, %v2356, 0
        %v2390 = vsel %vm1484, %v2357, 0
        %v2393 = vsel %vm1484, %v2358, 0
        %2395 = vmatprep.subr.mxu0 0.0
        %2396 = vmatpush1.msra.mxu0 0.0
        %2397 = vmatprep.subr.mxu0 0.0
        %2398 = vmatpush1.msra.mxu0 0.0
        %2399 = vmatprep.subr.mxu0 0.0
        %2400 = vmatpush1.msra.mxu0 0.0
        %2401 = vmatprep.subr.mxu0 0.0
        %2402 = vmatpush1.msra.mxu0 0.0
        %2403 = vmatprep.subr.mxu0 0.0
        %2404 = vmatpush1.msra.mxu0 0.0
        %2405 = vmatprep.subr.mxu0 0.0
        %2406 = vmatpush1.msra.mxu0 0.0
        %2407 = vmatprep.subr.mxu0 0.0
        %2408 = vmatpush1.msra.mxu0 0.0
        %2409 = vmatprep.subr.mxu0 0.0
        %2410 = vmatpush1.msra.mxu0 0.0
        %2411 = vmatprep.subr.mxu0 0.0
        %v2412 = vand.u32 %v2354, 4294901760
        %2413 = vmatpush1.msra.mxu0 %v2412
        %2414 = vmatprep.subr.mxu0 0.0
        %v2415 = vand.u32 %v2353, 4294901760
        %2416 = vmatpush1.msra.mxu0 %v2415
        %2417 = vmatprep.subr.mxu0 0.0
        %v2418 = vand.u32 %v2352, 4294901760
        %2419 = vmatpush1.msra.mxu0 %v2418
        %2420 = vmatprep.subr.mxu0 0.0
        %v2421 = vand.u32 %v2351, 4294901760
        %2422 = vmatpush1.msra.mxu0 %v2421
        %2423 = vmatprep.subr.mxu0 0.0
        %v2424 = vand.u32 %v2350, 4294901760
        %2425 = vmatpush1.msra.mxu0 %v2424
        %2426 = vmatprep.subr.mxu0 0.0
        %v2427 = vand.u32 %v2349, 4294901760
        %2428 = vmatpush1.msra.mxu0 %v2427
        %2429 = vmatprep.subr.mxu0 0.0
        %v2430 = vand.u32 %v2348, 4294901760
        %2431 = vmatpush1.msra.mxu0 %v2430
        %2432 = vmatprep.subr.mxu0 0.0
        %v2433 = vand.u32 %v2347, 4294901760
        %2434 = vmatpush1.msra.mxu0 %v2433
        %2435 = vmatprep.subr.mxu0 0.0
        %2436 = vmatpush2.msra.mxu0 0.0
        %2437 = vmatprep.subr.mxu0 0.0
        %2438 = vmatpush2.msra.mxu0 0.0
        %2439 = vmatprep.subr.mxu0 0.0
        %2440 = vmatpush2.msra.mxu0 0.0
        %2441 = vmatprep.subr.mxu0 0.0
        %2442 = vmatpush2.msra.mxu0 0.0
        %2443 = vmatprep.subr.mxu0 0.0
        %2444 = vmatpush2.msra.mxu0 0.0
        %2445 = vmatprep.subr.mxu0 0.0
        %2446 = vmatpush2.msra.mxu0 0.0
        %2447 = vmatprep.subr.mxu0 0.0
        %2448 = vmatpush2.msra.mxu0 0.0
        %2449 = vmatprep.subr.mxu0 0.0
        %2450 = vmatpush2.msra.mxu0 0.0
        %2451 = vmatprep.subr.mxu0 0.0
        %2452 = vmatpush2.msra.mxu0 0.0
        %2453 = vmatprep.subr.mxu0 0.0
        %2454 = vmatpush2.msra.mxu0 0.0
        %2455 = vmatprep.subr.mxu0 0.0
        %2456 = vmatpush2.msra.mxu0 0.0
        %2457 = vmatprep.subr.mxu0 0.0
        %2458 = vmatpush2.msra.mxu0 0.0
        %2459 = vmatprep.subr.mxu0 0.0
        %2460 = vmatpush2.msra.mxu0 0.0
        %2461 = vmatprep.subr.mxu0 0.0
        %2462 = vmatpush2.msra.mxu0 0.0
        %2463 = vmatprep.subr.mxu0 0.0
        %2464 = vmatpush2.msra.mxu0 0.0
        %2465 = vmatprep.subr.mxu0 0.0
        %2466 = vmatpush2.msra.mxu0 0.0
        %2467 = vmatprep.mubr.f32.mxu0 0.0
        %v2468 = vand.u32 %v2384, 4294901760
        %v2469 = vsub.f32 %v2384, %v2468
        %v2470 = vand.u32 %v2469, 4294901760
        %v2471 = vsub.f32 %v2469, %v2470
        %v2472 = vand.u32 %v2471, 4294901760
        %2473 = vmatmul.mubr.f32.gmra.mxu0 %v2472
        %v2474 = vpop.f32.mrf.mxu0
        %v2475 = vadd.f32 %v2366, %v2474
        %v2476 = vpop.f32.mrf.mxu0
        %2477 = vmatprep.mubr.f32.mxu0 0.0
        %v2478 = vand.u32 %v2387, 4294901760
        %v2479 = vsub.f32 %v2387, %v2478
        %v2480 = vand.u32 %v2479, 4294901760
        %v2481 = vsub.f32 %v2479, %v2480
        %v2482 = vand.u32 %v2481, 4294901760
        %2483 = vmatmul.mubr.f32.gmra.mxu0 %v2482
        %v2484 = vpop.f32.mrf.mxu0
        %v2485 = vadd.f32 %v2371, %v2484
        %v2486 = vpop.f32.mrf.mxu0
        %2487 = vmatprep.mubr.f32.mxu0 0.0
        %v2488 = vand.u32 %v2390, 4294901760
        %v2489 = vsub.f32 %v2390, %v2488
        %v2490 = vand.u32 %v2489, 4294901760
        %v2491 = vsub.f32 %v2489, %v2490
        %v2492 = vand.u32 %v2491, 4294901760
        %2493 = vmatmul.mubr.f32.gmra.mxu0 %v2492
        %v2494 = vpop.f32.mrf.mxu0
        %v2495 = vadd.f32 %v2376, %v2494
        %v2496 = vpop.f32.mrf.mxu0
        %2497 = vmatprep.mubr.f32.mxu0 0.0
        %v2498 = vand.u32 %v2393, 4294901760
        %v2499 = vsub.f32 %v2393, %v2498
        %v2500 = vand.u32 %v2499, 4294901760
        %v2501 = vsub.f32 %v2499, %v2500
        %v2502 = vand.u32 %v2501, 4294901760
        %2503 = vmatmul.mubr.f32.gmra.mxu0 %v2502
        %v2504 = vpop.f32.mrf.mxu0
        %v2505 = vadd.f32 %v2381, %v2504
        %v2506 = vpop.f32.mrf.mxu0
        %2507 = vdwg.mxu0
        %2508 = vmatprep.subr.mxu0 0.0
        %2509 = vmatpush1.msra.mxu0 0.0
        %2510 = vmatprep.subr.mxu0 0.0
        %2511 = vmatpush1.msra.mxu0 0.0
        %2512 = vmatprep.subr.mxu0 0.0
        %2513 = vmatpush1.msra.mxu0 0.0
        %2514 = vmatprep.subr.mxu0 0.0
        %2515 = vmatpush1.msra.mxu0 0.0
        %2516 = vmatprep.subr.mxu0 0.0
        %2517 = vmatpush1.msra.mxu0 0.0
        %2518 = vmatprep.subr.mxu0 0.0
        %2519 = vmatpush1.msra.mxu0 0.0
        %2520 = vmatprep.subr.mxu0 0.0
        %2521 = vmatpush1.msra.mxu0 0.0
        %2522 = vmatprep.subr.mxu0 0.0
        %2523 = vmatpush1.msra.mxu0 0.0
        %2524 = vmatprep.subr.mxu0 0.0
        %v2525 = vand.u32 %v2354, 4294901760
        %v2526 = vsub.f32 %v2354, %v2525
        %v2527 = vand.u32 %v2526, 4294901760
        %v2528 = vsub.f32 %v2526, %v2527
        %v2529 = vand.u32 %v2528, 4294901760
        %2530 = vmatpush1.msra.mxu0 %v2529
        %2531 = vmatprep.subr.mxu0 0.0
        %v2532 = vand.u32 %v2353, 4294901760
        %v2533 = vsub.f32 %v2353, %v2532
        %v2534 = vand.u32 %v2533, 4294901760
        %v2535 = vsub.f32 %v2533, %v2534
        %v2536 = vand.u32 %v2535, 4294901760
        %2537 = vmatpush1.msra.mxu0 %v2536
        %2538 = vmatprep.subr.mxu0 0.0
        %v2539 = vand.u32 %v2352, 4294901760
        %v2540 = vsub.f32 %v2352, %v2539
        %v2541 = vand.u32 %v2540, 4294901760
        %v2542 = vsub.f32 %v2540, %v2541
        %v2543 = vand.u32 %v2542, 4294901760
        %2544 = vmatpush1.msra.mxu0 %v2543
        %2545 = vmatprep.subr.mxu0 0.0
        %v2546 = vand.u32 %v2351, 4294901760
        %v2547 = vsub.f32 %v2351, %v2546
        %v2548 = vand.u32 %v2547, 4294901760
        %v2549 = vsub.f32 %v2547, %v2548
        %v2550 = vand.u32 %v2549, 4294901760
        %2551 = vmatpush1.msra.mxu0 %v2550
        %2552 = vmatprep.subr.mxu0 0.0
        %v2553 = vand.u32 %v2350, 4294901760
        %v2554 = vsub.f32 %v2350, %v2553
        %v2555 = vand.u32 %v2554, 4294901760
        %v2556 = vsub.f32 %v2554, %v2555
        %v2557 = vand.u32 %v2556, 4294901760
        %2558 = vmatpush1.msra.mxu0 %v2557
        %2559 = vmatprep.subr.mxu0 0.0
        %v2560 = vand.u32 %v2349, 4294901760
        %v2561 = vsub.f32 %v2349, %v2560
        %v2562 = vand.u32 %v2561, 4294901760
        %v2563 = vsub.f32 %v2561, %v2562
        %v2564 = vand.u32 %v2563, 4294901760
        %2565 = vmatpush1.msra.mxu0 %v2564
        %2566 = vmatprep.subr.mxu0 0.0
        %v2567 = vand.u32 %v2348, 4294901760
        %v2568 = vsub.f32 %v2348, %v2567
        %v2569 = vand.u32 %v2568, 4294901760
        %v2570 = vsub.f32 %v2568, %v2569
        %v2571 = vand.u32 %v2570, 4294901760
        %2572 = vmatpush1.msra.mxu0 %v2571
        %2573 = vmatprep.subr.mxu0 0.0
        %v2574 = vand.u32 %v2347, 4294901760
        %v2575 = vsub.f32 %v2347, %v2574
        %v2576 = vand.u32 %v2575, 4294901760
        %v2577 = vsub.f32 %v2575, %v2576
        %v2578 = vand.u32 %v2577, 4294901760
        %2579 = vmatpush1.msra.mxu0 %v2578
        %2580 = vmatprep.subr.mxu0 0.0
        %2581 = vmatpush2.msra.mxu0 0.0
        %2582 = vmatprep.subr.mxu0 0.0
        %2583 = vmatpush2.msra.mxu0 0.0
        %2584 = vmatprep.subr.mxu0 0.0
        %2585 = vmatpush2.msra.mxu0 0.0
        %2586 = vmatprep.subr.mxu0 0.0
        %2587 = vmatpush2.msra.mxu0 0.0
        %2588 = vmatprep.subr.mxu0 0.0
        %2589 = vmatpush2.msra.mxu0 0.0
        %2590 = vmatprep.subr.mxu0 0.0
        %2591 = vmatpush2.msra.mxu0 0.0
        %2592 = vmatprep.subr.mxu0 0.0
        %2593 = vmatpush2.msra.mxu0 0.0
        %2594 = vmatprep.subr.mxu0 0.0
        %2595 = vmatpush2.msra.mxu0 0.0
        %2596 = vmatprep.subr.mxu0 0.0
        %2597 = vmatpush2.msra.mxu0 0.0
        %2598 = vmatprep.subr.mxu0 0.0
        %2599 = vmatpush2.msra.mxu0 0.0
        %2600 = vmatprep.subr.mxu0 0.0
        %2601 = vmatpush2.msra.mxu0 0.0
        %2602 = vmatprep.subr.mxu0 0.0
        %2603 = vmatpush2.msra.mxu0 0.0
        %2604 = vmatprep.subr.mxu0 0.0
        %2605 = vmatpush2.msra.mxu0 0.0
        %2606 = vmatprep.subr.mxu0 0.0
        %2607 = vmatpush2.msra.mxu0 0.0
        %2608 = vmatprep.subr.mxu0 0.0
        %2609 = vmatpush2.msra.mxu0 0.0
        %2610 = vmatprep.subr.mxu0 0.0
        %2611 = vmatpush2.msra.mxu0 0.0
        %2612 = vmatprep.mubr.f32.mxu0 0.0
        %v2613 = vand.u32 %v2384, 4294901760
        %2614 = vmatmul.mubr.f32.gmra.mxu0 %v2613
        %v2615 = vpop.f32.mrf.mxu0
        %v2616 = vadd.f32 %v2475, %v2615
        %v2617 = vpop.f32.mrf.mxu0
        %2618 = vmatprep.mubr.f32.mxu0 0.0
        %v2619 = vand.u32 %v2387, 4294901760
        %2620 = vmatmul.mubr.f32.gmra.mxu0 %v2619
        %v2621 = vpop.f32.mrf.mxu0
        %v2622 = vadd.f32 %v2485, %v2621
        %v2623 = vpop.f32.mrf.mxu0
        %2624 = vmatprep.mubr.f32.mxu0 0.0
        %v2625 = vand.u32 %v2390, 4294901760
        %2626 = vmatmul.mubr.f32.gmra.mxu0 %v2625
        %v2627 = vpop.f32.mrf.mxu0
        %v2628 = vadd.f32 %v2495, %v2627
        %v2629 = vpop.f32.mrf.mxu0
        %2630 = vmatprep.mubr.f32.mxu0 0.0
        %v2631 = vand.u32 %v2393, 4294901760
        %2632 = vmatmul.mubr.f32.gmra.mxu0 %v2631
        %v2633 = vpop.f32.mrf.mxu0
        %v2634 = vadd.f32 %v2505, %v2633
        %v2635 = vpop.f32.mrf.mxu0
        %2636 = vdwg.mxu0
        %2637 = vmatprep.subr.mxu0 0.0
        %2638 = vmatpush1.msra.mxu0 0.0
        %2639 = vmatprep.subr.mxu0 0.0
        %2640 = vmatpush1.msra.mxu0 0.0
        %2641 = vmatprep.subr.mxu0 0.0
        %2642 = vmatpush1.msra.mxu0 0.0
        %2643 = vmatprep.subr.mxu0 0.0
        %2644 = vmatpush1.msra.mxu0 0.0
        %2645 = vmatprep.subr.mxu0 0.0
        %2646 = vmatpush1.msra.mxu0 0.0
        %2647 = vmatprep.subr.mxu0 0.0
        %2648 = vmatpush1.msra.mxu0 0.0
        %2649 = vmatprep.subr.mxu0 0.0
        %2650 = vmatpush1.msra.mxu0 0.0
        %2651 = vmatprep.subr.mxu0 0.0
        %2652 = vmatpush1.msra.mxu0 0.0
        %2653 = vmatprep.subr.mxu0 0.0
        %v2654 = vand.u32 %v2354, 4294901760
        %v2655 = vsub.f32 %v2354, %v2654
        %2656 = vmatpush1.msra.mxu0 %v2655
        %2657 = vmatprep.subr.mxu0 0.0
        %v2658 = vand.u32 %v2353, 4294901760
        %v2659 = vsub.f32 %v2353, %v2658
        %2660 = vmatpush1.msra.mxu0 %v2659
        %2661 = vmatprep.subr.mxu0 0.0
        %v2662 = vand.u32 %v2352, 4294901760
        %v2663 = vsub.f32 %v2352, %v2662
        %2664 = vmatpush1.msra.mxu0 %v2663
        %2665 = vmatprep.subr.mxu0 0.0
        %v2666 = vand.u32 %v2351, 4294901760
        %v2667 = vsub.f32 %v2351, %v2666
        %2668 = vmatpush1.msra.mxu0 %v2667
        %2669 = vmatprep.subr.mxu0 0.0
        %v2670 = vand.u32 %v2350, 4294901760
        %v2671 = vsub.f32 %v2350, %v2670
        %2672 = vmatpush1.msra.mxu0 %v2671
        %2673 = vmatprep.subr.mxu0 0.0
        %v2674 = vand.u32 %v2349, 4294901760
        %v2675 = vsub.f32 %v2349, %v2674
        %2676 = vmatpush1.msra.mxu0 %v2675
        %2677 = vmatprep.subr.mxu0 0.0
        %v2678 = vand.u32 %v2348, 4294901760
        %v2679 = vsub.f32 %v2348, %v2678
        %2680 = vmatpush1.msra.mxu0 %v2679
        %2681 = vmatprep.subr.mxu0 0.0
        %v2682 = vand.u32 %v2347, 4294901760
        %v2683 = vsub.f32 %v2347, %v2682
        %2684 = vmatpush1.msra.mxu0 %v2683
        %2685 = vmatprep.subr.mxu0 0.0
        %2686 = vmatpush2.msra.mxu0 0.0
        %2687 = vmatprep.subr.mxu0 0.0
        %2688 = vmatpush2.msra.mxu0 0.0
        %2689 = vmatprep.subr.mxu0 0.0
        %2690 = vmatpush2.msra.mxu0 0.0
        %2691 = vmatprep.subr.mxu0 0.0
        %2692 = vmatpush2.msra.mxu0 0.0
        %2693 = vmatprep.subr.mxu0 0.0
        %2694 = vmatpush2.msra.mxu0 0.0
        %2695 = vmatprep.subr.mxu0 0.0
        %2696 = vmatpush2.msra.mxu0 0.0
        %2697 = vmatprep.subr.mxu0 0.0
        %2698 = vmatpush2.msra.mxu0 0.0
        %2699 = vmatprep.subr.mxu0 0.0
        %2700 = vmatpush2.msra.mxu0 0.0
        %2701 = vmatprep.subr.mxu0 0.0
        %2702 = vmatpush2.msra.mxu0 0.0
        %2703 = vmatprep.subr.mxu0 0.0
        %2704 = vmatpush2.msra.mxu0 0.0
        %2705 = vmatprep.subr.mxu0 0.0
        %2706 = vmatpush2.msra.mxu0 0.0
        %2707 = vmatprep.subr.mxu0 0.0
        %2708 = vmatpush2.msra.mxu0 0.0
        %2709 = vmatprep.subr.mxu0 0.0
        %2710 = vmatpush2.msra.mxu0 0.0
        %2711 = vmatprep.subr.mxu0 0.0
        %2712 = vmatpush2.msra.mxu0 0.0
        %2713 = vmatprep.subr.mxu0 0.0
        %2714 = vmatpush2.msra.mxu0 0.0
        %2715 = vmatprep.subr.mxu0 0.0
        %2716 = vmatpush2.msra.mxu0 0.0
        %2717 = vmatprep.mubr.f32.mxu0 0.0
        %v2718 = vand.u32 %v2384, 4294901760
        %v2719 = vsub.f32 %v2384, %v2718
        %2720 = vmatmul.mubr.f32.gmra.mxu0 %v2719
        %v2721 = vpop.f32.mrf.mxu0
        %v2722 = vadd.f32 %v2616, %v2721
        %v2723 = vpop.f32.mrf.mxu0
        %2724 = vmatprep.mubr.f32.mxu0 0.0
        %v2725 = vand.u32 %v2387, 4294901760
        %v2726 = vsub.f32 %v2387, %v2725
        %2727 = vmatmul.mubr.f32.gmra.mxu0 %v2726
        %v2728 = vpop.f32.mrf.mxu0
        %v2729 = vadd.f32 %v2622, %v2728
        %v2730 = vpop.f32.mrf.mxu0
        %2731 = vmatprep.mubr.f32.mxu0 0.0
        %v2732 = vand.u32 %v2390, 4294901760
        %v2733 = vsub.f32 %v2390, %v2732
        %2734 = vmatmul.mubr.f32.gmra.mxu0 %v2733
        %v2735 = vpop.f32.mrf.mxu0
        %v2736 = vadd.f32 %v2628, %v2735
        %v2737 = vpop.f32.mrf.mxu0
        %2738 = vmatprep.mubr.f32.mxu0 0.0
        %v2739 = vand.u32 %v2393, 4294901760
        %v2740 = vsub.f32 %v2393, %v2739
        %2741 = vmatmul.mubr.f32.gmra.mxu0 %v2740
        %v2742 = vpop.f32.mrf.mxu0
        %v2743 = vadd.f32 %v2634, %v2742
        %v2744 = vpop.f32.mrf.mxu0
        %2745 = vdwg.mxu0
        %2746 = vmatprep.subr.mxu0 0.0
        %2747 = vmatpush1.msra.mxu0 0.0
        %2748 = vmatprep.subr.mxu0 0.0
        %2749 = vmatpush1.msra.mxu0 0.0
        %2750 = vmatprep.subr.mxu0 0.0
        %2751 = vmatpush1.msra.mxu0 0.0
        %2752 = vmatprep.subr.mxu0 0.0
        %2753 = vmatpush1.msra.mxu0 0.0
        %2754 = vmatprep.subr.mxu0 0.0
        %2755 = vmatpush1.msra.mxu0 0.0
        %2756 = vmatprep.subr.mxu0 0.0
        %2757 = vmatpush1.msra.mxu0 0.0
        %2758 = vmatprep.subr.mxu0 0.0
        %2759 = vmatpush1.msra.mxu0 0.0
        %2760 = vmatprep.subr.mxu0 0.0
        %2761 = vmatpush1.msra.mxu0 0.0
        %2762 = vmatprep.subr.mxu0 0.0
        %v2763 = vand.u32 %v2354, 4294901760
        %2764 = vmatpush1.msra.mxu0 %v2763
        %2765 = vmatprep.subr.mxu0 0.0
        %v2766 = vand.u32 %v2353, 4294901760
        %2767 = vmatpush1.msra.mxu0 %v2766
        %2768 = vmatprep.subr.mxu0 0.0
        %v2769 = vand.u32 %v2352, 4294901760
        %2770 = vmatpush1.msra.mxu0 %v2769
        %2771 = vmatprep.subr.mxu0 0.0
        %v2772 = vand.u32 %v2351, 4294901760
        %2773 = vmatpush1.msra.mxu0 %v2772
        %2774 = vmatprep.subr.mxu0 0.0
        %v2775 = vand.u32 %v2350, 4294901760
        %2776 = vmatpush1.msra.mxu0 %v2775
        %2777 = vmatprep.subr.mxu0 0.0
        %v2778 = vand.u32 %v2349, 4294901760
        %2779 = vmatpush1.msra.mxu0 %v2778
        %2780 = vmatprep.subr.mxu0 0.0
        %v2781 = vand.u32 %v2348, 4294901760
        %2782 = vmatpush1.msra.mxu0 %v2781
        %2783 = vmatprep.subr.mxu0 0.0
        %v2784 = vand.u32 %v2347, 4294901760
        %2785 = vmatpush1.msra.mxu0 %v2784
        %2786 = vmatprep.subr.mxu0 0.0
        %2787 = vmatpush2.msra.mxu0 0.0
        %2788 = vmatprep.subr.mxu0 0.0
        %2789 = vmatpush2.msra.mxu0 0.0
        %2790 = vmatprep.subr.mxu0 0.0
        %2791 = vmatpush2.msra.mxu0 0.0
        %2792 = vmatprep.subr.mxu0 0.0
        %2793 = vmatpush2.msra.mxu0 0.0
        %2794 = vmatprep.subr.mxu0 0.0
        %2795 = vmatpush2.msra.mxu0 0.0
        %2796 = vmatprep.subr.mxu0 0.0
        %2797 = vmatpush2.msra.mxu0 0.0
        %2798 = vmatprep.subr.mxu0 0.0
        %2799 = vmatpush2.msra.mxu0 0.0
        %2800 = vmatprep.subr.mxu0 0.0
        %2801 = vmatpush2.msra.mxu0 0.0
        %2802 = vmatprep.subr.mxu0 0.0
        %2803 = vmatpush2.msra.mxu0 0.0
        %2804 = vmatprep.subr.mxu0 0.0
        %2805 = vmatpush2.msra.mxu0 0.0
        %2806 = vmatprep.subr.mxu0 0.0
        %2807 = vmatpush2.msra.mxu0 0.0
        %2808 = vmatprep.subr.mxu0 0.0
        %2809 = vmatpush2.msra.mxu0 0.0
        %2810 = vmatprep.subr.mxu0 0.0
        %2811 = vmatpush2.msra.mxu0 0.0
        %2812 = vmatprep.subr.mxu0 0.0
        %2813 = vmatpush2.msra.mxu0 0.0
        %2814 = vmatprep.subr.mxu0 0.0
        %2815 = vmatpush2.msra.mxu0 0.0
        %2816 = vmatprep.subr.mxu0 0.0
        %2817 = vmatpush2.msra.mxu0 0.0
        %2818 = vmatprep.mubr.f32.mxu0 0.0
        %v2819 = vand.u32 %v2384, 4294901760
        %v2820 = vsub.f32 %v2384, %v2819
        %v2821 = vand.u32 %v2820, 4294901760
        %2822 = vmatmul.mubr.f32.gmra.mxu0 %v2821
        %v2823 = vpop.f32.mrf.mxu0
        %v2824 = vadd.f32 %v2722, %v2823
        %v2825 = vpop.f32.mrf.mxu0
        %2826 = vmatprep.mubr.f32.mxu0 0.0
        %v2827 = vand.u32 %v2387, 4294901760
        %v2828 = vsub.f32 %v2387, %v2827
        %v2829 = vand.u32 %v2828, 4294901760
        %2830 = vmatmul.mubr.f32.gmra.mxu0 %v2829
        %v2831 = vpop.f32.mrf.mxu0
        %v2832 = vadd.f32 %v2729, %v2831
        %v2833 = vpop.f32.mrf.mxu0
        %2834 = vmatprep.mubr.f32.mxu0 0.0
        %v2835 = vand.u32 %v2390, 4294901760
        %v2836 = vsub.f32 %v2390, %v2835
        %v2837 = vand.u32 %v2836, 4294901760
        %2838 = vmatmul.mubr.f32.gmra.mxu0 %v2837
        %v2839 = vpop.f32.mrf.mxu0
        %v2840 = vadd.f32 %v2736, %v2839
        %v2841 = vpop.f32.mrf.mxu0
        %2842 = vmatprep.mubr.f32.mxu0 0.0
        %v2843 = vand.u32 %v2393, 4294901760
        %v2844 = vsub.f32 %v2393, %v2843
        %v2845 = vand.u32 %v2844, 4294901760
        %2846 = vmatmul.mubr.f32.gmra.mxu0 %v2845
        %v2847 = vpop.f32.mrf.mxu0
        %v2848 = vadd.f32 %v2743, %v2847
        %v2849 = vpop.f32.mrf.mxu0
        %2850 = vdwg.mxu0
        %2851 = vmatprep.subr.mxu0 0.0
        %2852 = vmatpush1.msra.mxu0 0.0
        %2853 = vmatprep.subr.mxu0 0.0
        %2854 = vmatpush1.msra.mxu0 0.0
        %2855 = vmatprep.subr.mxu0 0.0
        %2856 = vmatpush1.msra.mxu0 0.0
        %2857 = vmatprep.subr.mxu0 0.0
        %2858 = vmatpush1.msra.mxu0 0.0
        %2859 = vmatprep.subr.mxu0 0.0
        %2860 = vmatpush1.msra.mxu0 0.0
        %2861 = vmatprep.subr.mxu0 0.0
        %2862 = vmatpush1.msra.mxu0 0.0
        %2863 = vmatprep.subr.mxu0 0.0
        %2864 = vmatpush1.msra.mxu0 0.0
        %2865 = vmatprep.subr.mxu0 0.0
        %2866 = vmatpush1.msra.mxu0 0.0
        %2867 = vmatprep.subr.mxu0 0.0
        %v2868 = vand.u32 %v2354, 4294901760
        %v2869 = vsub.f32 %v2354, %v2868
        %v2870 = vand.u32 %v2869, 4294901760
        %2871 = vmatpush1.msra.mxu0 %v2870
        %2872 = vmatprep.subr.mxu0 0.0
        %v2873 = vand.u32 %v2353, 4294901760
        %v2874 = vsub.f32 %v2353, %v2873
        %v2875 = vand.u32 %v2874, 4294901760
        %2876 = vmatpush1.msra.mxu0 %v2875
        %2877 = vmatprep.subr.mxu0 0.0
        %v2878 = vand.u32 %v2352, 4294901760
        %v2879 = vsub.f32 %v2352, %v2878
        %v2880 = vand.u32 %v2879, 4294901760
        %2881 = vmatpush1.msra.mxu0 %v2880
        %2882 = vmatprep.subr.mxu0 0.0
        %v2883 = vand.u32 %v2351, 4294901760
        %v2884 = vsub.f32 %v2351, %v2883
        %v2885 = vand.u32 %v2884, 4294901760
        %2886 = vmatpush1.msra.mxu0 %v2885
        %2887 = vmatprep.subr.mxu0 0.0
        %v2888 = vand.u32 %v2350, 4294901760
        %v2889 = vsub.f32 %v2350, %v2888
        %v2890 = vand.u32 %v2889, 4294901760
        %2891 = vmatpush1.msra.mxu0 %v2890
        %2892 = vmatprep.subr.mxu0 0.0
        %v2893 = vand.u32 %v2349, 4294901760
        %v2894 = vsub.f32 %v2349, %v2893
        %v2895 = vand.u32 %v2894, 4294901760
        %2896 = vmatpush1.msra.mxu0 %v2895
        %2897 = vmatprep.subr.mxu0 0.0
        %v2898 = vand.u32 %v2348, 4294901760
        %v2899 = vsub.f32 %v2348, %v2898
        %v2900 = vand.u32 %v2899, 4294901760
        %2901 = vmatpush1.msra.mxu0 %v2900
        %2902 = vmatprep.subr.mxu0 0.0
        %v2903 = vand.u32 %v2347, 4294901760
        %v2904 = vsub.f32 %v2347, %v2903
        %v2905 = vand.u32 %v2904, 4294901760
        %2906 = vmatpush1.msra.mxu0 %v2905
        %2907 = vmatprep.subr.mxu0 0.0
        %2908 = vmatpush2.msra.mxu0 0.0
        %2909 = vmatprep.subr.mxu0 0.0
        %2910 = vmatpush2.msra.mxu0 0.0
        %2911 = vmatprep.subr.mxu0 0.0
        %2912 = vmatpush2.msra.mxu0 0.0
        %2913 = vmatprep.subr.mxu0 0.0
        %2914 = vmatpush2.msra.mxu0 0.0
        %2915 = vmatprep.subr.mxu0 0.0
        %2916 = vmatpush2.msra.mxu0 0.0
        %2917 = vmatprep.subr.mxu0 0.0
        %2918 = vmatpush2.msra.mxu0 0.0
        %2919 = vmatprep.subr.mxu0 0.0
        %2920 = vmatpush2.msra.mxu0 0.0
        %2921 = vmatprep.subr.mxu0 0.0
        %2922 = vmatpush2.msra.mxu0 0.0
        %2923 = vmatprep.subr.mxu0 0.0
        %2924 = vmatpush2.msra.mxu0 0.0
        %2925 = vmatprep.subr.mxu0 0.0
        %2926 = vmatpush2.msra.mxu0 0.0
        %2927 = vmatprep.subr.mxu0 0.0
        %2928 = vmatpush2.msra.mxu0 0.0
        %2929 = vmatprep.subr.mxu0 0.0
        %2930 = vmatpush2.msra.mxu0 0.0
        %2931 = vmatprep.subr.mxu0 0.0
        %2932 = vmatpush2.msra.mxu0 0.0
        %2933 = vmatprep.subr.mxu0 0.0
        %2934 = vmatpush2.msra.mxu0 0.0
        %2935 = vmatprep.subr.mxu0 0.0
        %2936 = vmatpush2.msra.mxu0 0.0
        %2937 = vmatprep.subr.mxu0 0.0
        %2938 = vmatpush2.msra.mxu0 0.0
        %2939 = vmatprep.mubr.f32.mxu0 0.0
        %v2940 = vand.u32 %v2384, 4294901760
        %2941 = vmatmul.mubr.f32.gmra.mxu0 %v2940
        %v2942 = vpop.f32.mrf.mxu0
        %v2943 = vadd.f32 %v2824, %v2942
        %v2944 = vpop.f32.mrf.mxu0
        %2945 = vmatprep.mubr.f32.mxu0 0.0
        %v2946 = vand.u32 %v2387, 4294901760
        %2947 = vmatmul.mubr.f32.gmra.mxu0 %v2946
        %v2948 = vpop.f32.mrf.mxu0
        %v2949 = vadd.f32 %v2832, %v2948
        %v2950 = vpop.f32.mrf.mxu0
        %2951 = vmatprep.mubr.f32.mxu0 0.0
        %v2952 = vand.u32 %v2390, 4294901760
        %2953 = vmatmul.mubr.f32.gmra.mxu0 %v2952
        %v2954 = vpop.f32.mrf.mxu0
        %v2955 = vadd.f32 %v2840, %v2954
        %v2956 = vpop.f32.mrf.mxu0
        %2957 = vmatprep.mubr.f32.mxu0 0.0
        %v2958 = vand.u32 %v2393, 4294901760
        %2959 = vmatmul.mubr.f32.gmra.mxu0 %v2958
        %v2960 = vpop.f32.mrf.mxu0
        %v2961 = vadd.f32 %v2848, %v2960
        %v2962 = vpop.f32.mrf.mxu0
        %2963 = vdwg.mxu0
        %2964 = vmatprep.subr.mxu0 0.0
        %2965 = vmatpush1.msra.mxu0 0.0
        %2966 = vmatprep.subr.mxu0 0.0
        %2967 = vmatpush1.msra.mxu0 0.0
        %2968 = vmatprep.subr.mxu0 0.0
        %2969 = vmatpush1.msra.mxu0 0.0
        %2970 = vmatprep.subr.mxu0 0.0
        %2971 = vmatpush1.msra.mxu0 0.0
        %2972 = vmatprep.subr.mxu0 0.0
        %2973 = vmatpush1.msra.mxu0 0.0
        %2974 = vmatprep.subr.mxu0 0.0
        %2975 = vmatpush1.msra.mxu0 0.0
        %2976 = vmatprep.subr.mxu0 0.0
        %2977 = vmatpush1.msra.mxu0 0.0
        %2978 = vmatprep.subr.mxu0 0.0
        %2979 = vmatpush1.msra.mxu0 0.0
        %2980 = vmatprep.subr.mxu0 0.0
        %v2981 = vand.u32 %v2354, 4294901760
        %2982 = vmatpush1.msra.mxu0 %v2981
        %2983 = vmatprep.subr.mxu0 0.0
        %v2984 = vand.u32 %v2353, 4294901760
        %2985 = vmatpush1.msra.mxu0 %v2984
        %2986 = vmatprep.subr.mxu0 0.0
        %v2987 = vand.u32 %v2352, 4294901760
        %2988 = vmatpush1.msra.mxu0 %v2987
        %2989 = vmatprep.subr.mxu0 0.0
        %v2990 = vand.u32 %v2351, 4294901760
        %2991 = vmatpush1.msra.mxu0 %v2990
        %2992 = vmatprep.subr.mxu0 0.0
        %v2993 = vand.u32 %v2350, 4294901760
        %2994 = vmatpush1.msra.mxu0 %v2993
        %2995 = vmatprep.subr.mxu0 0.0
        %v2996 = vand.u32 %v2349, 4294901760
        %2997 = vmatpush1.msra.mxu0 %v2996
        %2998 = vmatprep.subr.mxu0 0.0
        %v2999 = vand.u32 %v2348, 4294901760
        %3000 = vmatpush1.msra.mxu0 %v2999
        %3001 = vmatprep.subr.mxu0 0.0
        %v3002 = vand.u32 %v2347, 4294901760
        %3003 = vmatpush1.msra.mxu0 %v3002
        %3004 = vmatprep.subr.mxu0 0.0
        %3005 = vmatpush2.msra.mxu0 0.0
        %3006 = vmatprep.subr.mxu0 0.0
        %3007 = vmatpush2.msra.mxu0 0.0
        %3008 = vmatprep.subr.mxu0 0.0
        %3009 = vmatpush2.msra.mxu0 0.0
        %3010 = vmatprep.subr.mxu0 0.0
        %3011 = vmatpush2.msra.mxu0 0.0
        %3012 = vmatprep.subr.mxu0 0.0
        %3013 = vmatpush2.msra.mxu0 0.0
        %3014 = vmatprep.subr.mxu0 0.0
        %3015 = vmatpush2.msra.mxu0 0.0
        %3016 = vmatprep.subr.mxu0 0.0
        %3017 = vmatpush2.msra.mxu0 0.0
        %3018 = vmatprep.subr.mxu0 0.0
        %3019 = vmatpush2.msra.mxu0 0.0
        %3020 = vmatprep.subr.mxu0 0.0
        %3021 = vmatpush2.msra.mxu0 0.0
        %3022 = vmatprep.subr.mxu0 0.0
        %3023 = vmatpush2.msra.mxu0 0.0
        %3024 = vmatprep.subr.mxu0 0.0
        %3025 = vmatpush2.msra.mxu0 0.0
        %3026 = vmatprep.subr.mxu0 0.0
        %3027 = vmatpush2.msra.mxu0 0.0
        %3028 = vmatprep.subr.mxu0 0.0
        %3029 = vmatpush2.msra.mxu0 0.0
        %3030 = vmatprep.subr.mxu0 0.0
        %3031 = vmatpush2.msra.mxu0 0.0
        %3032 = vmatprep.subr.mxu0 0.0
        %3033 = vmatpush2.msra.mxu0 0.0
        %3034 = vmatprep.subr.mxu0 0.0
        %3035 = vmatpush2.msra.mxu0 0.0
        %3036 = vmatprep.mubr.f32.mxu0 0.0
        %v3037 = vand.u32 %v2384, 4294901760
        %3038 = vmatmul.mubr.f32.gmra.mxu0 %v3037
        %v3039 = vpop.f32.mrf.mxu0
        %v3040 = vadd.f32 %v2943, %v3039
        %v3041 = vpop.f32.mrf.mxu0
        %3042 = vmatprep.mubr.f32.mxu0 0.0
        %v3043 = vand.u32 %v2387, 4294901760
        %3044 = vmatmul.mubr.f32.gmra.mxu0 %v3043
        %v3045 = vpop.f32.mrf.mxu0
        %v3046 = vadd.f32 %v2949, %v3045
        %v3047 = vpop.f32.mrf.mxu0
        %3048 = vmatprep.mubr.f32.mxu0 0.0
        %v3049 = vand.u32 %v2390, 4294901760
        %3050 = vmatmul.mubr.f32.gmra.mxu0 %v3049
        %v3051 = vpop.f32.mrf.mxu0
        %v3052 = vadd.f32 %v2955, %v3051
        %v3053 = vpop.f32.mrf.mxu0
        %3054 = vmatprep.mubr.f32.mxu0 0.0
        %v3055 = vand.u32 %v2393, 4294901760
        %3056 = vmatmul.mubr.f32.gmra.mxu0 %v3055
        %v3057 = vpop.f32.mrf.mxu0
        %v3058 = vadd.f32 %v2961, %v3057
        %v3059 = vpop.f32.mrf.mxu0
        %3060 = vdwg.mxu0
        %v3061 = vmax.f32 %v3040, 0.0
        %v3062 = vmax.f32 %v3046, 0.0
        %v3063 = vmax.f32 %v3052, 0.0
        %v3064 = vmax.f32 %v3058, 0.0
        %v3065 = vld [vmem:[%s7] sm:$0x3]
        %v3066 = vld [vmem:[%s8] sm:$0x3]
        %3068 = vset.pattern.permute.xlu0 0
        %3069 = vperm.xlu0 %3068, %v3066
        %v3070 = vpop.permute.xlu0 %3069
        %vm3072 = vcmask 261120
        %v3074 = vsel %vm3072, %v3065, 0
        %3076 = vmatprep.subr.mxu0 0.0
        %3077 = vmatpush1.msra.mxu0 0.0
        %3078 = vmatprep.subr.mxu0 0.0
        %3079 = vmatpush1.msra.mxu0 0.0
        %3080 = vmatprep.subr.mxu0 0.0
        %3081 = vmatpush1.msra.mxu0 0.0
        %3082 = vmatprep.subr.mxu0 0.0
        %3083 = vmatpush1.msra.mxu0 0.0
        %3084 = vmatprep.subr.mxu0 0.0
        %3085 = vmatpush1.msra.mxu0 0.0
        %3086 = vmatprep.subr.mxu0 0.0
        %3087 = vmatpush1.msra.mxu0 0.0
        %3088 = vmatprep.subr.mxu0 0.0
        %3089 = vmatpush1.msra.mxu0 0.0
        %3090 = vmatprep.subr.mxu0 0.0
        %3091 = vmatpush1.msra.mxu0 0.0
        %3092 = vmatprep.subr.mxu0 0.0
        %3093 = vmatpush1.msra.mxu0 0.0
        %3094 = vmatprep.subr.mxu0 0.0
        %3095 = vmatpush1.msra.mxu0 0.0
        %3096 = vmatprep.subr.mxu0 0.0
        %3097 = vmatpush1.msra.mxu0 0.0
        %3098 = vmatprep.subr.mxu0 0.0
        %3099 = vmatpush1.msra.mxu0 0.0
        %3100 = vmatprep.subr.mxu0 0.0
        %v3101 = vand.u32 %v3064, 4294901760
        %3102 = vmatpush1.msra.mxu0 %v3101
        %3103 = vmatprep.subr.mxu0 0.0
        %v3104 = vand.u32 %v3063, 4294901760
        %3105 = vmatpush1.msra.mxu0 %v3104
        %3106 = vmatprep.subr.mxu0 0.0
        %v3107 = vand.u32 %v3062, 4294901760
        %3108 = vmatpush1.msra.mxu0 %v3107
        %3109 = vmatprep.subr.mxu0 0.0
        %v3110 = vand.u32 %v3061, 4294901760
        %3111 = vmatpush1.msra.mxu0 %v3110
        %3112 = vmatprep.subr.mxu0 0.0
        %3113 = vmatpush2.msra.mxu0 0.0
        %3114 = vmatprep.subr.mxu0 0.0
        %3115 = vmatpush2.msra.mxu0 0.0
        %3116 = vmatprep.subr.mxu0 0.0
        %3117 = vmatpush2.msra.mxu0 0.0
        %3118 = vmatprep.subr.mxu0 0.0
        %3119 = vmatpush2.msra.mxu0 0.0
        %3120 = vmatprep.subr.mxu0 0.0
        %3121 = vmatpush2.msra.mxu0 0.0
        %3122 = vmatprep.subr.mxu0 0.0
        %3123 = vmatpush2.msra.mxu0 0.0
        %3124 = vmatprep.subr.mxu0 0.0
        %3125 = vmatpush2.msra.mxu0 0.0
        %3126 = vmatprep.subr.mxu0 0.0
        %3127 = vmatpush2.msra.mxu0 0.0
        %3128 = vmatprep.subr.mxu0 0.0
        %3129 = vmatpush2.msra.mxu0 0.0
        %3130 = vmatprep.subr.mxu0 0.0
        %3131 = vmatpush2.msra.mxu0 0.0
        %3132 = vmatprep.subr.mxu0 0.0
        %3133 = vmatpush2.msra.mxu0 0.0
        %3134 = vmatprep.subr.mxu0 0.0
        %3135 = vmatpush2.msra.mxu0 0.0
        %3136 = vmatprep.subr.mxu0 0.0
        %3137 = vmatpush2.msra.mxu0 0.0
        %3138 = vmatprep.subr.mxu0 0.0
        %3139 = vmatpush2.msra.mxu0 0.0
        %3140 = vmatprep.subr.mxu0 0.0
        %3141 = vmatpush2.msra.mxu0 0.0
        %3142 = vmatprep.subr.mxu0 0.0
        %3143 = vmatpush2.msra.mxu0 0.0
        %3144 = vmatprep.mubr.f32.mxu0 0.0
        %v3145 = vand.u32 %v3074, 4294901760
        %v3146 = vsub.f32 %v3074, %v3145
        %v3147 = vand.u32 %v3146, 4294901760
        %v3148 = vsub.f32 %v3146, %v3147
        %v3149 = vand.u32 %v3148, 4294901760
        %3150 = vmatmul.mubr.f32.gmra.mxu0 %v3149
        %v3151 = vpop.f32.mrf.mxu0
        %v3152 = vadd.f32 %v3070, %v3151
        %v3153 = vpop.f32.mrf.mxu0
        %3154 = vdwg.mxu0
        %3155 = vmatprep.subr.mxu0 0.0
        %3156 = vmatpush1.msra.mxu0 0.0
        %3157 = vmatprep.subr.mxu0 0.0
        %3158 = vmatpush1.msra.mxu0 0.0
        %3159 = vmatprep.subr.mxu0 0.0
        %3160 = vmatpush1.msra.mxu0 0.0
        %3161 = vmatprep.subr.mxu0 0.0
        %3162 = vmatpush1.msra.mxu0 0.0
        %3163 = vmatprep.subr.mxu0 0.0
        %3164 = vmatpush1.msra.mxu0 0.0
        %3165 = vmatprep.subr.mxu0 0.0
        %3166 = vmatpush1.msra.mxu0 0.0
        %3167 = vmatprep.subr.mxu0 0.0
        %3168 = vmatpush1.msra.mxu0 0.0
        %3169 = vmatprep.subr.mxu0 0.0
        %3170 = vmatpush1.msra.mxu0 0.0
        %3171 = vmatprep.subr.mxu0 0.0
        %3172 = vmatpush1.msra.mxu0 0.0
        %3173 = vmatprep.subr.mxu0 0.0
        %3174 = vmatpush1.msra.mxu0 0.0
        %3175 = vmatprep.subr.mxu0 0.0
        %3176 = vmatpush1.msra.mxu0 0.0
        %3177 = vmatprep.subr.mxu0 0.0
        %3178 = vmatpush1.msra.mxu0 0.0
        %3179 = vmatprep.subr.mxu0 0.0
        %v3180 = vand.u32 %v3064, 4294901760
        %v3181 = vsub.f32 %v3064, %v3180
        %v3182 = vand.u32 %v3181, 4294901760
        %v3183 = vsub.f32 %v3181, %v3182
        %v3184 = vand.u32 %v3183, 4294901760
        %3185 = vmatpush1.msra.mxu0 %v3184
        %3186 = vmatprep.subr.mxu0 0.0
        %v3187 = vand.u32 %v3063, 4294901760
        %v3188 = vsub.f32 %v3063, %v3187
        %v3189 = vand.u32 %v3188, 4294901760
        %v3190 = vsub.f32 %v3188, %v3189
        %v3191 = vand.u32 %v3190, 4294901760
        %3192 = vmatpush1.msra.mxu0 %v3191
        %3193 = vmatprep.subr.mxu0 0.0
        %v3194 = vand.u32 %v3062, 4294901760
        %v3195 = vsub.f32 %v3062, %v3194
        %v3196 = vand.u32 %v3195, 4294901760
        %v3197 = vsub.f32 %v3195, %v3196
        %v3198 = vand.u32 %v3197, 4294901760
        %3199 = vmatpush1.msra.mxu0 %v3198
        %3200 = vmatprep.subr.mxu0 0.0
        %v3201 = vand.u32 %v3061, 4294901760
        %v3202 = vsub.f32 %v3061, %v3201
        %v3203 = vand.u32 %v3202, 4294901760
        %v3204 = vsub.f32 %v3202, %v3203
        %v3205 = vand.u32 %v3204, 4294901760
        %3206 = vmatpush1.msra.mxu0 %v3205
        %3207 = vmatprep.subr.mxu0 0.0
        %3208 = vmatpush2.msra.mxu0 0.0
        %3209 = vmatprep.subr.mxu0 0.0
        %3210 = vmatpush2.msra.mxu0 0.0
        %3211 = vmatprep.subr.mxu0 0.0
        %3212 = vmatpush2.msra.mxu0 0.0
        %3213 = vmatprep.subr.mxu0 0.0
        %3214 = vmatpush2.msra.mxu0 0.0
        %3215 = vmatprep.subr.mxu0 0.0
        %3216 = vmatpush2.msra.mxu0 0.0
        %3217 = vmatprep.subr.mxu0 0.0
        %3218 = vmatpush2.msra.mxu0 0.0
        %3219 = vmatprep.subr.mxu0 0.0
        %3220 = vmatpush2.msra.mxu0 0.0
        %3221 = vmatprep.subr.mxu0 0.0
        %3222 = vmatpush2.msra.mxu0 0.0
        %3223 = vmatprep.subr.mxu0 0.0
        %3224 = vmatpush2.msra.mxu0 0.0
        %3225 = vmatprep.subr.mxu0 0.0
        %3226 = vmatpush2.msra.mxu0 0.0
        %3227 = vmatprep.subr.mxu0 0.0
        %3228 = vmatpush2.msra.mxu0 0.0
        %3229 = vmatprep.subr.mxu0 0.0
        %3230 = vmatpush2.msra.mxu0 0.0
        %3231 = vmatprep.subr.mxu0 0.0
        %3232 = vmatpush2.msra.mxu0 0.0
        %3233 = vmatprep.subr.mxu0 0.0
        %3234 = vmatpush2.msra.mxu0 0.0
        %3235 = vmatprep.subr.mxu0 0.0
        %3236 = vmatpush2.msra.mxu0 0.0
        %3237 = vmatprep.subr.mxu0 0.0
        %3238 = vmatpush2.msra.mxu0 0.0
        %3239 = vmatprep.mubr.f32.mxu0 0.0
        %v3240 = vand.u32 %v3074, 4294901760
        %3241 = vmatmul.mubr.f32.gmra.mxu0 %v3240
        %v3242 = vpop.f32.mrf.mxu0
        %v3243 = vadd.f32 %v3152, %v3242
        %v3244 = vpop.f32.mrf.mxu0
        %3245 = vdwg.mxu0
        %3246 = vmatprep.subr.mxu0 0.0
        %3247 = vmatpush1.msra.mxu0 0.0
        %3248 = vmatprep.subr.mxu0 0.0
        %3249 = vmatpush1.msra.mxu0 0.0
        %3250 = vmatprep.subr.mxu0 0.0
        %3251 = vmatpush1.msra.mxu0 0.0
        %3252 = vmatprep.subr.mxu0 0.0
        %3253 = vmatpush1.msra.mxu0 0.0
        %3254 = vmatprep.subr.mxu0 0.0
        %3255 = vmatpush1.msra.mxu0 0.0
        %3256 = vmatprep.subr.mxu0 0.0
        %3257 = vmatpush1.msra.mxu0 0.0
        %3258 = vmatprep.subr.mxu0 0.0
        %3259 = vmatpush1.msra.mxu0 0.0
        %3260 = vmatprep.subr.mxu0 0.0
        %3261 = vmatpush1.msra.mxu0 0.0
        %3262 = vmatprep.subr.mxu0 0.0
        %3263 = vmatpush1.msra.mxu0 0.0
        %3264 = vmatprep.subr.mxu0 0.0
        %3265 = vmatpush1.msra.mxu0 0.0
        %3266 = vmatprep.subr.mxu0 0.0
        %3267 = vmatpush1.msra.mxu0 0.0
        %3268 = vmatprep.subr.mxu0 0.0
        %3269 = vmatpush1.msra.mxu0 0.0
        %3270 = vmatprep.subr.mxu0 0.0
        %v3271 = vand.u32 %v3064, 4294901760
        %v3272 = vsub.f32 %v3064, %v3271
        %3273 = vmatpush1.msra.mxu0 %v3272
        %3274 = vmatprep.subr.mxu0 0.0
        %v3275 = vand.u32 %v3063, 4294901760
        %v3276 = vsub.f32 %v3063, %v3275
        %3277 = vmatpush1.msra.mxu0 %v3276
        %3278 = vmatprep.subr.mxu0 0.0
        %v3279 = vand.u32 %v3062, 4294901760
        %v3280 = vsub.f32 %v3062, %v3279
        %3281 = vmatpush1.msra.mxu0 %v3280
        %3282 = vmatprep.subr.mxu0 0.0
        %v3283 = vand.u32 %v3061, 4294901760
        %v3284 = vsub.f32 %v3061, %v3283
        %3285 = vmatpush1.msra.mxu0 %v3284
        %3286 = vmatprep.subr.mxu0 0.0
        %3287 = vmatpush2.msra.mxu0 0.0
        %3288 = vmatprep.subr.mxu0 0.0
        %3289 = vmatpush2.msra.mxu0 0.0
        %3290 = vmatprep.subr.mxu0 0.0
        %3291 = vmatpush2.msra.mxu0 0.0
        %3292 = vmatprep.subr.mxu0 0.0
        %3293 = vmatpush2.msra.mxu0 0.0
        %3294 = vmatprep.subr.mxu0 0.0
        %3295 = vmatpush2.msra.mxu0 0.0
        %3296 = vmatprep.subr.mxu0 0.0
        %3297 = vmatpush2.msra.mxu0 0.0
        %3298 = vmatprep.subr.mxu0 0.0
        %3299 = vmatpush2.msra.mxu0 0.0
        %3300 = vmatprep.subr.mxu0 0.0
        %3301 = vmatpush2.msra.mxu0 0.0
        %3302 = vmatprep.subr.mxu0 0.0
        %3303 = vmatpush2.msra.mxu0 0.0
        %3304 = vmatprep.subr.mxu0 0.0
        %3305 = vmatpush2.msra.mxu0 0.0
        %3306 = vmatprep.subr.mxu0 0.0
        %3307 = vmatpush2.msra.mxu0 0.0
        %3308 = vmatprep.subr.mxu0 0.0
        %3309 = vmatpush2.msra.mxu0 0.0
        %3310 = vmatprep.subr.mxu0 0.0
        %3311 = vmatpush2.msra.mxu0 0.0
        %3312 = vmatprep.subr.mxu0 0.0
        %3313 = vmatpush2.msra.mxu0 0.0
        %3314 = vmatprep.subr.mxu0 0.0
        %3315 = vmatpush2.msra.mxu0 0.0
        %3316 = vmatprep.subr.mxu0 0.0
        %3317 = vmatpush2.msra.mxu0 0.0
        %3318 = vmatprep.mubr.f32.mxu0 0.0
        %v3319 = vand.u32 %v3074, 4294901760
        %v3320 = vsub.f32 %v3074, %v3319
        %3321 = vmatmul.mubr.f32.gmra.mxu0 %v3320
        %v3322 = vpop.f32.mrf.mxu0
        %v3323 = vadd.f32 %v3243, %v3322
        %v3324 = vpop.f32.mrf.mxu0
        %3325 = vdwg.mxu0
        %3326 = vmatprep.subr.mxu0 0.0
        %3327 = vmatpush1.msra.mxu0 0.0
        %3328 = vmatprep.subr.mxu0 0.0
        %3329 = vmatpush1.msra.mxu0 0.0
        %3330 = vmatprep.subr.mxu0 0.0
        %3331 = vmatpush1.msra.mxu0 0.0
        %3332 = vmatprep.subr.mxu0 0.0
        %3333 = vmatpush1.msra.mxu0 0.0
        %3334 = vmatprep.subr.mxu0 0.0
        %3335 = vmatpush1.msra.mxu0 0.0
        %3336 = vmatprep.subr.mxu0 0.0
        %3337 = vmatpush1.msra.mxu0 0.0
        %3338 = vmatprep.subr.mxu0 0.0
        %3339 = vmatpush1.msra.mxu0 0.0
        %3340 = vmatprep.subr.mxu0 0.0
        %3341 = vmatpush1.msra.mxu0 0.0
        %3342 = vmatprep.subr.mxu0 0.0
        %3343 = vmatpush1.msra.mxu0 0.0
        %3344 = vmatprep.subr.mxu0 0.0
        %3345 = vmatpush1.msra.mxu0 0.0
        %3346 = vmatprep.subr.mxu0 0.0
        %3347 = vmatpush1.msra.mxu0 0.0
        %3348 = vmatprep.subr.mxu0 0.0
        %3349 = vmatpush1.msra.mxu0 0.0
        %3350 = vmatprep.subr.mxu0 0.0
        %v3351 = vand.u32 %v3064, 4294901760
        %3352 = vmatpush1.msra.mxu0 %v3351
        %3353 = vmatprep.subr.mxu0 0.0
        %v3354 = vand.u32 %v3063, 4294901760
        %3355 = vmatpush1.msra.mxu0 %v3354
        %3356 = vmatprep.subr.mxu0 0.0
        %v3357 = vand.u32 %v3062, 4294901760
        %3358 = vmatpush1.msra.mxu0 %v3357
        %3359 = vmatprep.subr.mxu0 0.0
        %v3360 = vand.u32 %v3061, 4294901760
        %3361 = vmatpush1.msra.mxu0 %v3360
        %3362 = vmatprep.subr.mxu0 0.0
        %3363 = vmatpush2.msra.mxu0 0.0
        %3364 = vmatprep.subr.mxu0 0.0
        %3365 = vmatpush2.msra.mxu0 0.0
        %3366 = vmatprep.subr.mxu0 0.0
        %3367 = vmatpush2.msra.mxu0 0.0
        %3368 = vmatprep.subr.mxu0 0.0
        %3369 = vmatpush2.msra.mxu0 0.0
        %3370 = vmatprep.subr.mxu0 0.0
        %3371 = vmatpush2.msra.mxu0 0.0
        %3372 = vmatprep.subr.mxu0 0.0
        %3373 = vmatpush2.msra.mxu0 0.0
        %3374 = vmatprep.subr.mxu0 0.0
        %3375 = vmatpush2.msra.mxu0 0.0
        %3376 = vmatprep.subr.mxu0 0.0
        %3377 = vmatpush2.msra.mxu0 0.0
        %3378 = vmatprep.subr.mxu0 0.0
        %3379 = vmatpush2.msra.mxu0 0.0
        %3380 = vmatprep.subr.mxu0 0.0
        %3381 = vmatpush2.msra.mxu0 0.0
        %3382 = vmatprep.subr.mxu0 0.0
        %3383 = vmatpush2.msra.mxu0 0.0
        %3384 = vmatprep.subr.mxu0 0.0
        %3385 = vmatpush2.msra.mxu0 0.0
        %3386 = vmatprep.subr.mxu0 0.0
        %3387 = vmatpush2.msra.mxu0 0.0
        %3388 = vmatprep.subr.mxu0 0.0
        %3389 = vmatpush2.msra.mxu0 0.0
        %3390 = vmatprep.subr.mxu0 0.0
        %3391 = vmatpush2.msra.mxu0 0.0
        %3392 = vmatprep.subr.mxu0 0.0
        %3393 = vmatpush2.msra.mxu0 0.0
        %3394 = vmatprep.mubr.f32.mxu0 0.0
        %v3395 = vand.u32 %v3074, 4294901760
        %v3396 = vsub.f32 %v3074, %v3395
        %v3397 = vand.u32 %v3396, 4294901760
        %3398 = vmatmul.mubr.f32.gmra.mxu0 %v3397
        %v3399 = vpop.f32.mrf.mxu0
        %v3400 = vadd.f32 %v3323, %v3399
        %v3401 = vpop.f32.mrf.mxu0
        %3402 = vdwg.mxu0
        %3403 = vmatprep.subr.mxu0 0.0
        %3404 = vmatpush1.msra.mxu0 0.0
        %3405 = vmatprep.subr.mxu0 0.0
        %3406 = vmatpush1.msra.mxu0 0.0
        %3407 = vmatprep.subr.mxu0 0.0
        %3408 = vmatpush1.msra.mxu0 0.0
        %3409 = vmatprep.subr.mxu0 0.0
        %3410 = vmatpush1.msra.mxu0 0.0
        %3411 = vmatprep.subr.mxu0 0.0
        %3412 = vmatpush1.msra.mxu0 0.0
        %3413 = vmatprep.subr.mxu0 0.0
        %3414 = vmatpush1.msra.mxu0 0.0
        %3415 = vmatprep.subr.mxu0 0.0
        %3416 = vmatpush1.msra.mxu0 0.0
        %3417 = vmatprep.subr.mxu0 0.0
        %3418 = vmatpush1.msra.mxu0 0.0
        %3419 = vmatprep.subr.mxu0 0.0
        %3420 = vmatpush1.msra.mxu0 0.0
        %3421 = vmatprep.subr.mxu0 0.0
        %3422 = vmatpush1.msra.mxu0 0.0
        %3423 = vmatprep.subr.mxu0 0.0
        %3424 = vmatpush1.msra.mxu0 0.0
        %3425 = vmatprep.subr.mxu0 0.0
        %3426 = vmatpush1.msra.mxu0 0.0
        %3427 = vmatprep.subr.mxu0 0.0
        %v3428 = vand.u32 %v3064, 4294901760
        %v3429 = vsub.f32 %v3064, %v3428
        %v3430 = vand.u32 %v3429, 4294901760
        %3431 = vmatpush1.msra.mxu0 %v3430
        %3432 = vmatprep.subr.mxu0 0.0
        %v3433 = vand.u32 %v3063, 4294901760
        %v3434 = vsub.f32 %v3063, %v3433
        %v3435 = vand.u32 %v3434, 4294901760
        %3436 = vmatpush1.msra.mxu0 %v3435
        %3437 = vmatprep.subr.mxu0 0.0
        %v3438 = vand.u32 %v3062, 4294901760
        %v3439 = vsub.f32 %v3062, %v3438
        %v3440 = vand.u32 %v3439, 4294901760
        %3441 = vmatpush1.msra.mxu0 %v3440
        %3442 = vmatprep.subr.mxu0 0.0
        %v3443 = vand.u32 %v3061, 4294901760
        %v3444 = vsub.f32 %v3061, %v3443
        %v3445 = vand.u32 %v3444, 4294901760
        %3446 = vmatpush1.msra.mxu0 %v3445
        %3447 = vmatprep.subr.mxu0 0.0
        %3448 = vmatpush2.msra.mxu0 0.0
        %3449 = vmatprep.subr.mxu0 0.0
        %3450 = vmatpush2.msra.mxu0 0.0
        %3451 = vmatprep.subr.mxu0 0.0
        %3452 = vmatpush2.msra.mxu0 0.0
        %3453 = vmatprep.subr.mxu0 0.0
        %3454 = vmatpush2.msra.mxu0 0.0
        %3455 = vmatprep.subr.mxu0 0.0
        %3456 = vmatpush2.msra.mxu0 0.0
        %3457 = vmatprep.subr.mxu0 0.0
        %3458 = vmatpush2.msra.mxu0 0.0
        %3459 = vmatprep.subr.mxu0 0.0
        %3460 = vmatpush2.msra.mxu0 0.0
        %3461 = vmatprep.subr.mxu0 0.0
        %3462 = vmatpush2.msra.mxu0 0.0
        %3463 = vmatprep.subr.mxu0 0.0
        %3464 = vmatpush2.msra.mxu0 0.0
        %3465 = vmatprep.subr.mxu0 0.0
        %3466 = vmatpush2.msra.mxu0 0.0
        %3467 = vmatprep.subr.mxu0 0.0
        %3468 = vmatpush2.msra.mxu0 0.0
        %3469 = vmatprep.subr.mxu0 0.0
        %3470 = vmatpush2.msra.mxu0 0.0
        %3471 = vmatprep.subr.mxu0 0.0
        %3472 = vmatpush2.msra.mxu0 0.0
        %3473 = vmatprep.subr.mxu0 0.0
        %3474 = vmatpush2.msra.mxu0 0.0
        %3475 = vmatprep.subr.mxu0 0.0
        %3476 = vmatpush2.msra.mxu0 0.0
        %3477 = vmatprep.subr.mxu0 0.0
        %3478 = vmatpush2.msra.mxu0 0.0
        %3479 = vmatprep.mubr.f32.mxu0 0.0
        %v3480 = vand.u32 %v3074, 4294901760
        %3481 = vmatmul.mubr.f32.gmra.mxu0 %v3480
        %v3482 = vpop.f32.mrf.mxu0
        %v3483 = vadd.f32 %v3400, %v3482
        %v3484 = vpop.f32.mrf.mxu0
        %3485 = vdwg.mxu0
        %3486 = vmatprep.subr.mxu0 0.0
        %3487 = vmatpush1.msra.mxu0 0.0
        %3488 = vmatprep.subr.mxu0 0.0
        %3489 = vmatpush1.msra.mxu0 0.0
        %3490 = vmatprep.subr.mxu0 0.0
        %3491 = vmatpush1.msra.mxu0 0.0
        %3492 = vmatprep.subr.mxu0 0.0
        %3493 = vmatpush1.msra.mxu0 0.0
        %3494 = vmatprep.subr.mxu0 0.0
        %3495 = vmatpush1.msra.mxu0 0.0
        %3496 = vmatprep.subr.mxu0 0.0
        %3497 = vmatpush1.msra.mxu0 0.0
        %3498 = vmatprep.subr.mxu0 0.0
        %3499 = vmatpush1.msra.mxu0 0.0
        %3500 = vmatprep.subr.mxu0 0.0
        %3501 = vmatpush1.msra.mxu0 0.0
        %3502 = vmatprep.subr.mxu0 0.0
        %3503 = vmatpush1.msra.mxu0 0.0
        %3504 = vmatprep.subr.mxu0 0.0
        %3505 = vmatpush1.msra.mxu0 0.0
        %3506 = vmatprep.subr.mxu0 0.0
        %3507 = vmatpush1.msra.mxu0 0.0
        %3508 = vmatprep.subr.mxu0 0.0
        %3509 = vmatpush1.msra.mxu0 0.0
        %3510 = vmatprep.subr.mxu0 0.0
        %v3511 = vand.u32 %v3064, 4294901760
        %3512 = vmatpush1.msra.mxu0 %v3511
        %3513 = vmatprep.subr.mxu0 0.0
        %v3514 = vand.u32 %v3063, 4294901760
        %3515 = vmatpush1.msra.mxu0 %v3514
        %3516 = vmatprep.subr.mxu0 0.0
        %v3517 = vand.u32 %v3062, 4294901760
        %3518 = vmatpush1.msra.mxu0 %v3517
        %3519 = vmatprep.subr.mxu0 0.0
        %v3520 = vand.u32 %v3061, 4294901760
        %3521 = vmatpush1.msra.mxu0 %v3520
        %3522 = vmatprep.subr.mxu0 0.0
        %3523 = vmatpush2.msra.mxu0 0.0
        %3524 = vmatprep.subr.mxu0 0.0
        %3525 = vmatpush2.msra.mxu0 0.0
        %3526 = vmatprep.subr.mxu0 0.0
        %3527 = vmatpush2.msra.mxu0 0.0
        %3528 = vmatprep.subr.mxu0 0.0
        %3529 = vmatpush2.msra.mxu0 0.0
        %3530 = vmatprep.subr.mxu0 0.0
        %3531 = vmatpush2.msra.mxu0 0.0
        %3532 = vmatprep.subr.mxu0 0.0
        %3533 = vmatpush2.msra.mxu0 0.0
        %3534 = vmatprep.subr.mxu0 0.0
        %3535 = vmatpush2.msra.mxu0 0.0
        %3536 = vmatprep.subr.mxu0 0.0
        %3537 = vmatpush2.msra.mxu0 0.0
        %3538 = vmatprep.subr.mxu0 0.0
        %3539 = vmatpush2.msra.mxu0 0.0
        %3540 = vmatprep.subr.mxu0 0.0
        %3541 = vmatpush2.msra.mxu0 0.0
        %3542 = vmatprep.subr.mxu0 0.0
        %3543 = vmatpush2.msra.mxu0 0.0
        %3544 = vmatprep.subr.mxu0 0.0
        %3545 = vmatpush2.msra.mxu0 0.0
        %3546 = vmatprep.subr.mxu0 0.0
        %3547 = vmatpush2.msra.mxu0 0.0
        %3548 = vmatprep.subr.mxu0 0.0
        %3549 = vmatpush2.msra.mxu0 0.0
        %3550 = vmatprep.subr.mxu0 0.0
        %3551 = vmatpush2.msra.mxu0 0.0
        %3552 = vmatprep.subr.mxu0 0.0
        %3553 = vmatpush2.msra.mxu0 0.0
        %3554 = vmatprep.mubr.f32.mxu0 0.0
        %v3555 = vand.u32 %v3074, 4294901760
        %3556 = vmatmul.mubr.f32.gmra.mxu0 %v3555
        %v3557 = vpop.f32.mrf.mxu0
        %v3558 = vadd.f32 %v3483, %v3557
        %v3559 = vpop.f32.mrf.mxu0
        %3560 = vdwg.mxu0
        %3561 = vst [vmem:[%s326] sm:$0x3] %v3558
        %s3562 = sand.u32 %s225, 1
        %s3563 = scalar_lea.sflag [#allocation3], %s3562
        %s3564 = sand.u32 %s225, 1
        %s3565 = smul.addr %s3564, 2
        %s3566 = scalar_lea.vmem [#allocation2], %s3565
        // Predicated region
        $region57: #{neural_network_2d_output.1} parent=55 // pred_check
          %p3567 = pneg %p235
        $region58: #{neural_network_2d_output.1} parent=55 // pred_check_branch
          %3569 = sbr.rel (%p3567) target = $region60
        $region59: #{neural_network_2d_output.1} parent=55 // pred_region
          %s3571 = ssub.s32 32, 32
          %3572 = vsyncadd %s3563, %s3571
          %s3573 = smul.addr %s23, 32
          %s3574 = scalar_lea.hbm %s9, %s3573
          %s3576 = sshll.u32 %s3566, 4
          %s3577 = int_to_ptr.vmem [resolvable:$true] %s3576
          %3579 = dma.vmem_to_hbm [thread:$0]  %s3577, 32, %s3574, %s3563
        $region60: #{neural_network_2d_output.1} parent=55 // pred_fallthru
          _
      $region56: #{neural_network_2d_output.1} parent=5 // pred_fallthru
        _
      %p3580 = scmp.le.s32.totalorder 2, %s18
      // Predicated region
      $region61: #{neural_network_2d_output.1} parent=5 // pred_check
        %p3581 = pneg %p3580
      $region62: #{neural_network_2d_output.1} parent=5 // pred_check_branch
        %3583 = sbr.rel (%p3581) target = $region64
      $region63: #{neural_network_2d_output.1} parent=5 // pred_region
        %s3584 = ssub.s32 %s18, 2
        // Predicated region
        $region65: #{neural_network_2d_output.1} parent=63 // pred_check
          %p3585 = pneg %p241
        $region66: #{neural_network_2d_output.1} parent=63 // pred_check_branch
          %3587 = sbr.rel (%p3585) target = $region68
        $region67: #{neural_network_2d_output.1} parent=63 // pred_region
          %s3588 = sand.u32 %s226, 1
          %s3589 = scalar_lea.sflag [#allocation3], %s3588
          %s3590 = sand.u32 %s226, 1
          %s3591 = smul.addr %s3590, 2
          %s3592 = scalar_lea.vmem [#allocation2], %s3591
          %3593 = dma.done %s3589, 32
        $region68: #{neural_network_2d_output.1} parent=63 // pred_fallthru
          _
      $region64: #{neural_network_2d_output.1} parent=5 // pred_fallthru
        _
    $region6: #{neural_network_2d_output.1} parent=1 // loop_footer
      %s22 = sadd.s32 1, %s18
    $region7: #{neural_network_2d_output.1} parent=1 // loop_footer_branch
      %17 = sbr.rel target = $region3
    $region8: #{neural_network_2d_output.1} parent=1 // loop_exit
      _
    %3594 = vsyncpa [#allocation3], 1
    %s3595 = scalar_lea.sflag [#allocation3], 1
    %3596 = vsyncpa %s3595, 1

</llo_original>
